<compile_context>
chip_gen: v5e
topology: v5e:2x2
jax: 0.10.0
libtpu: 0.0.40
codegen_flags: <defaults>
</compile_context>

<pallas_src>
import functools

import jax
import jax.numpy as jnp
from jax.experimental import pallas as pl
from jax.experimental.pallas import tpu as pltpu


_MIB = 1024 * 1024


def _vmem_limit(block_bytes, headroom=2 * _MIB, cap=48 * _MIB):
    """Scoped-VMEM request: double-buffered blocks + headroom, capped < v7x 64 MiB."""
    return int(min(max(2 * block_bytes + headroom, 4 * _MIB), cap))


def _row_tile(m, cap=512):
    """Largest row tile <= cap that evenly divides m (multiple of 8 if tiled)."""
    if m <= cap:
        return m
    t = cap - cap % 8
    while t >= 8:
        if m % t == 0:
            return t
        t -= 8
    return m


def _row(a):
    return a.reshape(1, -1)


def _pinned_spec(shape, index_map):
    """Constant-index (pinned) operand; single-buffered when supported."""
    try:
        return pl.BlockSpec(shape, index_map, pipeline_mode=pl.Buffered(1))
    except Exception:  # older JAX without pipeline_mode / Buffered(1)
        return pl.BlockSpec(shape, index_map)


# --------------------------------------------------------------------------- input projection

def _linear_kernel(x_ref, w_ref, b_ref, o_ref):
    x = x_ref[...].astype(jnp.bfloat16)
    o_ref[...] = (
        jnp.dot(x, w_ref[...], preferred_element_type=jnp.float32) + b_ref[...]
    )


def pallas_linear(x, w, b, tm_cap=512):
    """y = x @ w + b.  x:(M,K) f32, w:(K,N) bf16, b:(N,) f32 -> (M,N) f32."""
    M, K = x.shape
    N = w.shape[1]
    tm = _row_tile(M, tm_cap)
    blk_bytes = tm * K * 4 + K * N * 2 + N * 4 + tm * N * 4
    return pl.pallas_call(
        _linear_kernel,
        out_shape=jax.ShapeDtypeStruct((M, N), jnp.float32),
        grid=(M // tm,),
        in_specs=[
            pl.BlockSpec((tm, K), lambda i: (i, 0)),
            _pinned_spec((K, N), lambda i: (0, 0)),
            _pinned_spec((1, N), lambda i: (0, 0)),
        ],
        out_specs=pl.BlockSpec((tm, N), lambda i: (i, 0)),
        compiler_params=pltpu.CompilerParams(
            dimension_semantics=("parallel",),
            vmem_limit_bytes=_vmem_limit(blk_bytes),
        ),
    )(x, w, b.reshape(1, N))


# --------------------------------------------------------------------------- fused encoder stack

def _encoder_stack_kernel(x_ref, wqkv_ref, bqkv_ref, wout_ref, bout_ref,
                          g1_ref, b1_ref, wff1_ref, bff1_ref,
                          wff2_ref, bff2_ref, g2_ref, b2_ref,
                          o_ref, h_ref, attn_ref, *, nhead, eps):
    layer = pl.program_id(1)

    # Activation is carried across the layer grid axis in VMEM scratch.
    @pl.when(layer == 0)
    def _():
        h_ref[...] = x_ref[...]

    x = h_ref[...]                                     # (S, D) f32
    S, D = x.shape
    Dh = D // nhead
    scale = 1.0 / float(Dh) ** 0.5

    # --- multi-head self-attention (bf16 MXU operands, f32 accumulate) ---
    xb = x.astype(jnp.bfloat16)
    qkv = jnp.dot(xb, wqkv_ref[...],
                  preferred_element_type=jnp.float32) + bqkv_ref[...]   # (S, 3D)
    qkv_b = qkv.astype(jnp.bfloat16)

    for hi in range(nhead):                            # static head loop
        q_h = qkv_b[:, hi * Dh:(hi + 1) * Dh]
        k_h = qkv_b[:, D + hi * Dh:D + (hi + 1) * Dh]
        v_h = qkv_b[:, 2 * D + hi * Dh:2 * D + (hi + 1) * Dh]
        # contraction over the head dim without an explicit K^T (no XLU xpose)
        s = jnp.einsum('qd,kd->qk', q_h, k_h,
                       preferred_element_type=jnp.float32) * scale
        s = s - jnp.max(s, axis=-1, keepdims=True)
        p = jnp.exp(s)
        p = p * pl.reciprocal(jnp.sum(p, axis=-1, keepdims=True), approx=True)
        a_h = jnp.dot(p.astype(jnp.bfloat16), v_h,
                      preferred_element_type=jnp.float32)               # (S, Dh)
        attn_ref[:, hi * Dh:(hi + 1) * Dh] = a_h       # reassemble heads in VMEM

    # single full-width out-projection: (S, D) @ (D, D)
    sa = jnp.dot(attn_ref[...].astype(jnp.bfloat16), wout_ref[...],
                 preferred_element_type=jnp.float32) + bout_ref[...]

    # --- residual + LayerNorm1 (f32 stats) ---
    h1 = x + sa
    mu = jnp.mean(h1, axis=-1, keepdims=True)
    d = h1 - mu
    var = jnp.mean(d * d, axis=-1, keepdims=True)
    h1 = d * jax.lax.rsqrt(var + eps) * g1_ref[...] + b1_ref[...]

    # --- feed-forward ---
    ff = jnp.dot(h1.astype(jnp.bfloat16), wff1_ref[...],
                 preferred_element_type=jnp.float32) + bff1_ref[...]
    ff = jnp.maximum(ff, 0.0)
    ff = jnp.dot(ff.astype(jnp.bfloat16), wff2_ref[...],
                 preferred_element_type=jnp.float32) + bff2_ref[...]

    # --- residual + LayerNorm2 ---
    h2 = h1 + ff
    mu = jnp.mean(h2, axis=-1, keepdims=True)
    d = h2 - mu
    var = jnp.mean(d * d, axis=-1, keepdims=True)
    out = d * jax.lax.rsqrt(var + eps) * g2_ref[...] + b2_ref[...]

    h_ref[...] = out                                   # carry to next layer

    @pl.when(layer == pl.num_programs(1) - 1)
    def _():
        o_ref[...] = out


def pallas_encoder_stack(x, sp, nhead, eps=1e-5):
    """All post-norm nn.TransformerEncoderLayer layers (eval mode, ReLU) fused."""
    B, S, D = x.shape
    L = sp["qkv_w"].shape[0]
    Dff = sp["ff1_w"].shape[2]

    def w_spec(shape):
        # one layer's slice; index follows the (arbitrary) layer grid axis
        return pl.BlockSpec((None,) + shape, lambda b, l: (l,) + (0,) * len(shape))

    act_spec = pl.BlockSpec((None, S, D), lambda b, l: (b, 0, 0))  # squeeze batch

    # per-step footprint: one layer's bf16 weights (double-buffered so layer l+1
    # prefetches during layer l) + a few (S, D) f32 activation blocks.
    wbytes = 2 * (D * 3 * D + D * D + D * Dff + Dff * D)
    abytes = 4 * S * D * 4
    return pl.pallas_call(
        functools.partial(_encoder_stack_kernel, nhead=nhead, eps=eps),
        out_shape=jax.ShapeDtypeStruct((B, S, D), jnp.float32),
        grid=(B, L),
        in_specs=[
            act_spec,
            w_spec((D, 3 * D)), w_spec((1, 3 * D)),
            w_spec((D, D)), w_spec((1, D)),
            w_spec((1, D)), w_spec((1, D)),
            w_spec((D, Dff)), w_spec((1, Dff)),
            w_spec((Dff, D)), w_spec((1, D)),
            w_spec((1, D)), w_spec((1, D)),
        ],
        out_specs=act_spec,
        scratch_shapes=[
            pltpu.VMEM((S, D), jnp.float32),   # carried activation
            pltpu.VMEM((S, D), jnp.float32),   # reassembled attention heads
        ],
        compiler_params=pltpu.CompilerParams(
            dimension_semantics=("parallel", "arbitrary"),
            vmem_limit_bytes=_vmem_limit(wbytes + abytes),
        ),
    )(x,
      sp["qkv_w"], sp["qkv_b"], sp["out_w"], sp["out_b"],
      sp["ln1_g"], sp["ln1_b"],
      sp["ff1_w"], sp["ff1_b"], sp["ff2_w"], sp["ff2_b"],
      sp["ln2_g"], sp["ln2_b"])


# --------------------------------------------------------------------------- fused pool + head

def _head_kernel(h_ref, w1_ref, b1_ref, g_ref, beta_ref, rm_ref, rv_ref,
                 w2_ref, b2_ref, o_ref, *, eps):
    # mean pool over seq -> Linear -> BatchNorm1d(eval) -> ReLU -> Linear -> Sigmoid
    pooled = jnp.mean(h_ref[...], axis=1)                               # (B, D)
    z = jnp.dot(pooled.astype(jnp.bfloat16), w1_ref[...],
                preferred_element_type=jnp.float32) + b1_ref[...]       # (B, H)
    scale = g_ref[...] * jax.lax.rsqrt(rv_ref[...] + eps)
    shift = beta_ref[...] - rm_ref[...] * scale
    z = jnp.maximum(z * scale + shift, 0.0)
    # N=1 matmul would waste an MXU push/pop; VPU multiply + lane reduce instead.
    logit = jnp.sum(z * w2_ref[...].astype(jnp.float32), axis=-1,
                    keepdims=True) + b2_ref[...]                        # (B, 1)
    # exact, numerically stable sigmoid (no overflow for large |logit|)
    e = jnp.exp(-jnp.abs(logit))
    o_ref[...] = jnp.where(logit >= 0.0, 1.0 / (1.0 + e), e / (1.0 + e))


def pallas_head(h, params, eps=1e-5):
    B, S, D = h.shape
    Hd = params["cls1_w"].shape[1]

    def pinned(shape):
        return _pinned_spec(shape, lambda i, _s=len(shape): (0,) * _s)

    blk_bytes = B * S * D * 4 + D * Hd * 2 + 6 * Hd * 4 + B * 4
    return pl.pallas_call(
        functools.partial(_head_kernel, eps=eps),
        out_shape=jax.ShapeDtypeStruct((B, 1), jnp.float32),
        grid=(1,),
        in_specs=[
            pl.BlockSpec((B, S, D), lambda i: (0, 0, 0)),
            pinned((D, Hd)), pinned((1, Hd)),
            pinned((1, Hd)), pinned((1, Hd)), pinned((1, Hd)), pinned((1, Hd)),
            pinned((1, Hd)), pinned((1, 1)),
        ],
        out_specs=pl.BlockSpec((B, 1), lambda i: (0, 0)),
        compiler_params=pltpu.CompilerParams(
            vmem_limit_bytes=_vmem_limit(blk_bytes)),
    )(h, params["cls1_w"], _row(params["cls1_b"]),
      _row(params["bn_g"]), _row(params["bn_b"]),
      _row(params["bn_rm"]), _row(params["bn_rv"]),
      _row(params["cls2_w"]), _row(params["cls2_b"]))


# --------------------------------------------------------------------------- model glue

def transformer_classifier_forward(x, params, nhead):
    B, S, F = x.shape
    D = params["in_proj_w"].shape[1]
    h = pallas_linear(x.reshape(B * S, F), params["in_proj_w"],
                      params["in_proj_b"]).reshape(B, S, D)
    h = pallas_encoder_stack(h, params["stack"], nhead)
    return pallas_head(h, params)[:, 0]                                 # squeeze(1)


# --------------------------------------------------------------------------- params

def init_params(key, input_dim, d_model, nhead, num_layers, dim_feedforward,
                clf_hidden=512):
    def dense(k, fan_in, fan_out):
        k1, k2 = jax.random.split(k)
        bound = 1.0 / float(fan_in) ** 0.5
        w = jax.random.uniform(k1, (fan_in, fan_out), jnp.float32, -bound, bound)
        b = jax.random.uniform(k2, (fan_out,), jnp.float32, -bound, bound)
        return w.astype(jnp.bfloat16), b          # bf16 MXU weights, f32 bias

    keys = jax.random.split(key, num_layers + 3)
    params = {}
    params["in_proj_w"], params["in_proj_b"] = dense(keys[0], input_dim, d_model)

    layers = []
    for li in range(num_layers):
        lk = jax.random.split(keys[1 + li], 4)
        lp = {}
        lp["qkv_w"], b = dense(lk[0], d_model, 3 * d_model); lp["qkv_b"] = _row(b)
        lp["out_w"], b = dense(lk[1], d_model, d_model);     lp["out_b"] = _row(b)
        lp["ff1_w"], b = dense(lk[2], d_model, dim_feedforward); lp["ff1_b"] = _row(b)
        lp["ff2_w"], b = dense(lk[3], dim_feedforward, d_model); lp["ff2_b"] = _row(b)
        lp["ln1_g"] = jnp.ones((1, d_model), jnp.float32)
        lp["ln1_b"] = jnp.zeros((1, d_model), jnp.float32)
        lp["ln2_g"] = jnp.ones((1, d_model), jnp.float32)
        lp["ln2_b"] = jnp.zeros((1, d_model), jnp.float32)
        layers.append(lp)
    # Stack per-layer weights along a leading L axis so the whole encoder runs
    # as a single pallas_call with a layer grid axis.
    params["stack"] = {k: jnp.stack([lp[k] for lp in layers]) for k in layers[0]}

    params["cls1_w"], params["cls1_b"] = dense(keys[-2], d_model, clf_hidden)
    params["cls2_w"], params["cls2_b"] = dense(keys[-1], clf_hidden, 1)
    # BatchNorm1d(clf_hidden): default affine + running stats (eval mode).
    params["bn_g"] = jnp.ones((clf_hidden,), jnp.float32)
    params["bn_b"] = jnp.zeros((clf_hidden,), jnp.float32)
    params["bn_rm"] = jnp.zeros((clf_hidden,), jnp.float32)
    params["bn_rv"] = jnp.ones((clf_hidden,), jnp.float32)
    return params


# --------------------------------------------------------------------------- main

if __name__ == "__main__":
    # Small config consistent with the module; lane-friendly feature dims
    # (d_model and dim_feedforward multiples of 128, clf hidden = 512).
    B, S = 2, 8
    INPUT_DIM, D_MODEL, NHEAD, NUM_LAYERS, DIM_FF = 256, 128, 4, 2, 256

    key = jax.random.PRNGKey(0)
    kx, kp = jax.random.split(key)
    x = jax.random.normal(kx, (B, S, INPUT_DIM), dtype=jnp.float32)
    params = init_params(kp, INPUT_DIM, D_MODEL, NHEAD, NUM_LAYERS, DIM_FF)

    fwd = jax.jit(functools.partial(transformer_classifier_forward, nhead=NHEAD))
    out = fwd(x, params)
    out = jax.block_until_ready(out)

    assert out.shape == (B,), out.shape
    assert bool(jnp.all(jnp.isfinite(out)))
    assert bool(jnp.all((out >= 0.0) & (out <= 1.0)))  # sigmoid output
    print("KERNEL_OK")
</pallas_src>

<mosaic_0001>
module attributes {stable_mosaic.version = 11 : i64} {
  func.func @_linear_kernel(%arg0: i32, %arg1: memref<16x256xf32, #tpu.memory_space<vmem>>, %arg2: memref<256x128xbf16, #tpu.memory_space<vmem>>, %arg3: memref<1x128xf32, #tpu.memory_space<vmem>>, %arg4: memref<16x128xf32, #tpu.memory_space<vmem>>) attributes {dimension_semantics = [#tpu.dimension_semantics<parallel>], iteration_bounds = array<i64: 1>, scalar_prefetch = 0 : i64, scratch_operands = 0 : i64, tpu.core_type = #tpu.core_type<tc>, window_params = [{transform_indices = @transform_0, window_bounds = array<i64: 16, 256>}, {pipeline_mode = #tpu.pipeline_mode<synchronous>, transform_indices = @transform_1, window_bounds = array<i64: 256, 128>}, {pipeline_mode = #tpu.pipeline_mode<synchronous>, transform_indices = @transform_2, window_bounds = array<i64: 1, 128>}, {transform_indices = @transform_3, window_bounds = array<i64: 16, 128>}]} {
    %c0 = arith.constant 0 : index
    %c0_0 = arith.constant 0 : index
    %0 = vector.load %arg1[%c0, %c0_0] : memref<16x256xf32, #tpu.memory_space<vmem>>, vector<16x256xf32>
    %1 = arith.truncf %0 : vector<16x256xf32> to vector<16x256xbf16>
    %c0_1 = arith.constant 0 : index
    %c0_2 = arith.constant 0 : index
    %2 = vector.load %arg2[%c0_1, %c0_2] : memref<256x128xbf16, #tpu.memory_space<vmem>>, vector<256x128xbf16>
    %cst = arith.constant dense<0.000000e+00> : vector<16x128xf32>
    %3 = tpu.matmul %1, %2, %cst {dimension_numbers = #tpu.dot_dimension_numbers<[1], [0], [0], [1], [0, 0, 1, 1], [], []>} : vector<16x256xbf16>, vector<256x128xbf16>, vector<16x128xf32> -> vector<16x128xf32>
    %c0_3 = arith.constant 0 : index
    %c0_4 = arith.constant 0 : index
    %4 = vector.load %arg3[%c0_3, %c0_4] : memref<1x128xf32, #tpu.memory_space<vmem>>, vector<1x128xf32>
    %5 = vector.broadcast %4 : vector<1x128xf32> to vector<16x128xf32>
    %6 = arith.addf %3, %5 : vector<16x128xf32>
    %c0_5 = arith.constant 0 : index
    %c0_6 = arith.constant 0 : index
    %7 = vector.load %arg4[%c0_5, %c0_6] : memref<16x128xf32, #tpu.memory_space<vmem>>, vector<16x128xf32>
    tpu.vector_store %arg4[%c0_5, %c0_6], %6 {strides = array<i32>} : memref<16x128xf32, #tpu.memory_space<vmem>>, vector<16x128xf32>,
    return
  }
  func.func @transform_0(%arg0: i32) -> (i32, i32) {
    %c0_i32 = arith.constant 0 : i32
    %c0_i32_0 = arith.constant 0 : i32
    return %arg0, %c0_i32 : i32, i32
  }
  func.func @transform_1(%arg0: i32) -> (i32, i32) {
    %c0_i32 = arith.constant 0 : i32
    %c0_i32_0 = arith.constant 0 : i32
    %c0_i32_1 = arith.constant 0 : i32
    return %c0_i32, %c0_i32_0 : i32, i32
  }
  func.func @transform_2(%arg0: i32) -> (i32, i32) {
    %c0_i32 = arith.constant 0 : i32
    %c0_i32_0 = arith.constant 0 : i32
    %c0_i32_1 = arith.constant 0 : i32
    return %c0_i32, %c0_i32_0 : i32, i32
  }
  func.func @transform_3(%arg0: i32) -> (i32, i32) {
    %c0_i32 = arith.constant 0 : i32
    %c0_i32_0 = arith.constant 0 : i32
    return %arg0, %c0_i32 : i32, i32
  }
}

module attributes {stable_mosaic.version = 11 : i64} {
  func.func @_head_kernel(%arg0: i32, %arg1: memref<2x8x128xf32, #tpu.memory_space<vmem>>, %arg2: memref<128x512xbf16, #tpu.memory_space<vmem>>, %arg3: memref<1x512xf32, #tpu.memory_space<vmem>>, %arg4: memref<1x512xf32, #tpu.memory_space<vmem>>, %arg5: memref<1x512xf32, #tpu.memory_space<vmem>>, %arg6: memref<1x512xf32, #tpu.memory_space<vmem>>, %arg7: memref<1x512xf32, #tpu.memory_space<vmem>>, %arg8: memref<1x512xbf16, #tpu.memory_space<vmem>>, %arg9: memref<1x1xf32, #tpu.memory_space<vmem>>, %arg10: memref<2x1xf32, #tpu.memory_space<vmem>>) attributes {dimension_semantics = [#tpu.dimension_semantics<arbitrary>], iteration_bounds = array<i64: 1>, scalar_prefetch = 0 : i64, scratch_operands = 0 : i64, tpu.core_type = #tpu.core_type<tc>, window_params = [{pipeline_mode = #tpu.pipeline_mode<synchronous>, transform_indices = @transform_0, window_bounds = array<i64: 2, 8, 128>}, {pipeline_mode = #tpu.pipeline_mode<synchronous>, transform_indices = @transform_1, window_bounds = array<i64: 128, 512>}, {pipeline_mode = #tpu.pipeline_mode<synchronous>, transform_indices = @transform_2, window_bounds = array<i64: 1, 512>}, {pipeline_mode = #tpu.pipeline_mode<synchronous>, transform_indices = @transform_3, window_bounds = array<i64: 1, 512>}, {pipeline_mode = #tpu.pipeline_mode<synchronous>, transform_indices = @transform_4, window_bounds = array<i64: 1, 512>}, {pipeline_mode = #tpu.pipeline_mode<synchronous>, transform_indices = @transform_5, window_bounds = array<i64: 1, 512>}, {pipeline_mode = #tpu.pipeline_mode<synchronous>, transform_indices = @transform_6, window_bounds = array<i64: 1, 512>}, {pipeline_mode = #tpu.pipeline_mode<synchronous>, transform_indices = @transform_7, window_bounds = array<i64: 1, 512>}, {pipeline_mode = #tpu.pipeline_mode<synchronous>, transform_indices = @transform_8, window_bounds = array<i64: 1, 1>}, {pipeline_mode = #tpu.pipeline_mode<synchronous>, transform_indices = @transform_9, window_bounds = array<i64: 2, 1>}]} {
    %c0 = arith.constant 0 : index
    %c0_0 = arith.constant 0 : index
    %c0_1 = arith.constant 0 : index
    %0 = vector.load %arg1[%c0, %c0_0, %c0_1] : memref<2x8x128xf32, #tpu.memory_space<vmem>>, vector<2x8x128xf32>
    %cst = arith.constant dense<0.000000e+00> : vector<2x128xf32>
    %1 = vector.multi_reduction <add>, %0, %cst [1] : vector<2x8x128xf32> to vector<2x128xf32>
    %cst_2 = arith.constant 8.000000e+00 : f32
    %2 = vector.broadcast %cst_2 : f32 to vector<2x128xf32>
    %3 = arith.divf %1, %2 : vector<2x128xf32>
    %4 = arith.truncf %3 : vector<2x128xf32> to vector<2x128xbf16>
    %c0_3 = arith.constant 0 : index
    %c0_4 = arith.constant 0 : index
    %5 = vector.load %arg2[%c0_3, %c0_4] : memref<128x512xbf16, #tpu.memory_space<vmem>>, vector<128x512xbf16>
    %cst_5 = arith.constant dense<0.000000e+00> : vector<2x512xf32>
    %6 = tpu.matmul %4, %5, %cst_5 {dimension_numbers = #tpu.dot_dimension_numbers<[1], [0], [0], [1], [0, 0, 1, 1], [], []>} : vector<2x128xbf16>, vector<128x512xbf16>, vector<2x512xf32> -> vector<2x512xf32>
    %c0_6 = arith.constant 0 : index
    %c0_7 = arith.constant 0 : index
    %7 = vector.load %arg3[%c0_6, %c0_7] : memref<1x512xf32, #tpu.memory_space<vmem>>, vector<1x512xf32>
    %8 = vector.broadcast %7 : vector<1x512xf32> to vector<2x512xf32>
    %9 = arith.addf %6, %8 : vector<2x512xf32>
    %c0_8 = arith.constant 0 : index
    %c0_9 = arith.constant 0 : index
    %10 = vector.load %arg4[%c0_8, %c0_9] : memref<1x512xf32, #tpu.memory_space<vmem>>, vector<1x512xf32>
    %c0_10 = arith.constant 0 : index
    %c0_11 = arith.constant 0 : index
    %11 = vector.load %arg7[%c0_10, %c0_11] : memref<1x512xf32, #tpu.memory_space<vmem>>, vector<1x512xf32>
    %cst_12 = arith.constant 9.99999974E-6 : f32
    %12 = vector.broadcast %cst_12 : f32 to vector<1x512xf32>
    %13 = arith.addf %11, %12 : vector<1x512xf32>
    %14 = math.rsqrt %13 : vector<1x512xf32>
    %15 = arith.mulf %10, %14 : vector<1x512xf32>
    %c0_13 = arith.constant 0 : index
    %c0_14 = arith.constant 0 : index
    %16 = vector.load %arg5[%c0_13, %c0_14] : memref<1x512xf32, #tpu.memory_space<vmem>>, vector<1x512xf32>
    %c0_15 = arith.constant 0 : index
    %c0_16 = arith.constant 0 : index
    %17 = vector.load %arg6[%c0_15, %c0_16] : memref<1x512xf32, #tpu.memory_space<vmem>>, vector<1x512xf32>
    %18 = arith.mulf %17, %15 : vector<1x512xf32>
    %19 = arith.subf %16, %18 : vector<1x512xf32>
    %20 = vector.broadcast %15 : vector<1x512xf32> to vector<2x512xf32>
    %21 = arith.mulf %9, %20 : vector<2x512xf32>
    %22 = vector.broadcast %19 : vector<1x512xf32> to vector<2x512xf32>
    %23 = arith.addf %21, %22 : vector<2x512xf32>
    %cst_17 = arith.constant 0.000000e+00 : f32
    %24 = vector.broadcast %cst_17 : f32 to vector<2x512xf32>
    %25 = arith.maximumf %23, %24 : vector<2x512xf32>
    %c0_18 = arith.constant 0 : index
    %c0_19 = arith.constant 0 : index
    %26 = vector.load %arg8[%c0_18, %c0_19] : memref<1x512xbf16, #tpu.memory_space<vmem>>, vector<1x512xbf16>
    %27 = arith.extf %26 : vector<1x512xbf16> to vector<1x512xf32>
    %28 = vector.broadcast %27 : vector<1x512xf32> to vector<2x512xf32>
    %29 = arith.mulf %25, %28 : vector<2x512xf32>
    %cst_20 = arith.constant dense<0.000000e+00> : vector<2xf32>
    %30 = vector.multi_reduction <add>, %29, %cst_20 [1] : vector<2x512xf32> to vector<2xf32>
    %31 = vector.shape_cast %30 : vector<2xf32> to vector<2x1xf32>
    %c0_21 = arith.constant 0 : index
    %c0_22 = arith.constant 0 : index
    %32 = vector.load %arg9[%c0_21, %c0_22] : memref<1x1xf32, #tpu.memory_space<vmem>>, vector<1x1xf32>
    %33 = vector.broadcast %32 : vector<1x1xf32> to vector<2x1xf32>
    %34 = arith.addf %31, %33 : vector<2x1xf32>
    %35 = math.absf %34 : vector<2x1xf32>
    %cst_23 = arith.constant 0.000000e+00 : f32
    %36 = vector.broadcast %cst_23 : f32 to vector<2x1xf32>
    %37 = arith.subf %36, %35 : vector<2x1xf32>
    %38 = math.exp %37 : vector<2x1xf32>
    %cst_24 = arith.constant 0.000000e+00 : f32
    %39 = vector.broadcast %cst_24 : f32 to vector<2x1xf32>
    %40 = arith.cmpf oge, %34, %39 : vector<2x1xf32>
    %cst_25 = arith.constant 1.000000e+00 : f32
    %41 = vector.broadcast %cst_25 : f32 to vector<2x1xf32>
    %42 = arith.addf %41, %38 : vector<2x1xf32>
    %cst_26 = arith.constant 1.000000e+00 : f32
    %43 = vector.broadcast %cst_26 : f32 to vector<2x1xf32>
    %44 = arith.divf %43, %42 : vector<2x1xf32>
    %cst_27 = arith.constant 1.000000e+00 : f32
    %45 = vector.broadcast %cst_27 : f32 to vector<2x1xf32>
    %46 = arith.addf %45, %38 : vector<2x1xf32>
    %47 = arith.divf %38, %46 : vector<2x1xf32>
    %48 = arith.select %40, %44, %47 : vector<2x1xi1>, vector<2x1xf32>
    %c0_28 = arith.constant 0 : index
    %c0_29 = arith.constant 0 : index
    %49 = vector.load %arg10[%c0_28, %c0_29] : memref<2x1xf32, #tpu.memory_space<vmem>>, vector<2x1xf32>
    tpu.vector_store %arg10[%c0_28, %c0_29], %48 {strides = array<i32>} : memref<2x1xf32, #tpu.memory_space<vmem>>, vector<2x1xf32>,
    return
  }
  func.func @transform_0(%arg0: i32) -> (i32, i32, i32) {
    %c0_i32 = arith.constant 0 : i32
    %c0_i32_0 = arith.constant 0 : i32
    %c0_i32_1 = arith.constant 0 : i32
    %c0_i32_2 = arith.constant 0 : i32
    return %c0_i32, %c0_i32_0, %c0_i32_1 : i32, i32, i32
  }
  func.func @transform_1(%arg0: i32) -> (i32, i32) {
    %c0_i32 = arith.constant 0 : i32
    %c0_i32_0 = arith.constant 0 : i32
    %c0_i32_1 = arith.constant 0 : i32
    return %c0_i32, %c0_i32_0 : i32, i32
  }
  func.func @transform_2(%arg0: i32) -> (i32, i32) {
    %c0_i32 = arith.constant 0 : i32
    %c0_i32_0 = arith.constant 0 : i32
    %c0_i32_1 = arith.constant 0 : i32
    return %c0_i32, %c0_i32_0 : i32, i32
  }
  func.func @transform_3(%arg0: i32) -> (i32, i32) {
    %c0_i32 = arith.constant 0 : i32
    %c0_i32_0 = arith.constant 0 : i32
    %c0_i32_1 = arith.constant 0 : i32
    return %c0_i32, %c0_i32_0 : i32, i32
  }
  func.func @transform_4(%arg0: i32) -> (i32, i32) {
    %c0_i32 = arith.constant 0 : i32
    %c0_i32_0 = arith.constant 0 : i32
    %c0_i32_1 = arith.constant 0 : i32
    return %c0_i32, %c0_i32_0 : i32, i32
  }
  func.func @transform_5(%arg0: i32) -> (i32, i32) {
    %c0_i32 = arith.constant 0 : i32
    %c0_i32_0 = arith.constant 0 : i32
    %c0_i32_1 = arith.constant 0 : i32
    return %c0_i32, %c0_i32_0 : i32, i32
  }
  func.func @transform_6(%arg0: i32) -> (i32, i32) {
    %c0_i32 = arith.constant 0 : i32
    %c0_i32_0 = arith.constant 0 : i32
    %c0_i32_1 = arith.constant 0 : i32
    return %c0_i32, %c0_i32_0 : i32, i32
  }
  func.func @transform_7(%arg0: i32) -> (i32, i32) {
    %c0_i32 = arith.constant 0 : i32
    %c0_i32_0 = arith.constant 0 : i32
    %c0_i32_1 = arith.constant 0 : i32
    return %c0_i32, %c0_i32_0 : i32, i32
  }
  func.func @transform_8(%arg0: i32) -> (i32, i32) {
    %c0_i32 = arith.constant 0 : i32
    %c0_i32_0 = arith.constant 0 : i32
    %c0_i32_1 = arith.constant 0 : i32
    return %c0_i32, %c0_i32_0 : i32, i32
  }
  func.func @transform_9(%arg0: i32) -> (i32, i32) {
    %c0_i32 = arith.constant 0 : i32
    %c0_i32_0 = arith.constant 0 : i32
    %c0_i32_1 = arith.constant 0 : i32
    return %c0_i32, %c0_i32_0 : i32, i32
  }
}

module attributes {stable_mosaic.version = 11 : i64} {
  func.func @_encoder_stack_kernel(%arg0: i32, %arg1: i32, %arg2: memref<1x8x128xf32, #tpu.memory_space<vmem>>, %arg3: memref<1x128x384xbf16, #tpu.memory_space<vmem>>, %arg4: memref<1x1x384xf32, #tpu.memory_space<vmem>>, %arg5: memref<1x128x128xbf16, #tpu.memory_space<vmem>>, %arg6: memref<1x1x128xf32, #tpu.memory_space<vmem>>, %arg7: memref<1x1x128xf32, #tpu.memory_space<vmem>>, %arg8: memref<1x1x128xf32, #tpu.memory_space<vmem>>, %arg9: memref<1x128x256xbf16, #tpu.memory_space<vmem>>, %arg10: memref<1x1x256xf32, #tpu.memory_space<vmem>>, %arg11: memref<1x256x128xbf16, #tpu.memory_space<vmem>>, %arg12: memref<1x1x128xf32, #tpu.memory_space<vmem>>, %arg13: memref<1x1x128xf32, #tpu.memory_space<vmem>>, %arg14: memref<1x1x128xf32, #tpu.memory_space<vmem>>, %arg15: memref<1x8x128xf32, #tpu.memory_space<vmem>>, %arg16: memref<8x128xf32, #tpu.memory_space<vmem>>, %arg17: memref<8x128xf32, #tpu.memory_space<vmem>>) attributes {dimension_semantics = [#tpu.dimension_semantics<parallel>, #tpu.dimension_semantics<arbitrary>], iteration_bounds = array<i64: 2, 2>, scalar_prefetch = 0 : i64, scratch_operands = 2 : i64, tpu.core_type = #tpu.core_type<tc>, window_params = [{transform_indices = @transform_0, window_bounds = array<i64: 1, 8, 128>}, {transform_indices = @transform_1, window_bounds = array<i64: 1, 128, 384>}, {transform_indices = @transform_2, window_bounds = array<i64: 1, 1, 384>}, {transform_indices = @transform_3, window_bounds = array<i64: 1, 128, 128>}, {transform_indices = @transform_4, window_bounds = array<i64: 1, 1, 128>}, {transform_indices = @transform_5, window_bounds = array<i64: 1, 1, 128>}, {transform_indices = @transform_6, window_bounds = array<i64: 1, 1, 128>}, {transform_indices = @transform_7, window_bounds = array<i64: 1, 128, 256>}, {transform_indices = @transform_8, window_bounds = array<i64: 1, 1, 256>}, {transform_indices = @transform_9, window_bounds = array<i64: 1, 256, 128>}, {transform_indices = @transform_10, window_bounds = array<i64: 1, 1, 128>}, {transform_indices = @transform_11, window_bounds = array<i64: 1, 1, 128>}, {transform_indices = @transform_12, window_bounds = array<i64: 1, 1, 128>}, {transform_indices = @transform_13, window_bounds = array<i64: 1, 8, 128>}]} {
    %c0_i32 = arith.constant 0 : i32
    %0 = arith.cmpi eq, %arg1, %c0_i32 : i32
    %1 = arith.extui %0 : i1 to i32
    %c0_i32_0 = arith.constant 0 : i32
    %2 = arith.cmpi ne, %1, %c0_i32_0 : i32
    scf.if %2 {
      %c0_82 = arith.constant 0 : index
      %c0_83 = arith.constant 0 : index
      %c0_84 = arith.constant 0 : index
      %170 = vector.load %arg2[%c0_82, %c0_83, %c0_84] : memref<1x8x128xf32, #tpu.memory_space<vmem>>, vector<1x8x128xf32>
      %171 = vector.shape_cast %170 : vector<1x8x128xf32> to vector<8x128xf32>
      %c0_85 = arith.constant 0 : index
      %c0_86 = arith.constant 0 : index
      %172 = vector.load %arg16[%c0_85, %c0_86] : memref<8x128xf32, #tpu.memory_space<vmem>>, vector<8x128xf32>
      tpu.vector_store %arg16[%c0_85, %c0_86], %171 {strides = array<i32>} : memref<8x128xf32, #tpu.memory_space<vmem>>, vector<8x128xf32>,
    } else {
    }
    %c0 = arith.constant 0 : index
    %c0_1 = arith.constant 0 : index
    %3 = vector.load %arg16[%c0, %c0_1] : memref<8x128xf32, #tpu.memory_space<vmem>>, vector<8x128xf32>
    %4 = arith.truncf %3 : vector<8x128xf32> to vector<8x128xbf16>
    %c0_2 = arith.constant 0 : index
    %c0_3 = arith.constant 0 : index
    %c0_4 = arith.constant 0 : index
    %5 = vector.load %arg3[%c0_2, %c0_3, %c0_4] : memref<1x128x384xbf16, #tpu.memory_space<vmem>>, vector<1x128x384xbf16>
    %6 = vector.shape_cast %5 : vector<1x128x384xbf16> to vector<128x384xbf16>
    %cst = arith.constant dense<0.000000e+00> : vector<8x384xf32>
    %7 = tpu.matmul %4, %6, %cst {dimension_numbers = #tpu.dot_dimension_numbers<[1], [0], [0], [1], [0, 0, 1, 1], [], []>} : vector<8x128xbf16>, vector<128x384xbf16>, vector<8x384xf32> -> vector<8x384xf32>
    %c0_5 = arith.constant 0 : index
    %c0_6 = arith.constant 0 : index
    %c0_7 = arith.constant 0 : index
    %8 = vector.load %arg4[%c0_5, %c0_6, %c0_7] : memref<1x1x384xf32, #tpu.memory_space<vmem>>, vector<1x1x384xf32>
    %9 = vector.shape_cast %8 : vector<1x1x384xf32> to vector<1x384xf32>
    %10 = vector.broadcast %9 : vector<1x384xf32> to vector<8x384xf32>
    %11 = arith.addf %7, %10 : vector<8x384xf32>
    %12 = arith.truncf %11 : vector<8x384xf32> to vector<8x384xbf16>
    %13 = vector.extract_strided_slice %12 {offsets = [0, 0], sizes = [8, 32], strides = [1, 1]} : vector<8x384xbf16> to vector<8x32xbf16>
    %14 = vector.extract_strided_slice %12 {offsets = [0, 128], sizes = [8, 32], strides = [1, 1]} : vector<8x384xbf16> to vector<8x32xbf16>
    %15 = vector.extract_strided_slice %12 {offsets = [0, 256], sizes = [8, 32], strides = [1, 1]} : vector<8x384xbf16> to vector<8x32xbf16>
    "tpu.trace_start"() <{level = 10 : i32, message = "qd,kd->qk"}> : () -> ()
    %cst_8 = arith.constant dense<0.000000e+00> : vector<8x8xf32>
    %16 = tpu.matmul %13, %14, %cst_8 {dimension_numbers = #tpu.dot_dimension_numbers<[1], [1], [0], [0], [0, 0, 1, 0], [], []>} : vector<8x32xbf16>, vector<8x32xbf16>, vector<8x8xf32> -> vector<8x8xf32>
    "tpu.trace_stop"() : () -> ()
    %cst_9 = arith.constant 0.176776692 : f32
    %17 = vector.broadcast %cst_9 : f32 to vector<8x8xf32>
    %18 = arith.mulf %16, %17 : vector<8x8xf32>
    %cst_10 = arith.constant dense<0xFF800000> : vector<8xf32>
    %19 = vector.multi_reduction <maximumf>, %18, %cst_10 [1] : vector<8x8xf32> to vector<8xf32>
    %20 = vector.shape_cast %19 : vector<8xf32> to vector<8x1xf32>
    %21 = vector.broadcast %20 : vector<8x1xf32> to vector<8x8xf32>
    %22 = arith.subf %18, %21 : vector<8x8xf32>
    %23 = math.exp %22 : vector<8x8xf32>
    %cst_11 = arith.constant dense<0.000000e+00> : vector<8xf32>
    %24 = vector.multi_reduction <add>, %23, %cst_11 [1] : vector<8x8xf32> to vector<8xf32>
    %25 = vector.shape_cast %24 : vector<8xf32> to vector<8x1xf32>
    %26 = tpu.reciprocal %25 {approx = true} : vector<8x1xf32> -> vector<8x1xf32>
    %27 = vector.broadcast %26 : vector<8x1xf32> to vector<8x8xf32>
    %28 = arith.mulf %23, %27 : vector<8x8xf32>
    %29 = arith.truncf %28 : vector<8x8xf32> to vector<8x8xbf16>
    %cst_12 = arith.constant dense<0.000000e+00> : vector<8x32xf32>
    %30 = tpu.matmul %29, %15, %cst_12 {dimension_numbers = #tpu.dot_dimension_numbers<[1], [0], [0], [1], [0, 0, 1, 1], [], []>} : vector<8x8xbf16>, vector<8x32xbf16>, vector<8x32xf32> -> vector<8x32xf32>
    %c0_13 = arith.constant 0 : index
    %c0_14 = arith.constant 0 : index
    %31 = vector.load %arg17[%c0_13, %c0_14] : memref<8x128xf32, #tpu.memory_space<vmem>>, vector<8x32xf32>
    tpu.vector_store %arg17[%c0_13, %c0_14], %30 {strides = array<i32>} : memref<8x128xf32, #tpu.memory_space<vmem>>, vector<8x32xf32>,
    %32 = vector.extract_strided_slice %12 {offsets = [0, 32], sizes = [8, 32], strides = [1, 1]} : vector<8x384xbf16> to vector<8x32xbf16>
    %33 = vector.extract_strided_slice %12 {offsets = [0, 160], sizes = [8, 32], strides = [1, 1]} : vector<8x384xbf16> to vector<8x32xbf16>
    %34 = vector.extract_strided_slice %12 {offsets = [0, 288], sizes = [8, 32], strides = [1, 1]} : vector<8x384xbf16> to vector<8x32xbf16>
    "tpu.trace_start"() <{level = 10 : i32, message = "qd,kd->qk"}> : () -> ()
    %cst_15 = arith.constant dense<0.000000e+00> : vector<8x8xf32>
    %35 = tpu.matmul %32, %33, %cst_15 {dimension_numbers = #tpu.dot_dimension_numbers<[1], [1], [0], [0], [0, 0, 1, 0], [], []>} : vector<8x32xbf16>, vector<8x32xbf16>, vector<8x8xf32> -> vector<8x8xf32>
    "tpu.trace_stop"() : () -> ()
    %cst_16 = arith.constant 0.176776692 : f32
    %36 = vector.broadcast %cst_16 : f32 to vector<8x8xf32>
    %37 = arith.mulf %35, %36 : vector<8x8xf32>
    %cst_17 = arith.constant dense<0xFF800000> : vector<8xf32>
    %38 = vector.multi_reduction <maximumf>, %37, %cst_17 [1] : vector<8x8xf32> to vector<8xf32>
    %39 = vector.shape_cast %38 : vector<8xf32> to vector<8x1xf32>
    %40 = vector.broadcast %39 : vector<8x1xf32> to vector<8x8xf32>
    %41 = arith.subf %37, %40 : vector<8x8xf32>
    %42 = math.exp %41 : vector<8x8xf32>
    %cst_18 = arith.constant dense<0.000000e+00> : vector<8xf32>
    %43 = vector.multi_reduction <add>, %42, %cst_18 [1] : vector<8x8xf32> to vector<8xf32>
    %44 = vector.shape_cast %43 : vector<8xf32> to vector<8x1xf32>
    %45 = tpu.reciprocal %44 {approx = true} : vector<8x1xf32> -> vector<8x1xf32>
    %46 = vector.broadcast %45 : vector<8x1xf32> to vector<8x8xf32>
    %47 = arith.mulf %42, %46 : vector<8x8xf32>
    %48 = arith.truncf %47 : vector<8x8xf32> to vector<8x8xbf16>
    %cst_19 = arith.constant dense<0.000000e+00> : vector<8x32xf32>
    %49 = tpu.matmul %48, %34, %cst_19 {dimension_numbers = #tpu.dot_dimension_numbers<[1], [0], [0], [1], [0, 0, 1, 1], [], []>} : vector<8x8xbf16>, vector<8x32xbf16>, vector<8x32xf32> -> vector<8x32xf32>
    %c0_20 = arith.constant 0 : index
    %c32 = arith.constant 32 : index
    %50 = vector.load %arg17[%c0_20, %c32] : memref<8x128xf32, #tpu.memory_space<vmem>>, vector<8x32xf32>
    tpu.vector_store %arg17[%c0_20, %c32], %49 {strides = array<i32>} : memref<8x128xf32, #tpu.memory_space<vmem>>, vector<8x32xf32>,
    %51 = vector.extract_strided_slice %12 {offsets = [0, 64], sizes = [8, 32], strides = [1, 1]} : vector<8x384xbf16> to vector<8x32xbf16>
    %52 = vector.extract_strided_slice %12 {offsets = [0, 192], sizes = [8, 32], strides = [1, 1]} : vector<8x384xbf16> to vector<8x32xbf16>
    %53 = vector.extract_strided_slice %12 {offsets = [0, 320], sizes = [8, 32], strides = [1, 1]} : vector<8x384xbf16> to vector<8x32xbf16>
    "tpu.trace_start"() <{level = 10 : i32, message = "qd,kd->qk"}> : () -> ()
    %cst_21 = arith.constant dense<0.000000e+00> : vector<8x8xf32>
    %54 = tpu.matmul %51, %52, %cst_21 {dimension_numbers = #tpu.dot_dimension_numbers<[1], [1], [0], [0], [0, 0, 1, 0], [], []>} : vector<8x32xbf16>, vector<8x32xbf16>, vector<8x8xf32> -> vector<8x8xf32>
    "tpu.trace_stop"() : () -> ()
    %cst_22 = arith.constant 0.176776692 : f32
    %55 = vector.broadcast %cst_22 : f32 to vector<8x8xf32>
    %56 = arith.mulf %54, %55 : vector<8x8xf32>
    %cst_23 = arith.constant dense<0xFF800000> : vector<8xf32>
    %57 = vector.multi_reduction <maximumf>, %56, %cst_23 [1] : vector<8x8xf32> to vector<8xf32>
    %58 = vector.shape_cast %57 : vector<8xf32> to vector<8x1xf32>
    %59 = vector.broadcast %58 : vector<8x1xf32> to vector<8x8xf32>
    %60 = arith.subf %56, %59 : vector<8x8xf32>
    %61 = math.exp %60 : vector<8x8xf32>
    %cst_24 = arith.constant dense<0.000000e+00> : vector<8xf32>
    %62 = vector.multi_reduction <add>, %61, %cst_24 [1] : vector<8x8xf32> to vector<8xf32>
    %63 = vector.shape_cast %62 : vector<8xf32> to vector<8x1xf32>
    %64 = tpu.reciprocal %63 {approx = true} : vector<8x1xf32> -> vector<8x1xf32>
    %65 = vector.broadcast %64 : vector<8x1xf32> to vector<8x8xf32>
    %66 = arith.mulf %61, %65 : vector<8x8xf32>
    %67 = arith.truncf %66 : vector<8x8xf32> to vector<8x8xbf16>
    %cst_25 = arith.constant dense<0.000000e+00> : vector<8x32xf32>
    %68 = tpu.matmul %67, %53, %cst_25 {dimension_numbers = #tpu.dot_dimension_numbers<[1], [0], [0], [1], [0, 0, 1, 1], [], []>} : vector<8x8xbf16>, vector<8x32xbf16>, vector<8x32xf32> -> vector<8x32xf32>
    %c0_26 = arith.constant 0 : index
    %c64 = arith.constant 64 : index
    %69 = vector.load %arg17[%c0_26, %c64] : memref<8x128xf32, #tpu.memory_space<vmem>>, vector<8x32xf32>
    tpu.vector_store %arg17[%c0_26, %c64], %68 {strides = array<i32>} : memref<8x128xf32, #tpu.memory_space<vmem>>, vector<8x32xf32>,
    %70 = vector.extract_strided_slice %12 {offsets = [0, 96], sizes = [8, 32], strides = [1, 1]} : vector<8x384xbf16> to vector<8x32xbf16>
    %71 = vector.extract_strided_slice %12 {offsets = [0, 224], sizes = [8, 32], strides = [1, 1]} : vector<8x384xbf16> to vector<8x32xbf16>
    %72 = vector.extract_strided_slice %12 {offsets = [0, 352], sizes = [8, 32], strides = [1, 1]} : vector<8x384xbf16> to vector<8x32xbf16>
    "tpu.trace_start"() <{level = 10 : i32, message = "qd,kd->qk"}> : () -> ()
    %cst_27 = arith.constant dense<0.000000e+00> : vector<8x8xf32>
    %73 = tpu.matmul %70, %71, %cst_27 {dimension_numbers = #tpu.dot_dimension_numbers<[1], [1], [0], [0], [0, 0, 1, 0], [], []>} : vector<8x32xbf16>, vector<8x32xbf16>, vector<8x8xf32> -> vector<8x8xf32>
    "tpu.trace_stop"() : () -> ()
    %cst_28 = arith.constant 0.176776692 : f32
    %74 = vector.broadcast %cst_28 : f32 to vector<8x8xf32>
    %75 = arith.mulf %73, %74 : vector<8x8xf32>
    %cst_29 = arith.constant dense<0xFF800000> : vector<8xf32>
    %76 = vector.multi_reduction <maximumf>, %75, %cst_29 [1] : vector<8x8xf32> to vector<8xf32>
    %77 = vector.shape_cast %76 : vector<8xf32> to vector<8x1xf32>
    %78 = vector.broadcast %77 : vector<8x1xf32> to vector<8x8xf32>
    %79 = arith.subf %75, %78 : vector<8x8xf32>
    %80 = math.exp %79 : vector<8x8xf32>
    %cst_30 = arith.constant dense<0.000000e+00> : vector<8xf32>
    %81 = vector.multi_reduction <add>, %80, %cst_30 [1] : vector<8x8xf32> to vector<8xf32>
    %82 = vector.shape_cast %81 : vector<8xf32> to vector<8x1xf32>
    %83 = tpu.reciprocal %82 {approx = true} : vector<8x1xf32> -> vector<8x1xf32>
    %84 = vector.broadcast %83 : vector<8x1xf32> to vector<8x8xf32>
    %85 = arith.mulf %80, %84 : vector<8x8xf32>
    %86 = arith.truncf %85 : vector<8x8xf32> to vector<8x8xbf16>
    %cst_31 = arith.constant dense<0.000000e+00> : vector<8x32xf32>
    %87 = tpu.matmul %86, %72, %cst_31 {dimension_numbers = #tpu.dot_dimension_numbers<[1], [0], [0], [1], [0, 0, 1, 1], [], []>} : vector<8x8xbf16>, vector<8x32xbf16>, vector<8x32xf32> -> vector<8x32xf32>
    %c0_32 = arith.constant 0 : index
    %c96 = arith.constant 96 : index
    %88 = vector.load %arg17[%c0_32, %c96] : memref<8x128xf32, #tpu.memory_space<vmem>>, vector<8x32xf32>
    tpu.vector_store %arg17[%c0_32, %c96], %87 {strides = array<i32>} : memref<8x128xf32, #tpu.memory_space<vmem>>, vector<8x32xf32>,
    %c0_33 = arith.constant 0 : index
    %c0_34 = arith.constant 0 : index
    %89 = vector.load %arg17[%c0_33, %c0_34] : memref<8x128xf32, #tpu.memory_space<vmem>>, vector<8x128xf32>
    %90 = arith.truncf %89 : vector<8x128xf32> to vector<8x128xbf16>
    %c0_35 = arith.constant 0 : index
    %c0_36 = arith.constant 0 : index
    %c0_37 = arith.constant 0 : index
    %91 = vector.load %arg5[%c0_35, %c0_36, %c0_37] : memref<1x128x128xbf16, #tpu.memory_space<vmem>>, vector<1x128x128xbf16>
    %92 = vector.shape_cast %91 : vector<1x128x128xbf16> to vector<128x128xbf16>
    %cst_38 = arith.constant dense<0.000000e+00> : vector<8x128xf32>
    %93 = tpu.matmul %90, %92, %cst_38 {dimension_numbers = #tpu.dot_dimension_numbers<[1], [0], [0], [1], [0, 0, 1, 1], [], []>} : vector<8x128xbf16>, vector<128x128xbf16>, vector<8x128xf32> -> vector<8x128xf32>
    %c0_39 = arith.constant 0 : index
    %c0_40 = arith.constant 0 : index
    %c0_41 = arith.constant 0 : index
    %94 = vector.load %arg6[%c0_39, %c0_40, %c0_41] : memref<1x1x128xf32, #tpu.memory_space<vmem>>, vector<1x1x128xf32>
    %95 = vector.shape_cast %94 : vector<1x1x128xf32> to vector<1x128xf32>
    %96 = vector.broadcast %95 : vector<1x128xf32> to vector<8x128xf32>
    %97 = arith.addf %93, %96 : vector<8x128xf32>
    %98 = arith.addf %3, %97 : vector<8x128xf32>
    %cst_42 = arith.constant dense<0.000000e+00> : vector<8xf32>
    %99 = vector.multi_reduction <add>, %98, %cst_42 [1] : vector<8x128xf32> to vector<8xf32>
    %100 = vector.shape_cast %99 : vector<8xf32> to vector<8x1xf32>
    %cst_43 = arith.constant 1.280000e+02 : f32
    %101 = vector.broadcast %cst_43 : f32 to vector<8x1xf32>
    %102 = arith.divf %100, %101 : vector<8x1xf32>
    %103 = vector.broadcast %102 : vector<8x1xf32> to vector<8x128xf32>
    %104 = arith.subf %98, %103 : vector<8x128xf32>
    %105 = arith.mulf %104, %104 : vector<8x128xf32>
    %cst_44 = arith.constant dense<0.000000e+00> : vector<8xf32>
    %106 = vector.multi_reduction <add>, %105, %cst_44 [1] : vector<8x128xf32> to vector<8xf32>
    %107 = vector.shape_cast %106 : vector<8xf32> to vector<8x1xf32>
    %cst_45 = arith.constant 1.280000e+02 : f32
    %108 = vector.broadcast %cst_45 : f32 to vector<8x1xf32>
    %109 = arith.divf %107, %108 : vector<8x1xf32>
    %cst_46 = arith.constant 9.99999974E-6 : f32
    %110 = vector.broadcast %cst_46 : f32 to vector<8x1xf32>
    %111 = arith.addf %109, %110 : vector<8x1xf32>
    %112 = math.rsqrt %111 : vector<8x1xf32>
    %113 = vector.broadcast %112 : vector<8x1xf32> to vector<8x128xf32>
    %114 = arith.mulf %104, %113 : vector<8x128xf32>
    %c0_47 = arith.constant 0 : index
    %c0_48 = arith.constant 0 : index
    %c0_49 = arith.constant 0 : index
    %115 = vector.load %arg7[%c0_47, %c0_48, %c0_49] : memref<1x1x128xf32, #tpu.memory_space<vmem>>, vector<1x1x128xf32>
    %116 = vector.shape_cast %115 : vector<1x1x128xf32> to vector<1x128xf32>
    %117 = vector.broadcast %116 : vector<1x128xf32> to vector<8x128xf32>
    %118 = arith.mulf %114, %117 : vector<8x128xf32>
    %c0_50 = arith.constant 0 : index
    %c0_51 = arith.constant 0 : index
    %c0_52 = arith.constant 0 : index
    %119 = vector.load %arg8[%c0_50, %c0_51, %c0_52] : memref<1x1x128xf32, #tpu.memory_space<vmem>>, vector<1x1x128xf32>
    %120 = vector.shape_cast %119 : vector<1x1x128xf32> to vector<1x128xf32>
    %121 = vector.broadcast %120 : vector<1x128xf32> to vector<8x128xf32>
    %122 = arith.addf %118, %121 : vector<8x128xf32>
    %123 = arith.truncf %122 : vector<8x128xf32> to vector<8x128xbf16>
    %c0_53 = arith.constant 0 : index
    %c0_54 = arith.constant 0 : index
    %c0_55 = arith.constant 0 : index
    %124 = vector.load %arg9[%c0_53, %c0_54, %c0_55] : memref<1x128x256xbf16, #tpu.memory_space<vmem>>, vector<1x128x256xbf16>
    %125 = vector.shape_cast %124 : vector<1x128x256xbf16> to vector<128x256xbf16>
    %cst_56 = arith.constant dense<0.000000e+00> : vector<8x256xf32>
    %126 = tpu.matmul %123, %125, %cst_56 {dimension_numbers = #tpu.dot_dimension_numbers<[1], [0], [0], [1], [0, 0, 1, 1], [], []>} : vector<8x128xbf16>, vector<128x256xbf16>, vector<8x256xf32> -> vector<8x256xf32>
    %c0_57 = arith.constant 0 : index
    %c0_58 = arith.constant 0 : index
    %c0_59 = arith.constant 0 : index
    %127 = vector.load %arg10[%c0_57, %c0_58, %c0_59] : memref<1x1x256xf32, #tpu.memory_space<vmem>>, vector<1x1x256xf32>
    %128 = vector.shape_cast %127 : vector<1x1x256xf32> to vector<1x256xf32>
    %129 = vector.broadcast %128 : vector<1x256xf32> to vector<8x256xf32>
    %130 = arith.addf %126, %129 : vector<8x256xf32>
    %cst_60 = arith.constant 0.000000e+00 : f32
    %131 = vector.broadcast %cst_60 : f32 to vector<8x256xf32>
    %132 = arith.maximumf %130, %131 : vector<8x256xf32>
    %133 = arith.truncf %132 : vector<8x256xf32> to vector<8x256xbf16>
    %c0_61 = arith.constant 0 : index
    %c0_62 = arith.constant 0 : index
    %c0_63 = arith.constant 0 : index
    %134 = vector.load %arg11[%c0_61, %c0_62, %c0_63] : memref<1x256x128xbf16, #tpu.memory_space<vmem>>, vector<1x256x128xbf16>
    %135 = vector.shape_cast %134 : vector<1x256x128xbf16> to vector<256x128xbf16>
    %cst_64 = arith.constant dense<0.000000e+00> : vector<8x128xf32>
    %136 = tpu.matmul %133, %135, %cst_64 {dimension_numbers = #tpu.dot_dimension_numbers<[1], [0], [0], [1], [0, 0, 1, 1], [], []>} : vector<8x256xbf16>, vector<256x128xbf16>, vector<8x128xf32> -> vector<8x128xf32>
    %c0_65 = arith.constant 0 : index
    %c0_66 = arith.constant 0 : index
    %c0_67 = arith.constant 0 : index
    %137 = vector.load %arg12[%c0_65, %c0_66, %c0_67] : memref<1x1x128xf32, #tpu.memory_space<vmem>>, vector<1x1x128xf32>
    %138 = vector.shape_cast %137 : vector<1x1x128xf32> to vector<1x128xf32>
    %139 = vector.broadcast %138 : vector<1x128xf32> to vector<8x128xf32>
    %140 = arith.addf %136, %139 : vector<8x128xf32>
    %141 = arith.addf %122, %140 : vector<8x128xf32>
    %cst_68 = arith.constant dense<0.000000e+00> : vector<8xf32>
    %142 = vector.multi_reduction <add>, %141, %cst_68 [1] : vector<8x128xf32> to vector<8xf32>
    %143 = vector.shape_cast %142 : vector<8xf32> to vector<8x1xf32>
    %cst_69 = arith.constant 1.280000e+02 : f32
    %144 = vector.broadcast %cst_69 : f32 to vector<8x1xf32>
    %145 = arith.divf %143, %144 : vector<8x1xf32>
    %146 = vector.broadcast %145 : vector<8x1xf32> to vector<8x128xf32>
    %147 = arith.subf %141, %146 : vector<8x128xf32>
    %148 = arith.mulf %147, %147 : vector<8x128xf32>
    %cst_70 = arith.constant dense<0.000000e+00> : vector<8xf32>
    %149 = vector.multi_reduction <add>, %148, %cst_70 [1] : vector<8x128xf32> to vector<8xf32>
    %150 = vector.shape_cast %149 : vector<8xf32> to vector<8x1xf32>
    %cst_71 = arith.constant 1.280000e+02 : f32
    %151 = vector.broadcast %cst_71 : f32 to vector<8x1xf32>
    %152 = arith.divf %150, %151 : vector<8x1xf32>
    %cst_72 = arith.constant 9.99999974E-6 : f32
    %153 = vector.broadcast %cst_72 : f32 to vector<8x1xf32>
    %154 = arith.addf %152, %153 : vector<8x1xf32>
    %155 = math.rsqrt %154 : vector<8x1xf32>
    %156 = vector.broadcast %155 : vector<8x1xf32> to vector<8x128xf32>
    %157 = arith.mulf %147, %156 : vector<8x128xf32>
    %c0_73 = arith.constant 0 : index
    %c0_74 = arith.constant 0 : index
    %c0_75 = arith.constant 0 : index
    %158 = vector.load %arg13[%c0_73, %c0_74, %c0_75] : memref<1x1x128xf32, #tpu.memory_space<vmem>>, vector<1x1x128xf32>
    %159 = vector.shape_cast %158 : vector<1x1x128xf32> to vector<1x128xf32>
    %160 = vector.broadcast %159 : vector<1x128xf32> to vector<8x128xf32>
    %161 = arith.mulf %157, %160 : vector<8x128xf32>
    %c0_76 = arith.constant 0 : index
    %c0_77 = arith.constant 0 : index
    %c0_78 = arith.constant 0 : index
    %162 = vector.load %arg14[%c0_76, %c0_77, %c0_78] : memref<1x1x128xf32, #tpu.memory_space<vmem>>, vector<1x1x128xf32>
    %163 = vector.shape_cast %162 : vector<1x1x128xf32> to vector<1x128xf32>
    %164 = vector.broadcast %163 : vector<1x128xf32> to vector<8x128xf32>
    %165 = arith.addf %161, %164 : vector<8x128xf32>
    %c0_79 = arith.constant 0 : index
    %c0_80 = arith.constant 0 : index
    %166 = vector.load %arg16[%c0_79, %c0_80] : memref<8x128xf32, #tpu.memory_space<vmem>>, vector<8x128xf32>
    tpu.vector_store %arg16[%c0_79, %c0_80], %165 {strides = array<i32>} : memref<8x128xf32, #tpu.memory_space<vmem>>, vector<8x128xf32>,
    %c1_i32 = arith.constant 1 : i32
    %167 = arith.cmpi eq, %arg1, %c1_i32 : i32
    %168 = arith.extui %167 : i1 to i32
    %c0_i32_81 = arith.constant 0 : i32
    %169 = arith.cmpi ne, %168, %c0_i32_81 : i32
    scf.if %169 {
      %c0_82 = arith.constant 0 : index
      %c0_83 = arith.constant 0 : index
      %c0_84 = arith.constant 0 : index
      %170 = vector.load %arg15[%c0_82, %c0_83, %c0_84] : memref<1x8x128xf32, #tpu.memory_space<vmem>>, vector<1x8x128xf32>
      %171 = vector.shape_cast %170 : vector<1x8x128xf32> to vector<8x128xf32>
      %172 = vector.shape_cast %165 : vector<8x128xf32> to vector<1x8x128xf32>
      tpu.vector_store %arg15[%c0_82, %c0_83, %c0_84], %172 {strides = array<i32>} : memref<1x8x128xf32, #tpu.memory_space<vmem>>, vector<1x8x128xf32>,
    } else {
    }
    return
  }
  func.func @transform_0(%arg0: i32, %arg1: i32) -> (i32, i32, i32) {
    %c0_i32 = arith.constant 0 : i32
    %c0_i32_0 = arith.constant 0 : i32
    %c0_i32_1 = arith.constant 0 : i32
    return %arg0, %c0_i32, %c0_i32_0 : i32, i32, i32
  }
  func.func @transform_1(%arg0: i32, %arg1: i32) -> (i32, i32, i32) {
    %c0_i32 = arith.constant 0 : i32
    %c0_i32_0 = arith.constant 0 : i32
    %c0_i32_1 = arith.constant 0 : i32
    return %arg1, %c0_i32, %c0_i32_0 : i32, i32, i32
  }
  func.func @transform_2(%arg0: i32, %arg1: i32) -> (i32, i32, i32) {
    %c0_i32 = arith.constant 0 : i32
    %c0_i32_0 = arith.constant 0 : i32
    %c0_i32_1 = arith.constant 0 : i32
    return %arg1, %c0_i32, %c0_i32_0 : i32, i32, i32
  }
  func.func @transform_3(%arg0: i32, %arg1: i32) -> (i32, i32, i32) {
    %c0_i32 = arith.constant 0 : i32
    %c0_i32_0 = arith.constant 0 : i32
    %c0_i32_1 = arith.constant 0 : i32
    return %arg1, %c0_i32, %c0_i32_0 : i32, i32, i32
  }
  func.func @transform_4(%arg0: i32, %arg1: i32) -> (i32, i32, i32) {
    %c0_i32 = arith.constant 0 : i32
    %c0_i32_0 = arith.constant 0 : i32
    %c0_i32_1 = arith.constant 0 : i32
    return %arg1, %c0_i32, %c0_i32_0 : i32, i32, i32
  }
  func.func @transform_5(%arg0: i32, %arg1: i32) -> (i32, i32, i32) {
    %c0_i32 = arith.constant 0 : i32
    %c0_i32_0 = arith.constant 0 : i32
    %c0_i32_1 = arith.constant 0 : i32
    return %arg1, %c0_i32, %c0_i32_0 : i32, i32, i32
  }
  func.func @transform_6(%arg0: i32, %arg1: i32) -> (i32, i32, i32) {
    %c0_i32 = arith.constant 0 : i32
    %c0_i32_0 = arith.constant 0 : i32
    %c0_i32_1 = arith.constant 0 : i32
    return %arg1, %c0_i32, %c0_i32_0 : i32, i32, i32
  }
  func.func @transform_7(%arg0: i32, %arg1: i32) -> (i32, i32, i32) {
    %c0_i32 = arith.constant 0 : i32
    %c0_i32_0 = arith.constant 0 : i32
    %c0_i32_1 = arith.constant 0 : i32
    return %arg1, %c0_i32, %c0_i32_0 : i32, i32, i32
  }
  func.func @transform_8(%arg0: i32, %arg1: i32) -> (i32, i32, i32) {
    %c0_i32 = arith.constant 0 : i32
    %c0_i32_0 = arith.constant 0 : i32
    %c0_i32_1 = arith.constant 0 : i32
    return %arg1, %c0_i32, %c0_i32_0 : i32, i32, i32
  }
  func.func @transform_9(%arg0: i32, %arg1: i32) -> (i32, i32, i32) {
    %c0_i32 = arith.constant 0 : i32
    %c0_i32_0 = arith.constant 0 : i32
    %c0_i32_1 = arith.constant 0 : i32
    return %arg1, %c0_i32, %c0_i32_0 : i32, i32, i32
  }
  func.func @transform_10(%arg0: i32, %arg1: i32) -> (i32, i32, i32) {
    %c0_i32 = arith.constant 0 : i32
    %c0_i32_0 = arith.constant 0 : i32
    %c0_i32_1 = arith.constant 0 : i32
    return %arg1, %c0_i32, %c0_i32_0 : i32, i32, i32
  }
  func.func @transform_11(%arg0: i32, %arg1: i32) -> (i32, i32, i32) {
    %c0_i32 = arith.constant 0 : i32
    %c0_i32_0 = arith.constant 0 : i32
    %c0_i32_1 = arith.constant 0 : i32
    return %arg1, %c0_i32, %c0_i32_0 : i32, i32, i32
  }
  func.func @transform_12(%arg0: i32, %arg1: i32) -> (i32, i32, i32) {
    %c0_i32 = arith.constant 0 : i32
    %c0_i32_0 = arith.constant 0 : i32
    %c0_i32_1 = arith.constant 0 : i32
    return %arg1, %c0_i32, %c0_i32_0 : i32, i32, i32
  }
  func.func @transform_13(%arg0: i32, %arg1: i32) -> (i32, i32, i32) {
    %c0_i32 = arith.constant 0 : i32
    %c0_i32_0 = arith.constant 0 : i32
    %c0_i32_1 = arith.constant 0 : i32
    return %arg0, %c0_i32, %c0_i32_0 : i32, i32, i32
  }
}

</mosaic_0001>

<llo_original>
// kernel: transformer_classifier_forward.3
$region0: #{transformer_classifier_forward.3}
  #allocation0 [shape = 'u32[]', space=smem, size = 0x4, offset = 0x4, fixed_abs, tag = 'smem constant byte address 0x4 - core index']
  #allocation1 [shape = 'u32[72,128]{1,0:T(1,128)}', space=vmem, size = 0x9000, scoped, tag = 'internal scratch']
  %s0 = inlined_call_operand.hbm [shape: f32[16,256], index: 0, kind: input, shape index: {}]
  %s1 = inlined_call_operand.hbm [shape: bf16[256,128], index: 1, kind: input, shape index: {}]
  %s2 = inlined_call_operand.vmem [shape: f32[1,128], index: 2, kind: input, shape index: {}]
  %s3 = inlined_call_operand.vmem [shape: f32[16,128], index: 3, kind: output, shape index: {}]
  %s4 = sld [smem:[#allocation0]]
  $region30: #{transformer_classifier_forward.3} parent=0
    _
  %s6 = ssub.s32 1, %s4
  %s7 = scalar_select 0, %s6, %s4
  $region1: #{transformer_classifier_forward.3} parent=0
    #allocation2 [shape = 'u8[16384]{0}', space=vmem, size = 0x4000, scoped, tag = 'input window, operand 0, single buffered']
    #allocation3 [shape = 's32[1]{0}', space=sflag, size = 0x4, scoped, tag = 'scoped memory for transformer_classifier_forward.3']
    #allocation4 [shape = 'u8[65536]{0}', space=vmem, size = 0x10000, scoped, tag = 'input window, operand 1, single buffered']
    #allocation5 [shape = 's32[1]{0}', space=sflag, size = 0x4, scoped, tag = 'scoped memory for transformer_classifier_forward.3']
    %8 = vsyncpa [#allocation3], 0
    %9 = vsyncpa [#allocation5], 0
    // Predicated region
    $region2: #{transformer_classifier_forward.3} parent=1 // pred_check
      _
    $region3: #{transformer_classifier_forward.3} parent=1 // pred_check_branch
      %11 = sbr.rel (0) target = $region5
    $region4: #{transformer_classifier_forward.3} parent=1 // pred_region
      %13 = vsyncadd [#allocation3], 0
      %s14 = sshll.u32 %s0, 4
      %s15 = int_to_ptr.hbm [resolvable:$true] %s14
      %s16 = sshll.u32 [#allocation2], 4
      %s17 = int_to_ptr.vmem [resolvable:$true] %s16
      %22 = dma.hbm_to_vmem [thread:$0]  %s15, 512, %s17, [#allocation3], 256, 256, 16
    $region5: #{transformer_classifier_forward.3} parent=1 // pred_fallthru
      _
    // Predicated region
    $region6: #{transformer_classifier_forward.3} parent=1 // pred_check
      _
    $region7: #{transformer_classifier_forward.3} parent=1 // pred_check_branch
      %24 = sbr.rel (0) target = $region9
    $region8: #{transformer_classifier_forward.3} parent=1 // pred_region
      %26 = vsyncadd [#allocation5], 0
      %s27 = sshll.u32 %s1, 4
      %s28 = int_to_ptr.hbm [resolvable:$true] %s27
      %s29 = sshll.u32 [#allocation4], 4
      %s30 = int_to_ptr.vmem [resolvable:$true] %s29
      %35 = dma.hbm_to_vmem [thread:$0]  %s28, 2048, %s30, [#allocation5], 64, 64, 4
    $region9: #{transformer_classifier_forward.3} parent=1 // pred_fallthru
      _
    // Predicated region
    $region10: #{transformer_classifier_forward.3} parent=1 // pred_check
      _
    $region11: #{transformer_classifier_forward.3} parent=1 // pred_check_branch
      %37 = sbr.rel (0) target = $region13
    $region12: #{transformer_classifier_forward.3} parent=1 // pred_region
      _
    $region13: #{transformer_classifier_forward.3} parent=1 // pred_fallthru
      _
    // Predicated region
    $region14: #{transformer_classifier_forward.3} parent=1 // pred_check
      _
    $region15: #{transformer_classifier_forward.3} parent=1 // pred_check_branch
      %39 = sbr.rel (0) target = $region17
    $region16: #{transformer_classifier_forward.3} parent=1 // pred_region
      %41 = dma.done [#allocation3], 512
    $region17: #{transformer_classifier_forward.3} parent=1 // pred_fallthru
      _
    // Predicated region
    $region18: #{transformer_classifier_forward.3} parent=1 // pred_check
      _
    $region19: #{transformer_classifier_forward.3} parent=1 // pred_check_branch
      %43 = sbr.rel (0) target = $region21
    $region20: #{transformer_classifier_forward.3} parent=1 // pred_region
      %45 = dma.done [#allocation5], 2048
    $region21: #{transformer_classifier_forward.3} parent=1 // pred_fallthru
      _
    %v46 = vld [vmem:[#allocation2] sm:$0xff]
    %v47 = vld [vmem:[#allocation2 + $0x8] sm:$0xff]
    %v48 = vld [vmem:[#allocation2 + $0x10] sm:$0xff]
    %v49 = vld [vmem:[#allocation2 + $0x18] sm:$0xff]
    %v50 = vpack.c.bf16 %v48, %v46
    %v51 = vpack.c.bf16 %v49, %v47
    %v52 = vld [vmem:[#allocation4] sm:$0xf]
    %v53 = vld [vmem:[#allocation4 + $0x4] sm:$0xf]
    %v54 = vld [vmem:[#allocation4 + $0x8] sm:$0xf]
    %v55 = vld [vmem:[#allocation4 + $0xc] sm:$0xf]
    %v56 = vld [vmem:[#allocation4 + $0x10] sm:$0xf]
    %v57 = vld [vmem:[#allocation4 + $0x14] sm:$0xf]
    %v58 = vld [vmem:[#allocation4 + $0x18] sm:$0xf]
    %v59 = vld [vmem:[#allocation4 + $0x1c] sm:$0xf]
    %v60 = vld [vmem:[#allocation4 + $0x20] sm:$0xf]
    %v61 = vld [vmem:[#allocation4 + $0x24] sm:$0xf]
    %v62 = vld [vmem:[#allocation4 + $0x28] sm:$0xf]
    %v63 = vld [vmem:[#allocation4 + $0x2c] sm:$0xf]
    %v64 = vld [vmem:[#allocation4 + $0x30] sm:$0xf]
    %v65 = vld [vmem:[#allocation4 + $0x34] sm:$0xf]
    %v66 = vld [vmem:[#allocation4 + $0x38] sm:$0xf]
    %v67 = vld [vmem:[#allocation4 + $0x3c] sm:$0xf]
    %v68 = vld [vmem:[#allocation4 + $0x40] sm:$0xf]
    %v69 = vld [vmem:[#allocation4 + $0x44] sm:$0xf]
    %v70 = vld [vmem:[#allocation4 + $0x48] sm:$0xf]
    %v71 = vld [vmem:[#allocation4 + $0x4c] sm:$0xf]
    %v72 = vld [vmem:[#allocation4 + $0x50] sm:$0xf]
    %v73 = vld [vmem:[#allocation4 + $0x54] sm:$0xf]
    %v74 = vld [vmem:[#allocation4 + $0x58] sm:$0xf]
    %v75 = vld [vmem:[#allocation4 + $0x5c] sm:$0xf]
    %v76 = vld [vmem:[#allocation4 + $0x60] sm:$0xf]
    %v77 = vld [vmem:[#allocation4 + $0x64] sm:$0xf]
    %v78 = vld [vmem:[#allocation4 + $0x68] sm:$0xf]
    %v79 = vld [vmem:[#allocation4 + $0x6c] sm:$0xf]
    %v80 = vld [vmem:[#allocation4 + $0x70] sm:$0xf]
    %v81 = vld [vmem:[#allocation4 + $0x74] sm:$0xf]
    %v82 = vld [vmem:[#allocation4 + $0x78] sm:$0xf]
    %v83 = vld [vmem:[#allocation4 + $0x7c] sm:$0xf]
    %v84 = vld [vmem:[%s2] sm:$0x1]
    %v86 = vperm.slane %v84, 0
    %v120 = vunpack.c.l.b16 %v52
    %v121 = vunpack.c.l.b16 %v53
    %v122 = vunpack.c.l.b16 %v54
    %v123 = vunpack.c.l.b16 %v55
    %v124 = vunpack.c.l.b16 %v56
    %v125 = vunpack.c.l.b16 %v57
    %v126 = vunpack.c.l.b16 %v58
    %v127 = vunpack.c.l.b16 %v59
    %v128 = vunpack.c.l.b16 %v60
    %v129 = vunpack.c.l.b16 %v61
    %v130 = vunpack.c.l.b16 %v62
    %v131 = vunpack.c.l.b16 %v63
    %v132 = vunpack.c.l.b16 %v64
    %v133 = vunpack.c.l.b16 %v65
    %v134 = vunpack.c.l.b16 %v66
    %v135 = vunpack.c.l.b16 %v67
    %v136 = vunpack.c.l.b16 %v68
    %v137 = vunpack.c.l.b16 %v69
    %v138 = vunpack.c.l.b16 %v70
    %v139 = vunpack.c.l.b16 %v71
    %v140 = vunpack.c.l.b16 %v72
    %v141 = vunpack.c.l.b16 %v73
    %v142 = vunpack.c.l.b16 %v74
    %v143 = vunpack.c.l.b16 %v75
    %v144 = vunpack.c.l.b16 %v76
    %v145 = vunpack.c.l.b16 %v77
    %v146 = vunpack.c.l.b16 %v78
    %v147 = vunpack.c.l.b16 %v79
    %v148 = vunpack.c.l.b16 %v80
    %v149 = vunpack.c.l.b16 %v81
    %v150 = vunpack.c.l.b16 %v82
    %v151 = vunpack.c.l.b16 %v83
    %v152 = vpack.c.b16 %v121, %v120
    %v153 = vpack.c.b16 %v123, %v122
    %v154 = vpack.c.b16 %v125, %v124
    %v155 = vpack.c.b16 %v127, %v126
    %v156 = vpack.c.b16 %v129, %v128
    %v157 = vpack.c.b16 %v131, %v130
    %v158 = vpack.c.b16 %v133, %v132
    %v159 = vpack.c.b16 %v135, %v134
    %v160 = vpack.c.b16 %v137, %v136
    %v161 = vpack.c.b16 %v139, %v138
    %v162 = vpack.c.b16 %v141, %v140
    %v163 = vpack.c.b16 %v143, %v142
    %v164 = vpack.c.b16 %v145, %v144
    %v165 = vpack.c.b16 %v147, %v146
    %v166 = vpack.c.b16 %v149, %v148
    %v167 = vpack.c.b16 %v151, %v150
    %184 = vmatpush.bf16.msra.mxu0 %v159
    %185 = vmatpush.bf16.msra.mxu0 %v158
    %186 = vmatpush.bf16.msra.mxu0 %v157
    %187 = vmatpush.bf16.msra.mxu0 %v156
    %188 = vmatpush.bf16.msra.mxu0 %v155
    %189 = vmatpush.bf16.msra.mxu0 %v154
    %190 = vmatpush.bf16.msra.mxu0 %v153
    %191 = vmatpush.bf16.msra.mxu0 %v152
    %192 = vmatmul.bf16.gmra.mxu0 %v50
    %v193 = vpop.f32.mrf.mxu0
    %v194 = vadd.f32 %v86, %v193
    %v195 = vpop.f32.mrf.mxu0
    %v196 = vadd.f32 %v86, %v195
    %197 = vdwg.mxu0
    %198 = vmatpush.bf16.msra.mxu0 %v167
    %199 = vmatpush.bf16.msra.mxu0 %v166
    %200 = vmatpush.bf16.msra.mxu0 %v165
    %201 = vmatpush.bf16.msra.mxu0 %v164
    %202 = vmatpush.bf16.msra.mxu0 %v163
    %203 = vmatpush.bf16.msra.mxu0 %v162
    %204 = vmatpush.bf16.msra.mxu0 %v161
    %205 = vmatpush.bf16.msra.mxu0 %v160
    %206 = vmatmul.bf16.gmra.mxu0 %v51
    %v207 = vpop.f32.mrf.mxu0
    %v208 = vadd.f32 %v194, %v207
    %v209 = vpop.f32.mrf.mxu0
    %v210 = vadd.f32 %v196, %v209
    %211 = vdwg.mxu0
    %212 = vst [vmem:[%s3] sm:$0xff] %v208
    %213 = vst [vmem:[%s3 + $0x8] sm:$0xff] %v210
    // Predicated region
    $region22: #{transformer_classifier_forward.3} parent=1 // pred_check
      _
    $region23: #{transformer_classifier_forward.3} parent=1 // pred_check_branch
      %215 = sbr.rel (0) target = $region25
    $region24: #{transformer_classifier_forward.3} parent=1 // pred_region
      _
    $region25: #{transformer_classifier_forward.3} parent=1 // pred_fallthru
      _
    // Predicated region
    $region26: #{transformer_classifier_forward.3} parent=1 // pred_check
      _
    $region27: #{transformer_classifier_forward.3} parent=1 // pred_check_branch
      %217 = sbr.rel (0) target = $region29
    $region28: #{transformer_classifier_forward.3} parent=1 // pred_region
      _
    $region29: #{transformer_classifier_forward.3} parent=1 // pred_fallthru
      _
    %218 = vsyncpa [#allocation3], 1
    %219 = vsyncpa [#allocation5], 1

// kernel: transformer_classifier_forward.5
$region0: #{transformer_classifier_forward.5}
  #allocation0 [shape = 'u32[]', space=smem, size = 0x4, offset = 0x4, fixed_abs, tag = 'smem constant byte address 0x4 - core index']
  #allocation1 [shape = 'u32[72,128]{1,0:T(1,128)}', space=vmem, size = 0x9000, scoped, tag = 'internal scratch']
  #allocation2 [shape = 'f32[1,1]{1,0:T(1,128)S(1)}', space=vmem, size = 0x200, scoped, tag = 'scoped memory for transformer_classifier_forward.5']
  %s0 = inlined_call_operand.vmem [shape: f32[2,8,128], index: 0, kind: input, shape index: {}]
  %s1 = inlined_call_operand.hbm [shape: bf16[128,512], index: 1, kind: input, shape index: {}]
  %s2 = inlined_call_operand.vmem [shape: f32[1,512], index: 2, kind: input, shape index: {}]
  %s3 = inlined_call_operand.vmem [shape: f32[1,512], index: 3, kind: input, shape index: {}]
  %s4 = inlined_call_operand.hbm [shape: f32[1,512], index: 4, kind: input, shape index: {}]
  %s5 = inlined_call_operand.hbm [shape: f32[1,512], index: 5, kind: input, shape index: {}]
  %s6 = inlined_call_operand.hbm [shape: f32[1,512], index: 6, kind: input, shape index: {}]
  %s7 = inlined_call_operand.hbm [shape: bf16[1,512], index: 7, kind: input, shape index: {}]
  %s8 = inlined_call_operand.<no memory space> [shape: f32[1,1], index: 8, kind: input, shape index: {}]
  %s9 = inlined_call_operand.vmem [shape: f32[2,1], index: 9, kind: output, shape index: {}]
  %s10 = sld [smem:[#allocation0]]
  $region66: #{transformer_classifier_forward.5} parent=0
    _
  %s12 = ssub.s32 1, %s10
  %s13 = scalar_select 0, %s12, %s10
  %v14 = vstv %s8
  %15 = vst [vmem:[#allocation2] sm:$0x1] %v14
  $region1: #{transformer_classifier_forward.5} parent=0
    #allocation3 [shape = 'u8[131072]{0}', space=vmem, size = 0x20000, scoped, tag = 'input window, operand 1, single buffered']
    #allocation4 [shape = 's32[1]{0}', space=sflag, size = 0x4, scoped, tag = 'scoped memory for transformer_classifier_forward.5']
    #allocation5 [shape = 'u8[2048]{0}', space=vmem, size = 0x800, scoped, tag = 'input window, operand 4, single buffered']
    #allocation6 [shape = 's32[1]{0}', space=sflag, size = 0x4, scoped, tag = 'scoped memory for transformer_classifier_forward.5']
    #allocation7 [shape = 'u8[2048]{0}', space=vmem, size = 0x800, scoped, tag = 'input window, operand 5, single buffered']
    #allocation8 [shape = 'u8[2048]{0}', space=vmem, size = 0x800, scoped, tag = 'input window, operand 6, single buffered']
    #allocation9 [shape = 's32[1]{0}', space=sflag, size = 0x4, scoped, tag = 'scoped memory for transformer_classifier_forward.5']
    #allocation10 [shape = 'u8[2048]{0}', space=vmem, size = 0x800, scoped, tag = 'input window, operand 7, single buffered']
    %16 = vsyncpa [#allocation4], 0
    %17 = vsyncpa [#allocation6], 0
    %18 = vsyncpa [#allocation9], 0
    // Predicated region
    $region2: #{transformer_classifier_forward.5} parent=1 // pred_check
      _
    $region3: #{transformer_classifier_forward.5} parent=1 // pred_check_branch
      %20 = sbr.rel (0) target = $region5
    $region4: #{transformer_classifier_forward.5} parent=1 // pred_region
      _
    $region5: #{transformer_classifier_forward.5} parent=1 // pred_fallthru
      _
    // Predicated region
    $region6: #{transformer_classifier_forward.5} parent=1 // pred_check
      _
    $region7: #{transformer_classifier_forward.5} parent=1 // pred_check_branch
      %22 = sbr.rel (0) target = $region9
    $region8: #{transformer_classifier_forward.5} parent=1 // pred_region
      %24 = vsyncadd [#allocation4], 0
      %s25 = sshll.u32 %s1, 4
      %s26 = int_to_ptr.hbm [resolvable:$true] %s25
      %s27 = sshll.u32 [#allocation3], 4
      %s28 = int_to_ptr.vmem [resolvable:$true] %s27
      %33 = dma.hbm_to_vmem [thread:$0]  %s26, 4096, %s28, [#allocation4], 256, 256, 16
    $region9: #{transformer_classifier_forward.5} parent=1 // pred_fallthru
      _
    // Predicated region
    $region10: #{transformer_classifier_forward.5} parent=1 // pred_check
      _
    $region11: #{transformer_classifier_forward.5} parent=1 // pred_check_branch
      %35 = sbr.rel (0) target = $region13
    $region12: #{transformer_classifier_forward.5} parent=1 // pred_region
      _
    $region13: #{transformer_classifier_forward.5} parent=1 // pred_fallthru
      _
    // Predicated region
    $region14: #{transformer_classifier_forward.5} parent=1 // pred_check
      _
    $region15: #{transformer_classifier_forward.5} parent=1 // pred_check_branch
      %37 = sbr.rel (0) target = $region17
    $region16: #{transformer_classifier_forward.5} parent=1 // pred_region
      _
    $region17: #{transformer_classifier_forward.5} parent=1 // pred_fallthru
      _
    // Predicated region
    $region18: #{transformer_classifier_forward.5} parent=1 // pred_check
      _
    $region19: #{transformer_classifier_forward.5} parent=1 // pred_check_branch
      %39 = sbr.rel (0) target = $region21
    $region20: #{transformer_classifier_forward.5} parent=1 // pred_region
      %41 = vsyncadd [#allocation6], 0
      %s43 = sshll.u32 %s4, 4
      %s44 = int_to_ptr.hbm [resolvable:$true] %s43
      %s45 = sshll.u32 [#allocation5], 4
      %s46 = int_to_ptr.vmem [resolvable:$true] %s45
      %48 = dma.hbm_to_vmem [thread:$0]  %s44, 64, %s46, [#allocation6]
    $region21: #{transformer_classifier_forward.5} parent=1 // pred_fallthru
      _
    // Predicated region
    $region22: #{transformer_classifier_forward.5} parent=1 // pred_check
      _
    $region23: #{transformer_classifier_forward.5} parent=1 // pred_check_branch
      %50 = sbr.rel (0) target = $region25
    $region24: #{transformer_classifier_forward.5} parent=1 // pred_region
      %52 = vsyncadd [#allocation6], 0
      %s54 = sshll.u32 %s5, 4
      %s55 = int_to_ptr.hbm [resolvable:$true] %s54
      %s56 = sshll.u32 [#allocation7], 4
      %s57 = int_to_ptr.vmem [resolvable:$true] %s56
      %59 = dma.hbm_to_vmem [thread:$0]  %s55, 64, %s57, [#allocation6]
    $region25: #{transformer_classifier_forward.5} parent=1 // pred_fallthru
      _
    // Predicated region
    $region26: #{transformer_classifier_forward.5} parent=1 // pred_check
      _
    $region27: #{transformer_classifier_forward.5} parent=1 // pred_check_branch
      %61 = sbr.rel (0) target = $region29
    $region28: #{transformer_classifier_forward.5} parent=1 // pred_region
      %63 = vsyncadd [#allocation9], 0
      %s65 = sshll.u32 %s6, 4
      %s66 = int_to_ptr.hbm [resolvable:$true] %s65
      %s67 = sshll.u32 [#allocation8], 4
      %s68 = int_to_ptr.vmem [resolvable:$true] %s67
      %70 = dma.hbm_to_vmem [thread:$0]  %s66, 64, %s68, [#allocation9]
    $region29: #{transformer_classifier_forward.5} parent=1 // pred_fallthru
      _
    // Predicated region
    $region30: #{transformer_classifier_forward.5} parent=1 // pred_check
      _
    $region31: #{transformer_classifier_forward.5} parent=1 // pred_check_branch
      %72 = sbr.rel (0) target = $region33
    $region32: #{transformer_classifier_forward.5} parent=1 // pred_region
      %74 = vsyncadd [#allocation9], 0
      %s76 = sshll.u32 %s7, 4
      %s77 = int_to_ptr.hbm [resolvable:$true] %s76
      %s78 = sshll.u32 [#allocation10], 4
      %s79 = int_to_ptr.vmem [resolvable:$true] %s78
      %81 = dma.hbm_to_vmem [thread:$0]  %s77, 64, %s79, [#allocation9]
    $region33: #{transformer_classifier_forward.5} parent=1 // pred_fallthru
      _
    // Predicated region
    $region34: #{transformer_classifier_forward.5} parent=1 // pred_check
      _
    $region35: #{transformer_classifier_forward.5} parent=1 // pred_check_branch
      %83 = sbr.rel (0) target = $region37
    $region36: #{transformer_classifier_forward.5} parent=1 // pred_region
      _
    $region37: #{transformer_classifier_forward.5} parent=1 // pred_fallthru
      _
    // Predicated region
    $region38: #{transformer_classifier_forward.5} parent=1 // pred_check
      _
    $region39: #{transformer_classifier_forward.5} parent=1 // pred_check_branch
      %85 = sbr.rel (0) target = $region41
    $region40: #{transformer_classifier_forward.5} parent=1 // pred_region
      %87 = dma.done [#allocation4], 4096
    $region41: #{transformer_classifier_forward.5} parent=1 // pred_fallthru
      _
    // Predicated region
    $region42: #{transformer_classifier_forward.5} parent=1 // pred_check
      _
    $region43: #{transformer_classifier_forward.5} parent=1 // pred_check_branch
      %89 = sbr.rel (0) target = $region45
    $region44: #{transformer_classifier_forward.5} parent=1 // pred_region
      %91 = dma.done [#allocation6], 64
    $region45: #{transformer_classifier_forward.5} parent=1 // pred_fallthru
      _
    // Predicated region
    $region46: #{transformer_classifier_forward.5} parent=1 // pred_check
      _
    $region47: #{transformer_classifier_forward.5} parent=1 // pred_check_branch
      %93 = sbr.rel (0) target = $region49
    $region48: #{transformer_classifier_forward.5} parent=1 // pred_region
      %95 = dma.done [#allocation6], 64
    $region49: #{transformer_classifier_forward.5} parent=1 // pred_fallthru
      _
    // Predicated region
    $region50: #{transformer_classifier_forward.5} parent=1 // pred_check
      _
    $region51: #{transformer_classifier_forward.5} parent=1 // pred_check_branch
      %97 = sbr.rel (0) target = $region53
    $region52: #{transformer_classifier_forward.5} parent=1 // pred_region
      %99 = dma.done [#allocation9], 64
    $region53: #{transformer_classifier_forward.5} parent=1 // pred_fallthru
      _
    // Predicated region
    $region54: #{transformer_classifier_forward.5} parent=1 // pred_check
      _
    $region55: #{transformer_classifier_forward.5} parent=1 // pred_check_branch
      %101 = sbr.rel (0) target = $region57
    $region56: #{transformer_classifier_forward.5} parent=1 // pred_region
      %103 = dma.done [#allocation9], 64
    $region57: #{transformer_classifier_forward.5} parent=1 // pred_fallthru
      _
    %v104 = vld [vmem:[%s0] sm:$0xff]
    %v105 = vld [vmem:[%s0 + $0x8] sm:$0xff]
    %v106 = vrot.slane %v104, 4
    %v107 = vadd.f32 %v104, %v106
    %v108 = vrot.slane %v107, 2
    %v109 = vadd.f32 %v107, %v108
    %v110 = vrot.slane %v109, 1
    %v111 = vadd.f32 %v109, %v110
    %v112 = vrot.slane %v105, 4
    %v113 = vadd.f32 %v105, %v112
    %v114 = vrot.slane %v113, 2
    %v115 = vadd.f32 %v113, %v114
    %v116 = vrot.slane %v115, 1
    %v117 = vadd.f32 %v115, %v116
    %v118 = vrcp.pop 8.0
    %v119 = vmul.f32 8.0, %v118
    %v120 = vsub.f32 1.0, %v119
    %v121 = vmul.f32 %v118, %v120
    %v122 = vadd.f32 %v118, %v121
    %vm123 = vweird.f32 %v118
    %v124 = vsel %vm123, %v118, %v122
    %v125 = vmul.f32 %v111, %v124
    %v126 = vmul.f32 %v117, %v124
    %v127 = vpack.c.bf16 %v125, %v125
    %v128 = vpack.c.bf16 %v126, %v126
    %v129 = vld [vmem:[#allocation3] sm:$0xff]
    %v130 = vld [vmem:[#allocation3 + $0x8] sm:$0xff]
    %v131 = vld [vmem:[#allocation3 + $0x10] sm:$0xff]
    %v132 = vld [vmem:[#allocation3 + $0x18] sm:$0xff]
    %v133 = vld [vmem:[#allocation3 + $0x20] sm:$0xff]
    %v134 = vld [vmem:[#allocation3 + $0x28] sm:$0xff]
    %v135 = vld [vmem:[#allocation3 + $0x30] sm:$0xff]
    %v136 = vld [vmem:[#allocation3 + $0x38] sm:$0xff]
    %v137 = vld [vmem:[#allocation3 + $0x40] sm:$0xff]
    %v138 = vld [vmem:[#allocation3 + $0x48] sm:$0xff]
    %v139 = vld [vmem:[#allocation3 + $0x50] sm:$0xff]
    %v140 = vld [vmem:[#allocation3 + $0x58] sm:$0xff]
    %v141 = vld [vmem:[#allocation3 + $0x60] sm:$0xff]
    %v142 = vld [vmem:[#allocation3 + $0x68] sm:$0xff]
    %v143 = vld [vmem:[#allocation3 + $0x70] sm:$0xff]
    %v144 = vld [vmem:[#allocation3 + $0x78] sm:$0xff]
    %v145 = vld [vmem:[#allocation3 + $0x80] sm:$0xff]
    %v146 = vld [vmem:[#allocation3 + $0x88] sm:$0xff]
    %v147 = vld [vmem:[#allocation3 + $0x90] sm:$0xff]
    %v148 = vld [vmem:[#allocation3 + $0x98] sm:$0xff]
    %v149 = vld [vmem:[#allocation3 + $0xa0] sm:$0xff]
    %v150 = vld [vmem:[#allocation3 + $0xa8] sm:$0xff]
    %v151 = vld [vmem:[#allocation3 + $0xb0] sm:$0xff]
    %v152 = vld [vmem:[#allocation3 + $0xb8] sm:$0xff]
    %v153 = vld [vmem:[#allocation3 + $0xc0] sm:$0xff]
    %v154 = vld [vmem:[#allocation3 + $0xc8] sm:$0xff]
    %v155 = vld [vmem:[#allocation3 + $0xd0] sm:$0xff]
    %v156 = vld [vmem:[#allocation3 + $0xd8] sm:$0xff]
    %v157 = vld [vmem:[#allocation3 + $0xe0] sm:$0xff]
    %v158 = vld [vmem:[#allocation3 + $0xe8] sm:$0xff]
    %v159 = vld [vmem:[#allocation3 + $0xf0] sm:$0xff]
    %v160 = vld [vmem:[#allocation3 + $0xf8] sm:$0xff]
    %v161 = vld [vmem:[%s2] sm:$0xf]
    %v163 = vperm.slane %v161, 0
    %v164 = vperm.slane %v161, 1
    %v165 = vperm.slane %v161, 2
    %v166 = vperm.slane %v161, 3
    %v173 = vunpack.c.l.b16 %v127
    %v174 = vunpack.c.l.b16 %v128
    %vm175 = vcmask 1041409
    %v176 = vsel %vm175, %v174, %v173
    %v177 = vpack.c.b16 %v176, %v176
    %v211 = vunpack.c.l.b16 %v129
    %v212 = vunpack.c.h.b16 %v129
    %v213 = vunpack.c.l.b16 %v130
    %v214 = vunpack.c.h.b16 %v130
    %v215 = vunpack.c.l.b16 %v131
    %v216 = vunpack.c.h.b16 %v131
    %v217 = vunpack.c.l.b16 %v132
    %v218 = vunpack.c.h.b16 %v132
    %v219 = vunpack.c.l.b16 %v133
    %v220 = vunpack.c.h.b16 %v133
    %v221 = vunpack.c.l.b16 %v134
    %v222 = vunpack.c.h.b16 %v134
    %v223 = vunpack.c.l.b16 %v135
    %v224 = vunpack.c.h.b16 %v135
    %v225 = vunpack.c.l.b16 %v136
    %v226 = vunpack.c.h.b16 %v136
    %v227 = vunpack.c.l.b16 %v137
    %v228 = vunpack.c.h.b16 %v137
    %v229 = vunpack.c.l.b16 %v138
    %v230 = vunpack.c.h.b16 %v138
    %v231 = vunpack.c.l.b16 %v139
    %v232 = vunpack.c.h.b16 %v139
    %v233 = vunpack.c.l.b16 %v140
    %v234 = vunpack.c.h.b16 %v140
    %v235 = vunpack.c.l.b16 %v141
    %v236 = vunpack.c.h.b16 %v141
    %v237 = vunpack.c.l.b16 %v142
    %v238 = vunpack.c.h.b16 %v142
    %v239 = vunpack.c.l.b16 %v143
    %v240 = vunpack.c.h.b16 %v143
    %v241 = vunpack.c.l.b16 %v144
    %v242 = vunpack.c.h.b16 %v144
    %v243 = vunpack.c.l.b16 %v145
    %v244 = vunpack.c.h.b16 %v145
    %v245 = vunpack.c.l.b16 %v146
    %v246 = vunpack.c.h.b16 %v146
    %v247 = vunpack.c.l.b16 %v147
    %v248 = vunpack.c.h.b16 %v147
    %v249 = vunpack.c.l.b16 %v148
    %v250 = vunpack.c.h.b16 %v148
    %v251 = vunpack.c.l.b16 %v149
    %v252 = vunpack.c.h.b16 %v149
    %v253 = vunpack.c.l.b16 %v150
    %v254 = vunpack.c.h.b16 %v150
    %v255 = vunpack.c.l.b16 %v151
    %v256 = vunpack.c.h.b16 %v151
    %v257 = vunpack.c.l.b16 %v152
    %v258 = vunpack.c.h.b16 %v152
    %v259 = vunpack.c.l.b16 %v153
    %v260 = vunpack.c.h.b16 %v153
    %v261 = vunpack.c.l.b16 %v154
    %v262 = vunpack.c.h.b16 %v154
    %v263 = vunpack.c.l.b16 %v155
    %v264 = vunpack.c.h.b16 %v155
    %v265 = vunpack.c.l.b16 %v156
    %v266 = vunpack.c.h.b16 %v156
    %v267 = vunpack.c.l.b16 %v157
    %v268 = vunpack.c.h.b16 %v157
    %v269 = vunpack.c.l.b16 %v158
    %v270 = vunpack.c.h.b16 %v158
    %v271 = vunpack.c.l.b16 %v159
    %v272 = vunpack.c.h.b16 %v159
    %v273 = vunpack.c.l.b16 %v160
    %v274 = vunpack.c.h.b16 %v160
    %v275 = vpack.c.b16 %v215, %v211
    %v276 = vpack.c.b16 %v216, %v212
    %v277 = vpack.c.b16 %v217, %v213
    %v278 = vpack.c.b16 %v218, %v214
    %v279 = vpack.c.b16 %v223, %v219
    %v280 = vpack.c.b16 %v224, %v220
    %v281 = vpack.c.b16 %v225, %v221
    %v282 = vpack.c.b16 %v226, %v222
    %v283 = vpack.c.b16 %v231, %v227
    %v284 = vpack.c.b16 %v232, %v228
    %v285 = vpack.c.b16 %v233, %v229
    %v286 = vpack.c.b16 %v234, %v230
    %v287 = vpack.c.b16 %v239, %v235
    %v288 = vpack.c.b16 %v240, %v236
    %v289 = vpack.c.b16 %v241, %v237
    %v290 = vpack.c.b16 %v242, %v238
    %v291 = vpack.c.b16 %v247, %v243
    %v292 = vpack.c.b16 %v248, %v244
    %v293 = vpack.c.b16 %v249, %v245
    %v294 = vpack.c.b16 %v250, %v246
    %v295 = vpack.c.b16 %v255, %v251
    %v296 = vpack.c.b16 %v256, %v252
    %v297 = vpack.c.b16 %v257, %v253
    %v298 = vpack.c.b16 %v258, %v254
    %v299 = vpack.c.b16 %v263, %v259
    %v300 = vpack.c.b16 %v264, %v260
    %v301 = vpack.c.b16 %v265, %v261
    %v302 = vpack.c.b16 %v266, %v262
    %v303 = vpack.c.b16 %v271, %v267
    %v304 = vpack.c.b16 %v272, %v268
    %v305 = vpack.c.b16 %v273, %v269
    %v306 = vpack.c.b16 %v274, %v270
    %339 = vmatpush.bf16.msra.mxu0 %v303
    %340 = vmatpush.bf16.msra.mxu0 %v299
    %341 = vmatpush.bf16.msra.mxu0 %v295
    %342 = vmatpush.bf16.msra.mxu0 %v291
    %343 = vmatpush.bf16.msra.mxu0 %v287
    %344 = vmatpush.bf16.msra.mxu0 %v283
    %345 = vmatpush.bf16.msra.mxu0 %v279
    %346 = vmatpush.bf16.msra.mxu0 %v275
    %347 = vmatmul.bf16.gmra.mxu0 %v177
    %v348 = vpop.f32.mrf.mxu0
    %v349 = vadd.f32 %v163, %v348
    %v350 = vpop.f32.mrf.mxu0
    %351 = vdwg.mxu0
    %352 = vmatpush.bf16.msra.mxu0 %v304
    %353 = vmatpush.bf16.msra.mxu0 %v300
    %354 = vmatpush.bf16.msra.mxu0 %v296
    %355 = vmatpush.bf16.msra.mxu0 %v292
    %356 = vmatpush.bf16.msra.mxu0 %v288
    %357 = vmatpush.bf16.msra.mxu0 %v284
    %358 = vmatpush.bf16.msra.mxu0 %v280
    %359 = vmatpush.bf16.msra.mxu0 %v276
    %360 = vmatmul.bf16.gmra.mxu0 %v177
    %v361 = vpop.f32.mrf.mxu0
    %v362 = vadd.f32 %v164, %v361
    %v363 = vpop.f32.mrf.mxu0
    %364 = vdwg.mxu0
    %365 = vmatpush.bf16.msra.mxu0 %v305
    %366 = vmatpush.bf16.msra.mxu0 %v301
    %367 = vmatpush.bf16.msra.mxu0 %v297
    %368 = vmatpush.bf16.msra.mxu0 %v293
    %369 = vmatpush.bf16.msra.mxu0 %v289
    %370 = vmatpush.bf16.msra.mxu0 %v285
    %371 = vmatpush.bf16.msra.mxu0 %v281
    %372 = vmatpush.bf16.msra.mxu0 %v277
    %373 = vmatmul.bf16.gmra.mxu0 %v177
    %v374 = vpop.f32.mrf.mxu0
    %v375 = vadd.f32 %v165, %v374
    %v376 = vpop.f32.mrf.mxu0
    %377 = vdwg.mxu0
    %378 = vmatpush.bf16.msra.mxu0 %v306
    %379 = vmatpush.bf16.msra.mxu0 %v302
    %380 = vmatpush.bf16.msra.mxu0 %v298
    %381 = vmatpush.bf16.msra.mxu0 %v294
    %382 = vmatpush.bf16.msra.mxu0 %v290
    %383 = vmatpush.bf16.msra.mxu0 %v286
    %384 = vmatpush.bf16.msra.mxu0 %v282
    %385 = vmatpush.bf16.msra.mxu0 %v278
    %386 = vmatmul.bf16.gmra.mxu0 %v177
    %v387 = vpop.f32.mrf.mxu0
    %v388 = vadd.f32 %v166, %v387
    %v389 = vpop.f32.mrf.mxu0
    %390 = vdwg.mxu0
    %v391 = vld [vmem:[%s3] sm:$0xf]
    %v392 = vld [vmem:[#allocation8] sm:$0xf]
    %v393 = vadd.f32 %v392, 1e-05
    %v394 = vrsqrt.pop %v393
    %v395 = vmul.f32 %v394, %v393
    %v396 = vmul.f32 %v395, %v394
    %v397 = vmul.f32 0.5, %v396
    %v398 = vsub.f32 1.5, %v397
    %v399 = vmul.f32 %v394, %v398
    %vm400 = vweird.f32 %v393
    %vm401 = vweird.f32 %v394
    %vm402 = vmor %vm400, %vm401
    %v403 = vsel %vm402, %v394, %v399
    %v404 = vmul.f32 %v391, %v403
    %v405 = vld [vmem:[#allocation5] sm:$0xf]
    %v406 = vld [vmem:[#allocation7] sm:$0xf]
    %v407 = vmul.f32 %v406, %v404
    %v408 = vsub.f32 %v405, %v407
    %v410 = vperm.slane %v404, 0
    %v411 = vperm.slane %v404, 1
    %v412 = vperm.slane %v404, 2
    %v413 = vperm.slane %v404, 3
    %v418 = vmul.f32 %v349, %v410
    %v419 = vmul.f32 %v362, %v411
    %v420 = vmul.f32 %v375, %v412
    %v421 = vmul.f32 %v388, %v413
    %v423 = vperm.slane %v408, 0
    %v424 = vperm.slane %v408, 1
    %v425 = vperm.slane %v408, 2
    %v426 = vperm.slane %v408, 3
    %v431 = vadd.f32 %v418, %v423
    %v432 = vadd.f32 %v419, %v424
    %v433 = vadd.f32 %v420, %v425
    %v434 = vadd.f32 %v421, %v426
    %v435 = vmax.f32 %v431, 0.0
    %v436 = vmax.f32 %v432, 0.0
    %v437 = vmax.f32 %v433, 0.0
    %v438 = vmax.f32 %v434, 0.0
    %v439 = vld [vmem:[#allocation10] sm:$0xf]
    %v440 = vunpack.c.l.bf16 %v439
    %v442 = vperm.slane %v440, 0
    %v443 = vperm.slane %v440, 2
    %v444 = vperm.slane %v440, 4
    %v445 = vperm.slane %v440, 6
    %v450 = vperm.slane %v442, 0
    %v451 = vperm.slane %v443, 0
    %v452 = vperm.slane %v444, 0
    %v453 = vperm.slane %v445, 0
    %v454 = vmul.f32 %v435, %v450
    %v455 = vmul.f32 %v436, %v451
    %v456 = vmul.f32 %v437, %v452
    %v457 = vmul.f32 %v438, %v453
    %vm458 = vcmask 1041408
    %v459 = vsel %vm458, %v454, 0.0
    %v460 = vsel %vm458, %v455, 0.0
    %v461 = vadd.f32 %v459, %v460
    %v462 = vsel %vm458, %v456, 0.0
    %v463 = vadd.f32 %v461, %v462
    %v464 = vsel %vm458, %v457, 0.0
    %v465 = vadd.f32 %v463, %v464
    %466 = vadd.xlane.f32.xlu0 %v465
    %v467 = vpop.xlane.xlu0 %466
    %v468 = vld [vmem:[#allocation2] sm:$0x1]
    %v470 = vperm.slane %v468, 0
    %v472 = vadd.f32 %v467, %v470
    %v473 = vand.u32 2147483647, %v472
    %v474 = vsub.f32 0.0, %v473
    %v475 = vmul.f32 %v474, 1.442695
    %v476 = vpow.pop %v475
    %vm477 = vcmp.ge.f32.partialorder %v472, 0.0
    %v478 = vadd.f32 %v476, 1.0
    %v479 = vrcp.pop %v478
    %v480 = vmul.f32 %v478, %v479
    %v481 = vsub.f32 1.0, %v480
    %v482 = vmul.f32 %v479, %v481
    %v483 = vadd.f32 %v479, %v482
    %vm484 = vweird.f32 %v478
    %vm485 = vweird.f32 %v479
    %vm486 = vmor %vm484, %vm485
    %v487 = vsel %vm486, %v479, %v483
    %v488 = vand.u32 2147483647, %v478
    %vm489 = vcmp.eq.f32.partialorder %v488, 8.507059e+37
    %v490 = vand.u32 %v478, 2147483648
    %v491 = vor.u32 1.1754944e-38, %v490
    %v492 = vsel %vm489, %v491, %v487
    %v493 = vmul.f32 1.0, %v492
    %v494 = vmul.f32 %v476, %v492
    %v495 = vsel %vm477, %v493, %v494
    %vm496 = vcmask 1024
    %497 = vst.msk [vmem:[%s9] sm:$0x3] %vm496, %v495
    // Predicated region
    $region58: #{transformer_classifier_forward.5} parent=1 // pred_check
      _
    $region59: #{transformer_classifier_forward.5} parent=1 // pred_check_branch
      %499 = sbr.rel (0) target = $region61
    $region60: #{transformer_classifier_forward.5} parent=1 // pred_region
      _
    $region61: #{transformer_classifier_forward.5} parent=1 // pred_fallthru
      _
    // Predicated region
    $region62: #{transformer_classifier_forward.5} parent=1 // pred_check
      _
    $region63: #{transformer_classifier_forward.5} parent=1 // pred_check_branch
      %501 = sbr.rel (0) target = $region65
    $region64: #{transformer_classifier_forward.5} parent=1 // pred_region
      _
    $region65: #{transformer_classifier_forward.5} parent=1 // pred_fallthru
      _
    %502 = vsyncpa [#allocation4], 1
    %503 = vsyncpa [#allocation6], 1
    %504 = vsyncpa [#allocation9], 1

// kernel: transformer_classifier_forward.4
$region0: #{transformer_classifier_forward.4}
  #allocation0 [shape = 'u32[]', space=smem, size = 0x4, offset = 0x4, fixed_abs, tag = 'smem constant byte address 0x4 - core index']
  #allocation1 [shape = 'u32[72,128]{1,0:T(1,128)}', space=vmem, size = 0x9000, scoped, tag = 'internal scratch']
  #allocation2 [shape = 'f32[8,128]{1,0:T(8,128)}', space=vmem, size = 0x1000, scoped, tag = 'scratch operand']
  #allocation3 [shape = 'f32[8,128]{1,0:T(8,128)}', space=vmem, size = 0x1000, scoped, tag = 'scratch operand']
  %s0 = inlined_call_operand.vmem [shape: f32[2,8,128], index: 0, kind: input, shape index: {}]
  %s1 = inlined_call_operand.hbm [shape: bf16[2,128,384], index: 1, kind: input, shape index: {}]
  %s2 = inlined_call_operand.vmem [shape: f32[2,1,384], index: 2, kind: input, shape index: {}]
  %s3 = inlined_call_operand.hbm [shape: bf16[2,128,128], index: 3, kind: input, shape index: {}]
  %s4 = inlined_call_operand.vmem [shape: f32[2,1,128], index: 4, kind: input, shape index: {}]
  %s5 = inlined_call_operand.vmem [shape: f32[2,1,128], index: 5, kind: input, shape index: {}]
  %s6 = inlined_call_operand.vmem [shape: f32[2,1,128], index: 6, kind: input, shape index: {}]
  %s7 = inlined_call_operand.hbm [shape: bf16[2,128,256], index: 7, kind: input, shape index: {}]
  %s8 = inlined_call_operand.vmem [shape: f32[2,1,256], index: 8, kind: input, shape index: {}]
  %s9 = inlined_call_operand.hbm [shape: bf16[2,256,128], index: 9, kind: input, shape index: {}]
  %s10 = inlined_call_operand.vmem [shape: f32[2,1,128], index: 10, kind: input, shape index: {}]
  %s11 = inlined_call_operand.hbm [shape: f32[2,1,128], index: 11, kind: input, shape index: {}]
  %s12 = inlined_call_operand.hbm [shape: f32[2,1,128], index: 12, kind: input, shape index: {}]
  %s13 = inlined_call_operand.vmem [shape: f32[2,8,128], index: 13, kind: output, shape index: {}]
  %s14 = sld [smem:[#allocation0]]
  $region117: #{transformer_classifier_forward.4} parent=0
    _
  %s16 = ssub.s32 1, %s14
  %s17 = scalar_select 0, %s16, %s14
  $region1: #{transformer_classifier_forward.4} parent=0
    #allocation4 [shape = 'u8[196608]{0}', space=vmem, size = 0x30000, scoped, tag = 'input window, operand 1']
    #allocation5 [shape = 's32[2]{0}', space=sflag, size = 0x8, scoped, tag = 'scoped memory for transformer_classifier_forward.4']
    #allocation6 [shape = 'u8[65536]{0}', space=vmem, size = 0x10000, scoped, tag = 'input window, operand 3']
    #allocation7 [shape = 's32[2]{0}', space=sflag, size = 0x8, scoped, tag = 'scoped memory for transformer_classifier_forward.4']
    #allocation8 [shape = 'u8[131072]{0}', space=vmem, size = 0x20000, scoped, tag = 'input window, operand 7']
    #allocation9 [shape = 'u8[131072]{0}', space=vmem, size = 0x20000, scoped, tag = 'input window, operand 9']
    #allocation10 [shape = 's32[2]{0}', space=sflag, size = 0x8, scoped, tag = 'scoped memory for transformer_classifier_forward.4']
    #allocation11 [shape = 'u8[1024]{0}', space=vmem, size = 0x400, scoped, tag = 'input window, operand 11']
    #allocation12 [shape = 'u8[1024]{0}', space=vmem, size = 0x400, scoped, tag = 'input window, operand 12']
    #allocation13 [shape = 's32[2]{0}', space=sflag, size = 0x8, scoped, tag = 'scoped memory for transformer_classifier_forward.4']
    %18 = vsyncpa [#allocation5], 0
    %s19 = scalar_lea.sflag [#allocation5], 1
    %20 = vsyncpa %s19, 0
    %21 = vsyncpa [#allocation7], 0
    %s22 = scalar_lea.sflag [#allocation7], 1
    %23 = vsyncpa %s22, 0
    %24 = vsyncpa [#allocation10], 0
    %s25 = scalar_lea.sflag [#allocation10], 1
    %26 = vsyncpa %s25, 0
    %27 = vsyncpa [#allocation13], 0
    %s28 = scalar_lea.sflag [#allocation13], 1
    %29 = vsyncpa %s28, 0
    loop: start=0, step=1, limit=6
    $region2: #{transformer_classifier_forward.4} parent=1 // loop_pre_header
      _
    $region3: #{transformer_classifier_forward.4} parent=1 // loop_header
      %s31 = sphi 0, %s35
      %p32 = scmp.ge.s32.totalorder %s31, 6
      %s38 = sphi 0, %s50
      %s39 = sphi 0, %s46
      %s40 = sphi 0, %s38
      %s41 = sphi 0, %s39
      %s42 = sphi 0, %s40
      %s43 = sphi 0, %s41
      %s53 = sphi 0, %s55
      %s56 = sphi 0, %s53
      %s57 = sphi 0, %s56
      %s73 = sphi 0, %s57
      %s79 = sphi 0, %s81
      %s82 = sphi 0, %s79
      %s83 = sphi 0, %s82
      %s99 = sphi 0, %s83
      %s105 = sphi 0, %s107
      %s108 = sphi 0, %s105
      %s109 = sphi 0, %s108
      %s125 = sphi 0, %s109
      %s131 = sphi 0, %s133
      %s134 = sphi 0, %s131
      %s135 = sphi 0, %s134
      %s151 = sphi 0, %s135
      %s157 = sphi 0, %s159
      %s160 = sphi 0, %s157
      %s161 = sphi 0, %s160
      %s177 = sphi 0, %s161
      %s183 = sphi 0, %s185
      %s186 = sphi 0, %s183
      %s187 = sphi 0, %s186
      %s203 = sphi 0, %s187
      %s209 = sphi 0, %s211
      %s212 = sphi 0, %s209
      %s213 = sphi 0, %s212
      %s229 = sphi 0, %s213
      %s235 = sphi 0, %s237
      %s238 = sphi 0, %s235
      %s239 = sphi 0, %s238
      %s255 = sphi 0, %s239
      %s261 = sphi 0, %s263
      %s264 = sphi 0, %s261
      %s265 = sphi 0, %s264
      %s281 = sphi 0, %s265
      %s287 = sphi 0, %s289
      %s290 = sphi 0, %s287
      %s291 = sphi 0, %s290
      %s307 = sphi 0, %s291
      %s313 = sphi 0, %s315
      %s316 = sphi 0, %s313
      %s317 = sphi 0, %s316
      %s333 = sphi 0, %s317
      %s339 = sphi 0, %s341
      %s342 = sphi 0, %s339
      %s343 = sphi 0, %s342
      %s359 = sphi 0, %s343
      %s365 = sphi 0, %s367
      %s368 = sphi 0, %s365
      %s369 = sphi 0, %s368
      %s385 = sphi 0, %s369
      %s391 = sphi 0, %s393
      %s394 = sphi 0, %s391
      %s395 = sphi 0, %s394
      %s411 = sphi 0, %s395
    $region4: #{transformer_classifier_forward.4} parent=1 // loop_header_branch
      %34 = sbr.rel (%p32) target = $region8
    $region5: #{transformer_classifier_forward.4} parent=1 // loop_body
      %s36 = ssub.s32 %s31, 1
      %s37 = ssub.s32 %s31, 2
      %s44 = sadd.s32 1, %s39
      %p45 = scmp.ge.s32.totalorder %s44, 2
      %s46 = scalar_select %p45, 0, %s44
      %s47 = sadd.s32 1, %s38
      %s48 = scalar_select %p45, %s47, %s38
      %p49 = scmp.ge.s32.totalorder %s48, 2
      %s50 = scalar_select %p49, 0, %s48
      %s51 = ssub.s32 %s38, %s50
      %p52 = scmp.eq.s32.totalorder %s51, 0
      %s54 = sadd.s32 %s53, 1
      %s55 = scalar_select %p52, %s53, %s54
      %p58 = pneg %p52
      %p59 = scmp.eq.s32.totalorder %s31, 3
      %p60 = por %p58, %p59
      %p61 = scmp.ne.s32.totalorder %s53, %s56
      %p62 = scmp.eq.s32.totalorder %s31, 0
      %p63 = por %p61, %p62
      %p64 = scmp.ne.s32.totalorder %s53, %s56
      %p65 = scmp.eq.s32.totalorder %s36, 3
      %p66 = por %p64, %p65
      %p67 = scmp.ne.s32.totalorder %s56, %s57
      %p68 = scmp.eq.s32.totalorder %s36, 0
      %p69 = por %p67, %p68
      %p70 = scmp.ne.s32.totalorder %s56, %s57
      %p71 = scmp.eq.s32.totalorder %s37, 3
      %p72 = por %p70, %p71
      %p74 = scmp.ne.s32.totalorder %s57, %s73
      %p75 = scmp.eq.s32.totalorder %s37, 0
      %p76 = por %p74, %p75
      %s77 = ssub.s32 %s39, %s46
      %p78 = scmp.eq.s32.totalorder %s77, 0
      %s80 = sadd.s32 %s79, 1
      %s81 = scalar_select %p78, %s79, %s80
      %p84 = pneg %p78
      %p85 = scmp.eq.s32.totalorder %s31, 3
      %p86 = por %p84, %p85
      %p87 = scmp.ne.s32.totalorder %s79, %s82
      %p88 = scmp.eq.s32.totalorder %s31, 0
      %p89 = por %p87, %p88
      %p90 = scmp.ne.s32.totalorder %s79, %s82
      %p91 = scmp.eq.s32.totalorder %s36, 3
      %p92 = por %p90, %p91
      %p93 = scmp.ne.s32.totalorder %s82, %s83
      %p94 = scmp.eq.s32.totalorder %s36, 0
      %p95 = por %p93, %p94
      %p96 = scmp.ne.s32.totalorder %s82, %s83
      %p97 = scmp.eq.s32.totalorder %s37, 3
      %p98 = por %p96, %p97
      %p100 = scmp.ne.s32.totalorder %s83, %s99
      %p101 = scmp.eq.s32.totalorder %s37, 0
      %p102 = por %p100, %p101
      %s103 = ssub.s32 %s39, %s46
      %p104 = scmp.eq.s32.totalorder %s103, 0
      %s106 = sadd.s32 %s105, 1
      %s107 = scalar_select %p104, %s105, %s106
      %p110 = pneg %p104
      %p111 = scmp.eq.s32.totalorder %s31, 3
      %p112 = por %p110, %p111
      %p113 = scmp.ne.s32.totalorder %s105, %s108
      %p114 = scmp.eq.s32.totalorder %s31, 0
      %p115 = por %p113, %p114
      %p116 = scmp.ne.s32.totalorder %s105, %s108
      %p117 = scmp.eq.s32.totalorder %s36, 3
      %p118 = por %p116, %p117
      %p119 = scmp.ne.s32.totalorder %s108, %s109
      %p120 = scmp.eq.s32.totalorder %s36, 0
      %p121 = por %p119, %p120
      %p122 = scmp.ne.s32.totalorder %s108, %s109
      %p123 = scmp.eq.s32.totalorder %s37, 3
      %p124 = por %p122, %p123
      %p126 = scmp.ne.s32.totalorder %s109, %s125
      %p127 = scmp.eq.s32.totalorder %s37, 0
      %p128 = por %p126, %p127
      %s129 = ssub.s32 %s39, %s46
      %p130 = scmp.eq.s32.totalorder %s129, 0
      %s132 = sadd.s32 %s131, 1
      %s133 = scalar_select %p130, %s131, %s132
      %p136 = pneg %p130
      %p137 = scmp.eq.s32.totalorder %s31, 3
      %p138 = por %p136, %p137
      %p139 = scmp.ne.s32.totalorder %s131, %s134
      %p140 = scmp.eq.s32.totalorder %s31, 0
      %p141 = por %p139, %p140
      %p142 = scmp.ne.s32.totalorder %s131, %s134
      %p143 = scmp.eq.s32.totalorder %s36, 3
      %p144 = por %p142, %p143
      %p145 = scmp.ne.s32.totalorder %s134, %s135
      %p146 = scmp.eq.s32.totalorder %s36, 0
      %p147 = por %p145, %p146
      %p148 = scmp.ne.s32.totalorder %s134, %s135
      %p149 = scmp.eq.s32.totalorder %s37, 3
      %p150 = por %p148, %p149
      %p152 = scmp.ne.s32.totalorder %s135, %s151
      %p153 = scmp.eq.s32.totalorder %s37, 0
      %p154 = por %p152, %p153
      %s155 = ssub.s32 %s39, %s46
      %p156 = scmp.eq.s32.totalorder %s155, 0
      %s158 = sadd.s32 %s157, 1
      %s159 = scalar_select %p156, %s157, %s158
      %p162 = pneg %p156
      %p163 = scmp.eq.s32.totalorder %s31, 3
      %p164 = por %p162, %p163
      %p165 = scmp.ne.s32.totalorder %s157, %s160
      %p166 = scmp.eq.s32.totalorder %s31, 0
      %p167 = por %p165, %p166
      %p168 = scmp.ne.s32.totalorder %s157, %s160
      %p169 = scmp.eq.s32.totalorder %s36, 3
      %p170 = por %p168, %p169
      %p171 = scmp.ne.s32.totalorder %s160, %s161
      %p172 = scmp.eq.s32.totalorder %s36, 0
      %p173 = por %p171, %p172
      %p174 = scmp.ne.s32.totalorder %s160, %s161
      %p175 = scmp.eq.s32.totalorder %s37, 3
      %p176 = por %p174, %p175
      %p178 = scmp.ne.s32.totalorder %s161, %s177
      %p179 = scmp.eq.s32.totalorder %s37, 0
      %p180 = por %p178, %p179
      %s181 = ssub.s32 %s39, %s46
      %p182 = scmp.eq.s32.totalorder %s181, 0
      %s184 = sadd.s32 %s183, 1
      %s185 = scalar_select %p182, %s183, %s184
      %p188 = pneg %p182
      %p189 = scmp.eq.s32.totalorder %s31, 3
      %p190 = por %p188, %p189
      %p191 = scmp.ne.s32.totalorder %s183, %s186
      %p192 = scmp.eq.s32.totalorder %s31, 0
      %p193 = por %p191, %p192
      %p194 = scmp.ne.s32.totalorder %s183, %s186
      %p195 = scmp.eq.s32.totalorder %s36, 3
      %p196 = por %p194, %p195
      %p197 = scmp.ne.s32.totalorder %s186, %s187
      %p198 = scmp.eq.s32.totalorder %s36, 0
      %p199 = por %p197, %p198
      %p200 = scmp.ne.s32.totalorder %s186, %s187
      %p201 = scmp.eq.s32.totalorder %s37, 3
      %p202 = por %p200, %p201
      %p204 = scmp.ne.s32.totalorder %s187, %s203
      %p205 = scmp.eq.s32.totalorder %s37, 0
      %p206 = por %p204, %p205
      %s207 = ssub.s32 %s39, %s46
      %p208 = scmp.eq.s32.totalorder %s207, 0
      %s210 = sadd.s32 %s209, 1
      %s211 = scalar_select %p208, %s209, %s210
      %p214 = pneg %p208
      %p215 = scmp.eq.s32.totalorder %s31, 3
      %p216 = por %p214, %p215
      %p217 = scmp.ne.s32.totalorder %s209, %s212
      %p218 = scmp.eq.s32.totalorder %s31, 0
      %p219 = por %p217, %p218
      %p220 = scmp.ne.s32.totalorder %s209, %s212
      %p221 = scmp.eq.s32.totalorder %s36, 3
      %p222 = por %p220, %p221
      %p223 = scmp.ne.s32.totalorder %s212, %s213
      %p224 = scmp.eq.s32.totalorder %s36, 0
      %p225 = por %p223, %p224
      %p226 = scmp.ne.s32.totalorder %s212, %s213
      %p227 = scmp.eq.s32.totalorder %s37, 3
      %p228 = por %p226, %p227
      %p230 = scmp.ne.s32.totalorder %s213, %s229
      %p231 = scmp.eq.s32.totalorder %s37, 0
      %p232 = por %p230, %p231
      %s233 = ssub.s32 %s39, %s46
      %p234 = scmp.eq.s32.totalorder %s233, 0
      %s236 = sadd.s32 %s235, 1
      %s237 = scalar_select %p234, %s235, %s236
      %p240 = pneg %p234
      %p241 = scmp.eq.s32.totalorder %s31, 3
      %p242 = por %p240, %p241
      %p243 = scmp.ne.s32.totalorder %s235, %s238
      %p244 = scmp.eq.s32.totalorder %s31, 0
      %p245 = por %p243, %p244
      %p246 = scmp.ne.s32.totalorder %s235, %s238
      %p247 = scmp.eq.s32.totalorder %s36, 3
      %p248 = por %p246, %p247
      %p249 = scmp.ne.s32.totalorder %s238, %s239
      %p250 = scmp.eq.s32.totalorder %s36, 0
      %p251 = por %p249, %p250
      %p252 = scmp.ne.s32.totalorder %s238, %s239
      %p253 = scmp.eq.s32.totalorder %s37, 3
      %p254 = por %p252, %p253
      %p256 = scmp.ne.s32.totalorder %s239, %s255
      %p257 = scmp.eq.s32.totalorder %s37, 0
      %p258 = por %p256, %p257
      %s259 = ssub.s32 %s39, %s46
      %p260 = scmp.eq.s32.totalorder %s259, 0
      %s262 = sadd.s32 %s261, 1
      %s263 = scalar_select %p260, %s261, %s262
      %p266 = pneg %p260
      %p267 = scmp.eq.s32.totalorder %s31, 3
      %p268 = por %p266, %p267
      %p269 = scmp.ne.s32.totalorder %s261, %s264
      %p270 = scmp.eq.s32.totalorder %s31, 0
      %p271 = por %p269, %p270
      %p272 = scmp.ne.s32.totalorder %s261, %s264
      %p273 = scmp.eq.s32.totalorder %s36, 3
      %p274 = por %p272, %p273
      %p275 = scmp.ne.s32.totalorder %s264, %s265
      %p276 = scmp.eq.s32.totalorder %s36, 0
      %p277 = por %p275, %p276
      %p278 = scmp.ne.s32.totalorder %s264, %s265
      %p279 = scmp.eq.s32.totalorder %s37, 3
      %p280 = por %p278, %p279
      %p282 = scmp.ne.s32.totalorder %s265, %s281
      %p283 = scmp.eq.s32.totalorder %s37, 0
      %p284 = por %p282, %p283
      %s285 = ssub.s32 %s39, %s46
      %p286 = scmp.eq.s32.totalorder %s285, 0
      %s288 = sadd.s32 %s287, 1
      %s289 = scalar_select %p286, %s287, %s288
      %p292 = pneg %p286
      %p293 = scmp.eq.s32.totalorder %s31, 3
      %p294 = por %p292, %p293
      %p295 = scmp.ne.s32.totalorder %s287, %s290
      %p296 = scmp.eq.s32.totalorder %s31, 0
      %p297 = por %p295, %p296
      %p298 = scmp.ne.s32.totalorder %s287, %s290
      %p299 = scmp.eq.s32.totalorder %s36, 3
      %p300 = por %p298, %p299
      %p301 = scmp.ne.s32.totalorder %s290, %s291
      %p302 = scmp.eq.s32.totalorder %s36, 0
      %p303 = por %p301, %p302
      %p304 = scmp.ne.s32.totalorder %s290, %s291
      %p305 = scmp.eq.s32.totalorder %s37, 3
      %p306 = por %p304, %p305
      %p308 = scmp.ne.s32.totalorder %s291, %s307
      %p309 = scmp.eq.s32.totalorder %s37, 0
      %p310 = por %p308, %p309
      %s311 = ssub.s32 %s39, %s46
      %p312 = scmp.eq.s32.totalorder %s311, 0
      %s314 = sadd.s32 %s313, 1
      %s315 = scalar_select %p312, %s313, %s314
      %p318 = pneg %p312
      %p319 = scmp.eq.s32.totalorder %s31, 3
      %p320 = por %p318, %p319
      %p321 = scmp.ne.s32.totalorder %s313, %s316
      %p322 = scmp.eq.s32.totalorder %s31, 0
      %p323 = por %p321, %p322
      %p324 = scmp.ne.s32.totalorder %s313, %s316
      %p325 = scmp.eq.s32.totalorder %s36, 3
      %p326 = por %p324, %p325
      %p327 = scmp.ne.s32.totalorder %s316, %s317
      %p328 = scmp.eq.s32.totalorder %s36, 0
      %p329 = por %p327, %p328
      %p330 = scmp.ne.s32.totalorder %s316, %s317
      %p331 = scmp.eq.s32.totalorder %s37, 3
      %p332 = por %p330, %p331
      %p334 = scmp.ne.s32.totalorder %s317, %s333
      %p335 = scmp.eq.s32.totalorder %s37, 0
      %p336 = por %p334, %p335
      %s337 = ssub.s32 %s39, %s46
      %p338 = scmp.eq.s32.totalorder %s337, 0
      %s340 = sadd.s32 %s339, 1
      %s341 = scalar_select %p338, %s339, %s340
      %p344 = pneg %p338
      %p345 = scmp.eq.s32.totalorder %s31, 3
      %p346 = por %p344, %p345
      %p347 = scmp.ne.s32.totalorder %s339, %s342
      %p348 = scmp.eq.s32.totalorder %s31, 0
      %p349 = por %p347, %p348
      %p350 = scmp.ne.s32.totalorder %s339, %s342
      %p351 = scmp.eq.s32.totalorder %s36, 3
      %p352 = por %p350, %p351
      %p353 = scmp.ne.s32.totalorder %s342, %s343
      %p354 = scmp.eq.s32.totalorder %s36, 0
      %p355 = por %p353, %p354
      %p356 = scmp.ne.s32.totalorder %s342, %s343
      %p357 = scmp.eq.s32.totalorder %s37, 3
      %p358 = por %p356, %p357
      %p360 = scmp.ne.s32.totalorder %s343, %s359
      %p361 = scmp.eq.s32.totalorder %s37, 0
      %p362 = por %p360, %p361
      %s363 = ssub.s32 %s39, %s46
      %p364 = scmp.eq.s32.totalorder %s363, 0
      %s366 = sadd.s32 %s365, 1
      %s367 = scalar_select %p364, %s365, %s366
      %p370 = pneg %p364
      %p371 = scmp.eq.s32.totalorder %s31, 3
      %p372 = por %p370, %p371
      %p373 = scmp.ne.s32.totalorder %s365, %s368
      %p374 = scmp.eq.s32.totalorder %s31, 0
      %p375 = por %p373, %p374
      %p376 = scmp.ne.s32.totalorder %s365, %s368
      %p377 = scmp.eq.s32.totalorder %s36, 3
      %p378 = por %p376, %p377
      %p379 = scmp.ne.s32.totalorder %s368, %s369
      %p380 = scmp.eq.s32.totalorder %s36, 0
      %p381 = por %p379, %p380
      %p382 = scmp.ne.s32.totalorder %s368, %s369
      %p383 = scmp.eq.s32.totalorder %s37, 3
      %p384 = por %p382, %p383
      %p386 = scmp.ne.s32.totalorder %s369, %s385
      %p387 = scmp.eq.s32.totalorder %s37, 0
      %p388 = por %p386, %p387
      %s389 = ssub.s32 %s38, %s50
      %p390 = scmp.eq.s32.totalorder %s389, 0
      %s392 = sadd.s32 %s391, 1
      %s393 = scalar_select %p390, %s391, %s392
      %p396 = pneg %p390
      %p397 = scmp.eq.s32.totalorder %s31, 3
      %p398 = por %p396, %p397
      %p399 = scmp.ne.s32.totalorder %s391, %s394
      %p400 = scmp.eq.s32.totalorder %s31, 0
      %p401 = por %p399, %p400
      %p402 = scmp.ne.s32.totalorder %s391, %s394
      %p403 = scmp.eq.s32.totalorder %s36, 3
      %p404 = por %p402, %p403
      %p405 = scmp.ne.s32.totalorder %s394, %s395
      %p406 = scmp.eq.s32.totalorder %s36, 0
      %p407 = por %p405, %p406
      %p408 = scmp.ne.s32.totalorder %s394, %s395
      %p409 = scmp.eq.s32.totalorder %s37, 3
      %p410 = por %p408, %p409
      %p412 = scmp.ne.s32.totalorder %s395, %s411
      %p413 = scmp.eq.s32.totalorder %s37, 0
      %p414 = por %p412, %p413
      %p415 = scmp.le.s32.totalorder 1, %s31
      %p416 = scmp.lt.s32.totalorder %s31, 5
      %p417 = pnand %p415, %p416
      %p418 = pneg %p417
      // Predicated region
      $region9: #{transformer_classifier_forward.4} parent=5 // pred_check
        _
      $region10: #{transformer_classifier_forward.4} parent=5 // pred_check_branch
        %420 = sbr.rel (%p417) target = $region12
      $region11: #{transformer_classifier_forward.4} parent=5 // pred_region
        %s421 = ssub.s32 %s31, 1
      $region12: #{transformer_classifier_forward.4} parent=5 // pred_fallthru
        _
      %p422 = scmp.lt.s32.totalorder %s31, 4
      // Predicated region
      $region13: #{transformer_classifier_forward.4} parent=5 // pred_check
        %p423 = pneg %p422
      $region14: #{transformer_classifier_forward.4} parent=5 // pred_check_branch
        %425 = sbr.rel (%p423) target = $region16
      $region15: #{transformer_classifier_forward.4} parent=5 // pred_region
        // Predicated region
        $region17: #{transformer_classifier_forward.4} parent=15 // pred_check
          %p426 = pneg %p63
        $region18: #{transformer_classifier_forward.4} parent=15 // pred_check_branch
          %428 = sbr.rel (%p426) target = $region20
        $region19: #{transformer_classifier_forward.4} parent=15 // pred_region
          %p429 = scmp.lt.s32.totalorder %s38, 1
          %s430 = scalar_select %p429, %s38, 1
          %s431 = smul.addr %s430, 8
          %s432 = scalar_lea.vmem %s0, %s431
        $region20: #{transformer_classifier_forward.4} parent=15 // pred_fallthru
          _
        // Predicated region
        $region21: #{transformer_classifier_forward.4} parent=15 // pred_check
          %p433 = pneg %p89
        $region22: #{transformer_classifier_forward.4} parent=15 // pred_check_branch
          %435 = sbr.rel (%p433) target = $region24
        $region23: #{transformer_classifier_forward.4} parent=15 // pred_region
          %s436 = sand.u32 %s79, 1
          %s437 = scalar_lea.sflag [#allocation5], %s436
          %s438 = sand.u32 %s79, 1
          %s439 = smul.addr %s438, 192
          %s440 = scalar_lea.vmem [#allocation4], %s439
          %442 = vsyncadd %s437, 0
          %s443 = smul.addr %s39, 48
          %s444 = smul.addr %s443, 4
          %s445 = scalar_lea.hbm %s1, %s444
          %s446 = sshll.u32 %s445, 4
          %s447 = int_to_ptr.hbm [resolvable:$true] %s446
          %s448 = sshll.u32 %s440, 4
          %s449 = int_to_ptr.vmem [resolvable:$true] %s448
          %454 = dma.hbm_to_vmem [thread:$0]  %s447, 3072, %s449, %s437, 192, 192, 12
        $region24: #{transformer_classifier_forward.4} parent=15 // pred_fallthru
          _
        // Predicated region
        $region25: #{transformer_classifier_forward.4} parent=15 // pred_check
          %p455 = pneg %p115
        $region26: #{transformer_classifier_forward.4} parent=15 // pred_check_branch
          %457 = sbr.rel (%p455) target = $region28
        $region27: #{transformer_classifier_forward.4} parent=15 // pred_region
          %p458 = scmp.lt.s32.totalorder %s39, 1
          %s459 = scalar_select %p458, %s39, 1
          %s460 = smul.addr %s459, 3
          %s461 = scalar_lea.vmem %s2, %s460
        $region28: #{transformer_classifier_forward.4} parent=15 // pred_fallthru
          _
        // Predicated region
        $region29: #{transformer_classifier_forward.4} parent=15 // pred_check
          %p462 = pneg %p141
        $region30: #{transformer_classifier_forward.4} parent=15 // pred_check_branch
          %464 = sbr.rel (%p462) target = $region32
        $region31: #{transformer_classifier_forward.4} parent=15 // pred_region
          %s465 = sand.u32 %s31, 1
          %s466 = scalar_lea.sflag [#allocation7], %s465
          %s467 = sand.u32 %s131, 1
          %s468 = smul.addr %s467, 64
          %s469 = scalar_lea.vmem [#allocation6], %s468
          %471 = vsyncadd %s466, 0
          %s472 = smul.addr %s39, 16
          %s473 = smul.addr %s472, 4
          %s474 = scalar_lea.hbm %s3, %s473
          %s475 = sshll.u32 %s474, 4
          %s476 = int_to_ptr.hbm [resolvable:$true] %s475
          %s477 = sshll.u32 %s469, 4
          %s478 = int_to_ptr.vmem [resolvable:$true] %s477
          %483 = dma.hbm_to_vmem [thread:$0]  %s476, 1024, %s478, %s466, 64, 64, 4
        $region32: #{transformer_classifier_forward.4} parent=15 // pred_fallthru
          _
        // Predicated region
        $region33: #{transformer_classifier_forward.4} parent=15 // pred_check
          %p484 = pneg %p167
        $region34: #{transformer_classifier_forward.4} parent=15 // pred_check_branch
          %486 = sbr.rel (%p484) target = $region36
        $region35: #{transformer_classifier_forward.4} parent=15 // pred_region
          %p487 = scmp.lt.s32.totalorder %s39, 1
          %s488 = scalar_select %p487, %s39, 1
          %s489 = scalar_lea.vmem %s4, %s488
        $region36: #{transformer_classifier_forward.4} parent=15 // pred_fallthru
          _
        // Predicated region
        $region37: #{transformer_classifier_forward.4} parent=15 // pred_check
          %p490 = pneg %p193
        $region38: #{transformer_classifier_forward.4} parent=15 // pred_check_branch
          %492 = sbr.rel (%p490) target = $region40
        $region39: #{transformer_classifier_forward.4} parent=15 // pred_region
          %p493 = scmp.lt.s32.totalorder %s39, 1
          %s494 = scalar_select %p493, %s39, 1
          %s495 = scalar_lea.vmem %s5, %s494
        $region40: #{transformer_classifier_forward.4} parent=15 // pred_fallthru
          _
        // Predicated region
        $region41: #{transformer_classifier_forward.4} parent=15 // pred_check
          %p496 = pneg %p219
        $region42: #{transformer_classifier_forward.4} parent=15 // pred_check_branch
          %498 = sbr.rel (%p496) target = $region44
        $region43: #{transformer_classifier_forward.4} parent=15 // pred_region
          %p499 = scmp.lt.s32.totalorder %s39, 1
          %s500 = scalar_select %p499, %s39, 1
          %s501 = scalar_lea.vmem %s6, %s500
        $region44: #{transformer_classifier_forward.4} parent=15 // pred_fallthru
          _
        // Predicated region
        $region45: #{transformer_classifier_forward.4} parent=15 // pred_check
          %p502 = pneg %p245
        $region46: #{transformer_classifier_forward.4} parent=15 // pred_check_branch
          %504 = sbr.rel (%p502) target = $region48
        $region47: #{transformer_classifier_forward.4} parent=15 // pred_region
          %s505 = sand.u32 %s31, 1
          %s506 = scalar_lea.sflag [#allocation7], %s505
          %s507 = sand.u32 %s235, 1
          %s508 = smul.addr %s507, 128
          %s509 = scalar_lea.vmem [#allocation8], %s508
          %511 = vsyncadd %s506, 0
          %s512 = smul.addr %s39, 32
          %s513 = smul.addr %s512, 4
          %s514 = scalar_lea.hbm %s7, %s513
          %s515 = sshll.u32 %s514, 4
          %s516 = int_to_ptr.hbm [resolvable:$true] %s515
          %s517 = sshll.u32 %s509, 4
          %s518 = int_to_ptr.vmem [resolvable:$true] %s517
          %523 = dma.hbm_to_vmem [thread:$0]  %s516, 2048, %s518, %s506, 128, 128, 8
        $region48: #{transformer_classifier_forward.4} parent=15 // pred_fallthru
          _
        // Predicated region
        $region49: #{transformer_classifier_forward.4} parent=15 // pred_check
          %p524 = pneg %p271
        $region50: #{transformer_classifier_forward.4} parent=15 // pred_check_branch
          %526 = sbr.rel (%p524) target = $region52
        $region51: #{transformer_classifier_forward.4} parent=15 // pred_region
          %p527 = scmp.lt.s32.totalorder %s39, 1
          %s528 = scalar_select %p527, %s39, 1
          %s529 = smul.addr %s528, 2
          %s530 = scalar_lea.vmem %s8, %s529
        $region52: #{transformer_classifier_forward.4} parent=15 // pred_fallthru
          _
        // Predicated region
        $region53: #{transformer_classifier_forward.4} parent=15 // pred_check
          %p531 = pneg %p297
        $region54: #{transformer_classifier_forward.4} parent=15 // pred_check_branch
          %533 = sbr.rel (%p531) target = $region56
        $region55: #{transformer_classifier_forward.4} parent=15 // pred_region
          %s534 = sand.u32 %s31, 1
          %s535 = scalar_lea.sflag [#allocation10], %s534
          %s536 = sand.u32 %s287, 1
          %s537 = smul.addr %s536, 128
          %s538 = scalar_lea.vmem [#allocation9], %s537
          %540 = vsyncadd %s535, 0
          %s541 = smul.addr %s39, 32
          %s542 = smul.addr %s541, 4
          %s543 = scalar_lea.hbm %s9, %s542
          %s544 = sshll.u32 %s543, 4
          %s545 = int_to_ptr.hbm [resolvable:$true] %s544
          %s546 = sshll.u32 %s538, 4
          %s547 = int_to_ptr.vmem [resolvable:$true] %s546
          %552 = dma.hbm_to_vmem [thread:$0]  %s545, 2048, %s547, %s535, 64, 64, 4
        $region56: #{transformer_classifier_forward.4} parent=15 // pred_fallthru
          _
        // Predicated region
        $region57: #{transformer_classifier_forward.4} parent=15 // pred_check
          %p553 = pneg %p323
        $region58: #{transformer_classifier_forward.4} parent=15 // pred_check_branch
          %555 = sbr.rel (%p553) target = $region60
        $region59: #{transformer_classifier_forward.4} parent=15 // pred_region
          %p556 = scmp.lt.s32.totalorder %s39, 1
          %s557 = scalar_select %p556, %s39, 1
          %s558 = scalar_lea.vmem %s10, %s557
        $region60: #{transformer_classifier_forward.4} parent=15 // pred_fallthru
          _
        // Predicated region
        $region61: #{transformer_classifier_forward.4} parent=15 // pred_check
          %p559 = pneg %p349
        $region62: #{transformer_classifier_forward.4} parent=15 // pred_check_branch
          %561 = sbr.rel (%p559) target = $region64
        $region63: #{transformer_classifier_forward.4} parent=15 // pred_region
          %s562 = sand.u32 %s31, 1
          %s563 = scalar_lea.sflag [#allocation10], %s562
          %s564 = sand.u32 %s339, 1
          %s565 = scalar_lea.vmem [#allocation11], %s564
          %567 = vsyncadd %s563, 0
          %s568 = scalar_lea.hbm %s11, %s39
          %s570 = sshll.u32 %s568, 4
          %s571 = int_to_ptr.hbm [resolvable:$true] %s570
          %s572 = sshll.u32 %s565, 4
          %s573 = int_to_ptr.vmem [resolvable:$true] %s572
          %575 = dma.hbm_to_vmem [thread:$0]  %s571, 16, %s573, %s563
        $region64: #{transformer_classifier_forward.4} parent=15 // pred_fallthru
          _
        // Predicated region
        $region65: #{transformer_classifier_forward.4} parent=15 // pred_check
          %p576 = pneg %p375
        $region66: #{transformer_classifier_forward.4} parent=15 // pred_check_branch
          %578 = sbr.rel (%p576) target = $region68
        $region67: #{transformer_classifier_forward.4} parent=15 // pred_region
          %s579 = sand.u32 %s365, 1
          %s580 = scalar_lea.sflag [#allocation13], %s579
          %s581 = sand.u32 %s365, 1
          %s582 = scalar_lea.vmem [#allocation12], %s581
          %584 = vsyncadd %s580, 0
          %s585 = scalar_lea.hbm %s12, %s39
          %s587 = sshll.u32 %s585, 4
          %s588 = int_to_ptr.hbm [resolvable:$true] %s587
          %s589 = sshll.u32 %s582, 4
          %s590 = int_to_ptr.vmem [resolvable:$true] %s589
          %592 = dma.hbm_to_vmem [thread:$0]  %s588, 16, %s590, %s580
        $region68: #{transformer_classifier_forward.4} parent=15 // pred_fallthru
          _
      $region16: #{transformer_classifier_forward.4} parent=5 // pred_fallthru
        _
      %p593 = scmp.le.s32.totalorder 1, %s31
      %p594 = scmp.lt.s32.totalorder %s31, 5
      %p595 = pnand %p593, %p594
      %p596 = pneg %p595
      // Predicated region
      $region69: #{transformer_classifier_forward.4} parent=5 // pred_check
        _
      $region70: #{transformer_classifier_forward.4} parent=5 // pred_check_branch
        %598 = sbr.rel (%p595) target = $region72
      $region71: #{transformer_classifier_forward.4} parent=5 // pred_region
        %s599 = ssub.s32 %s31, 1
        %s600 = sand.u32 %s82, 1
        %s601 = scalar_lea.sflag [#allocation5], %s600
        %s602 = sand.u32 %s82, 1
        %s603 = smul.addr %s602, 192
        %s604 = scalar_lea.vmem [#allocation4], %s603
        // Predicated region
        $region73: #{transformer_classifier_forward.4} parent=71 // pred_check
          %p605 = pneg %p95
        $region74: #{transformer_classifier_forward.4} parent=71 // pred_check_branch
          %607 = sbr.rel (%p605) target = $region76
        $region75: #{transformer_classifier_forward.4} parent=71 // pred_region
          %609 = dma.done %s601, 3072
        $region76: #{transformer_classifier_forward.4} parent=71 // pred_fallthru
          _
        %s610 = sand.u32 %s36, 1
        %s611 = scalar_lea.sflag [#allocation7], %s610
        %s612 = sand.u32 %s134, 1
        %s613 = smul.addr %s612, 64
        %s614 = scalar_lea.vmem [#allocation6], %s613
        // Predicated region
        $region77: #{transformer_classifier_forward.4} parent=71 // pred_check
          %p615 = pneg %p147
        $region78: #{transformer_classifier_forward.4} parent=71 // pred_check_branch
          %617 = sbr.rel (%p615) target = $region80
        $region79: #{transformer_classifier_forward.4} parent=71 // pred_region
          %619 = dma.done %s611, 1024
        $region80: #{transformer_classifier_forward.4} parent=71 // pred_fallthru
          _
        %s620 = sand.u32 %s36, 1
        %s621 = scalar_lea.sflag [#allocation7], %s620
        %s622 = sand.u32 %s238, 1
        %s623 = smul.addr %s622, 128
        %s624 = scalar_lea.vmem [#allocation8], %s623
        // Predicated region
        $region81: #{transformer_classifier_forward.4} parent=71 // pred_check
          %p625 = pneg %p251
        $region82: #{transformer_classifier_forward.4} parent=71 // pred_check_branch
          %627 = sbr.rel (%p625) target = $region84
        $region83: #{transformer_classifier_forward.4} parent=71 // pred_region
          %629 = dma.done %s621, 2048
        $region84: #{transformer_classifier_forward.4} parent=71 // pred_fallthru
          _
        %s630 = sand.u32 %s36, 1
        %s631 = scalar_lea.sflag [#allocation10], %s630
        %s632 = sand.u32 %s290, 1
        %s633 = smul.addr %s632, 128
        %s634 = scalar_lea.vmem [#allocation9], %s633
        // Predicated region
        $region85: #{transformer_classifier_forward.4} parent=71 // pred_check
          %p635 = pneg %p303
        $region86: #{transformer_classifier_forward.4} parent=71 // pred_check_branch
          %637 = sbr.rel (%p635) target = $region88
        $region87: #{transformer_classifier_forward.4} parent=71 // pred_region
          %639 = dma.done %s631, 2048
        $region88: #{transformer_classifier_forward.4} parent=71 // pred_fallthru
          _
        %s640 = sand.u32 %s36, 1
        %s641 = scalar_lea.sflag [#allocation10], %s640
        %s642 = sand.u32 %s342, 1
        %s643 = scalar_lea.vmem [#allocation11], %s642
        // Predicated region
        $region89: #{transformer_classifier_forward.4} parent=71 // pred_check
          %p644 = pneg %p355
        $region90: #{transformer_classifier_forward.4} parent=71 // pred_check_branch
          %646 = sbr.rel (%p644) target = $region92
        $region91: #{transformer_classifier_forward.4} parent=71 // pred_region
          %648 = dma.done %s641, 16
        $region92: #{transformer_classifier_forward.4} parent=71 // pred_fallthru
          _
        %s649 = sand.u32 %s368, 1
        %s650 = scalar_lea.sflag [#allocation13], %s649
        %s651 = sand.u32 %s368, 1
        %s652 = scalar_lea.vmem [#allocation12], %s651
        // Predicated region
        $region93: #{transformer_classifier_forward.4} parent=71 // pred_check
          %p653 = pneg %p381
        $region94: #{transformer_classifier_forward.4} parent=71 // pred_check_branch
          %655 = sbr.rel (%p653) target = $region96
        $region95: #{transformer_classifier_forward.4} parent=71 // pred_region
          %657 = dma.done %s650, 16
        $region96: #{transformer_classifier_forward.4} parent=71 // pred_fallthru
          _
        %p658 = scmp.lt.s32.totalorder %s40, 1
        %s659 = scalar_select %p658, %s40, 1
        %s660 = smul.addr %s659, 8
        %s661 = scalar_lea.vmem %s0, %s660
        %p662 = pneg %p69
        %p663 = pneg %p66
        %s664 = sand.u32 %s82, 1
        %s665 = scalar_lea.sflag [#allocation5], %s664
        %s666 = sand.u32 %s82, 1
        %s667 = smul.addr %s666, 192
        %s668 = scalar_lea.vmem [#allocation4], %s667
        %p669 = pneg %p95
        %p670 = pneg %p92
        %p671 = scmp.lt.s32.totalorder %s41, 1
        %s672 = scalar_select %p671, %s41, 1
        %s673 = smul.addr %s672, 3
        %s674 = scalar_lea.vmem %s2, %s673
        %p675 = pneg %p121
        %p676 = pneg %p118
        %s677 = sand.u32 %s36, 1
        %s678 = scalar_lea.sflag [#allocation7], %s677
        %s679 = sand.u32 %s134, 1
        %s680 = smul.addr %s679, 64
        %s681 = scalar_lea.vmem [#allocation6], %s680
        %p682 = pneg %p147
        %p683 = pneg %p144
        %p684 = scmp.lt.s32.totalorder %s41, 1
        %s685 = scalar_select %p684, %s41, 1
        %s686 = scalar_lea.vmem %s4, %s685
        %p687 = pneg %p173
        %p688 = pneg %p170
        %p689 = scmp.lt.s32.totalorder %s41, 1
        %s690 = scalar_select %p689, %s41, 1
        %s691 = scalar_lea.vmem %s5, %s690
        %p692 = pneg %p199
        %p693 = pneg %p196
        %p694 = scmp.lt.s32.totalorder %s41, 1
        %s695 = scalar_select %p694, %s41, 1
        %s696 = scalar_lea.vmem %s6, %s695
        %p697 = pneg %p225
        %p698 = pneg %p222
        %s699 = sand.u32 %s36, 1
        %s700 = scalar_lea.sflag [#allocation7], %s699
        %s701 = sand.u32 %s238, 1
        %s702 = smul.addr %s701, 128
        %s703 = scalar_lea.vmem [#allocation8], %s702
        %p704 = pneg %p251
        %p705 = pneg %p248
        %p706 = scmp.lt.s32.totalorder %s41, 1
        %s707 = scalar_select %p706, %s41, 1
        %s708 = smul.addr %s707, 2
        %s709 = scalar_lea.vmem %s8, %s708
        %p710 = pneg %p277
        %p711 = pneg %p274
        %s712 = sand.u32 %s36, 1
        %s713 = scalar_lea.sflag [#allocation10], %s712
        %s714 = sand.u32 %s290, 1
        %s715 = smul.addr %s714, 128
        %s716 = scalar_lea.vmem [#allocation9], %s715
        %p717 = pneg %p303
        %p718 = pneg %p300
        %p719 = scmp.lt.s32.totalorder %s41, 1
        %s720 = scalar_select %p719, %s41, 1
        %s721 = scalar_lea.vmem %s10, %s720
        %p722 = pneg %p329
        %p723 = pneg %p326
        %s724 = sand.u32 %s36, 1
        %s725 = scalar_lea.sflag [#allocation10], %s724
        %s726 = sand.u32 %s342, 1
        %s727 = scalar_lea.vmem [#allocation11], %s726
        %p728 = pneg %p355
        %p729 = pneg %p352
        %s730 = sand.u32 %s368, 1
        %s731 = scalar_lea.sflag [#allocation13], %s730
        %s732 = sand.u32 %s368, 1
        %s733 = scalar_lea.vmem [#allocation12], %s732
        %p734 = pneg %p381
        %p735 = pneg %p378
        %p736 = pneg %p407
        %p737 = pneg %p404
        %p738 = scmp.lt.s32.totalorder %s40, 1
        %s739 = scalar_select %p738, %s40, 1
        %s740 = smul.addr %s739, 8
        %s741 = scalar_lea.vmem %s13, %s740
        %p742 = scmp.lt.s32.totalorder %s40, 1
        %s743 = scalar_select %p742, %s40, 1
        %s744 = smul.addr %s743, 8
        %s745 = scalar_lea.vmem %s0, %s744
        %p746 = scmp.lt.s32.totalorder %s41, 1
        %s747 = scalar_select %p746, %s41, 1
        %s748 = smul.addr %s747, 3
        %s749 = scalar_lea.vmem %s2, %s748
        %p750 = scmp.lt.s32.totalorder %s41, 1
        %s751 = scalar_select %p750, %s41, 1
        %s752 = scalar_lea.vmem %s4, %s751
        %p753 = scmp.lt.s32.totalorder %s41, 1
        %s754 = scalar_select %p753, %s41, 1
        %s755 = scalar_lea.vmem %s5, %s754
        %p756 = scmp.lt.s32.totalorder %s41, 1
        %s757 = scalar_select %p756, %s41, 1
        %s758 = scalar_lea.vmem %s6, %s757
        %p759 = scmp.lt.s32.totalorder %s41, 1
        %s760 = scalar_select %p759, %s41, 1
        %s761 = smul.addr %s760, 2
        %s762 = scalar_lea.vmem %s8, %s761
        %p763 = scmp.lt.s32.totalorder %s41, 1
        %s764 = scalar_select %p763, %s41, 1
        %s765 = scalar_lea.vmem %s10, %s764
        %p766 = scmp.lt.s32.totalorder %s40, 1
        %s767 = scalar_select %p766, %s40, 1
        %s768 = smul.addr %s767, 8
        %s769 = scalar_lea.vmem %s13, %s768
        %p771 = scmp.eq.s32.totalorder %s41, 0
        // Predicated region
        $region97: #{transformer_classifier_forward.4} parent=71 // pred_check
          %p772 = pneg %p771
        $region98: #{transformer_classifier_forward.4} parent=71 // pred_check_branch
          %774 = sbr.rel (%p772) target = $region100
        $region99: #{transformer_classifier_forward.4} parent=71 // pred_region
          %v775 = vld [vmem:[%s745] sm:$0xff]
          %776 = vst [vmem:[#allocation2] sm:$0xff] %v775
        $region100: #{transformer_classifier_forward.4} parent=71 // pred_fallthru
          _
        %v777 = vld [vmem:[#allocation2] sm:$0xff]
        %v778 = vpack.c.bf16 %v777, %v777
        %v779 = vld [vmem:[%s604] sm:$0xff]
        %v780 = vld [vmem:[%s604 + $0x8] sm:$0xf]
        %v781 = vld [vmem:[%s604 + $0xc] sm:$0xff]
        %v782 = vld [vmem:[%s604 + $0x14] sm:$0xf]
        %v783 = vld [vmem:[%s604 + $0x18] sm:$0xff]
        %v784 = vld [vmem:[%s604 + $0x20] sm:$0xf]
        %v785 = vld [vmem:[%s604 + $0x24] sm:$0xff]
        %v786 = vld [vmem:[%s604 + $0x2c] sm:$0xf]
        %v787 = vld [vmem:[%s604 + $0x30] sm:$0xff]
        %v788 = vld [vmem:[%s604 + $0x38] sm:$0xf]
        %v789 = vld [vmem:[%s604 + $0x3c] sm:$0xff]
        %v790 = vld [vmem:[%s604 + $0x44] sm:$0xf]
        %v791 = vld [vmem:[%s604 + $0x48] sm:$0xff]
        %v792 = vld [vmem:[%s604 + $0x50] sm:$0xf]
        %v793 = vld [vmem:[%s604 + $0x54] sm:$0xff]
        %v794 = vld [vmem:[%s604 + $0x5c] sm:$0xf]
        %v795 = vld [vmem:[%s604 + $0x60] sm:$0xff]
        %v796 = vld [vmem:[%s604 + $0x68] sm:$0xf]
        %v797 = vld [vmem:[%s604 + $0x6c] sm:$0xff]
        %v798 = vld [vmem:[%s604 + $0x74] sm:$0xf]
        %v799 = vld [vmem:[%s604 + $0x78] sm:$0xff]
        %v800 = vld [vmem:[%s604 + $0x80] sm:$0xf]
        %v801 = vld [vmem:[%s604 + $0x84] sm:$0xff]
        %v802 = vld [vmem:[%s604 + $0x8c] sm:$0xf]
        %v803 = vld [vmem:[%s604 + $0x90] sm:$0xff]
        %v804 = vld [vmem:[%s604 + $0x98] sm:$0xf]
        %v805 = vld [vmem:[%s604 + $0x9c] sm:$0xff]
        %v806 = vld [vmem:[%s604 + $0xa4] sm:$0xf]
        %v807 = vld [vmem:[%s604 + $0xa8] sm:$0xff]
        %v808 = vld [vmem:[%s604 + $0xb0] sm:$0xf]
        %v809 = vld [vmem:[%s604 + $0xb4] sm:$0xff]
        %v810 = vld [vmem:[%s604 + $0xbc] sm:$0xf]
        %v811 = vld [vmem:[%s749] sm:$0x7]
        %v813 = vperm.slane %v811, 0
        %v814 = vperm.slane %v811, 1
        %v815 = vperm.slane %v811, 2
        %v851 = vunpack.c.l.b16 %v779
        %v852 = vunpack.c.h.b16 %v779
        %v853 = vunpack.c.l.b16 %v780
        %v854 = vunpack.c.l.b16 %v781
        %v855 = vunpack.c.h.b16 %v781
        %v856 = vunpack.c.l.b16 %v782
        %v857 = vunpack.c.l.b16 %v783
        %v858 = vunpack.c.h.b16 %v783
        %v859 = vunpack.c.l.b16 %v784
        %v860 = vunpack.c.l.b16 %v785
        %v861 = vunpack.c.h.b16 %v785
        %v862 = vunpack.c.l.b16 %v786
        %v863 = vunpack.c.l.b16 %v787
        %v864 = vunpack.c.h.b16 %v787
        %v865 = vunpack.c.l.b16 %v788
        %v866 = vunpack.c.l.b16 %v789
        %v867 = vunpack.c.h.b16 %v789
        %v868 = vunpack.c.l.b16 %v790
        %v869 = vunpack.c.l.b16 %v791
        %v870 = vunpack.c.h.b16 %v791
        %v871 = vunpack.c.l.b16 %v792
        %v872 = vunpack.c.l.b16 %v793
        %v873 = vunpack.c.h.b16 %v793
        %v874 = vunpack.c.l.b16 %v794
        %v875 = vunpack.c.l.b16 %v795
        %v876 = vunpack.c.h.b16 %v795
        %v877 = vunpack.c.l.b16 %v796
        %v878 = vunpack.c.l.b16 %v797
        %v879 = vunpack.c.h.b16 %v797
        %v880 = vunpack.c.l.b16 %v798
        %v881 = vunpack.c.l.b16 %v799
        %v882 = vunpack.c.h.b16 %v799
        %v883 = vunpack.c.l.b16 %v800
        %v884 = vunpack.c.l.b16 %v801
        %v885 = vunpack.c.h.b16 %v801
        %v886 = vunpack.c.l.b16 %v802
        %v887 = vunpack.c.l.b16 %v803
        %v888 = vunpack.c.h.b16 %v803
        %v889 = vunpack.c.l.b16 %v804
        %v890 = vunpack.c.l.b16 %v805
        %v891 = vunpack.c.h.b16 %v805
        %v892 = vunpack.c.l.b16 %v806
        %v893 = vunpack.c.l.b16 %v807
        %v894 = vunpack.c.h.b16 %v807
        %v895 = vunpack.c.l.b16 %v808
        %v896 = vunpack.c.l.b16 %v809
        %v897 = vunpack.c.h.b16 %v809
        %v898 = vunpack.c.l.b16 %v810
        %v899 = vpack.c.b16 %v854, %v851
        %v900 = vpack.c.b16 %v855, %v852
        %v901 = vpack.c.b16 %v856, %v853
        %v902 = vpack.c.b16 %v860, %v857
        %v903 = vpack.c.b16 %v861, %v858
        %v904 = vpack.c.b16 %v862, %v859
        %v905 = vpack.c.b16 %v866, %v863
        %v906 = vpack.c.b16 %v867, %v864
        %v907 = vpack.c.b16 %v868, %v865
        %v908 = vpack.c.b16 %v872, %v869
        %v909 = vpack.c.b16 %v873, %v870
        %v910 = vpack.c.b16 %v874, %v871
        %v911 = vpack.c.b16 %v878, %v875
        %v912 = vpack.c.b16 %v879, %v876
        %v913 = vpack.c.b16 %v880, %v877
        %v914 = vpack.c.b16 %v884, %v881
        %v915 = vpack.c.b16 %v885, %v882
        %v916 = vpack.c.b16 %v886, %v883
        %v917 = vpack.c.b16 %v890, %v887
        %v918 = vpack.c.b16 %v891, %v888
        %v919 = vpack.c.b16 %v892, %v889
        %v920 = vpack.c.b16 %v896, %v893
        %v921 = vpack.c.b16 %v897, %v894
        %v922 = vpack.c.b16 %v898, %v895
        %947 = vmatpush.bf16.msra.mxu0 %v920
        %948 = vmatpush.bf16.msra.mxu0 %v917
        %949 = vmatpush.bf16.msra.mxu0 %v914
        %950 = vmatpush.bf16.msra.mxu0 %v911
        %951 = vmatpush.bf16.msra.mxu0 %v908
        %952 = vmatpush.bf16.msra.mxu0 %v905
        %953 = vmatpush.bf16.msra.mxu0 %v902
        %954 = vmatpush.bf16.msra.mxu0 %v899
        %955 = vmatmul.bf16.gmra.mxu0 %v778
        %v956 = vpop.f32.mrf.mxu0
        %v957 = vadd.f32 %v813, %v956
        %v958 = vpop.f32.mrf.mxu0
        %959 = vdwg.mxu0
        %960 = vmatpush.bf16.msra.mxu0 %v921
        %961 = vmatpush.bf16.msra.mxu0 %v918
        %962 = vmatpush.bf16.msra.mxu0 %v915
        %963 = vmatpush.bf16.msra.mxu0 %v912
        %964 = vmatpush.bf16.msra.mxu0 %v909
        %965 = vmatpush.bf16.msra.mxu0 %v906
        %966 = vmatpush.bf16.msra.mxu0 %v903
        %967 = vmatpush.bf16.msra.mxu0 %v900
        %968 = vmatmul.bf16.gmra.mxu0 %v778
        %v969 = vpop.f32.mrf.mxu0
        %v970 = vadd.f32 %v814, %v969
        %v971 = vpop.f32.mrf.mxu0
        %972 = vdwg.mxu0
        %973 = vmatpush.bf16.msra.mxu0 %v922
        %974 = vmatpush.bf16.msra.mxu0 %v919
        %975 = vmatpush.bf16.msra.mxu0 %v916
        %976 = vmatpush.bf16.msra.mxu0 %v913
        %977 = vmatpush.bf16.msra.mxu0 %v910
        %978 = vmatpush.bf16.msra.mxu0 %v907
        %979 = vmatpush.bf16.msra.mxu0 %v904
        %980 = vmatpush.bf16.msra.mxu0 %v901
        %981 = vmatmul.bf16.gmra.mxu0 %v778
        %v982 = vpop.f32.mrf.mxu0
        %v983 = vadd.f32 %v815, %v982
        %v984 = vpop.f32.mrf.mxu0
        %985 = vdwg.mxu0
        %v986 = vpack.c.bf16 %v970, %v957
        %v987 = vpack.c.bf16 %v983, %v983
        %v989 = vunpack.c.h.b16 %v986
        %v990 = vpack.c.b16 %v989, %v989
        %vm991 = vcmask 261120
        %v993 = vsel %vm991, %v986, 0
        %v996 = vsel %vm991, %v990, 0
        %998 = vmatpush.bf16.xpose.msra.mxu0 0
        %999 = vmatpush.bf16.xpose.msra.mxu0 0
        %1000 = vmatpush.bf16.xpose.msra.mxu0 0
        %1001 = vmatpush.bf16.xpose.msra.mxu0 0
        %1002 = vmatpush.bf16.xpose.msra.mxu0 0
        %1003 = vmatpush.bf16.xpose.msra.mxu0 0
        %1004 = vmatpush.bf16.xpose.msra.mxu0 0
        %1005 = vmatpush.bf16.xpose.msra.mxu0 %v996
        %1006 = vmatmul.bf16.gmra.mxu0 %v993
        %v1007 = vpop.f32.mrf.mxu0
        %v1008 = vadd.f32 0.0, %v1007
        %v1009 = vpop.f32.mrf.mxu0
        %1010 = vdwg.mxu0
        %v1011 = vmul.f32 %v1008, 0.17677669
        %vm1012 = vcmask 64512
        %v1013 = vsel %vm1012, %v1011, -inf
        %1014 = vmax.xlane.f32.xlu0 %v1013
        %v1015 = vpop.xlane.xlu0 %1014
        %v1016 = vsub.f32 %v1011, %v1015
        %v1017 = vmul.f32 %v1016, 1.442695
        %v1018 = vpow.pop %v1017
        %v1019 = vsel %vm1012, %v1018, 0.0
        %1020 = vadd.xlane.f32.xlu0 %v1019
        %v1021 = vpop.xlane.xlu0 %1020
        %v1022 = vrcp.pop %v1021
        %v1023 = vmul.f32 %v1018, %v1022
        %v1024 = vpack.c.bf16 %v1023, %v1023
        %v1026 = vsel %vm1012, %v1024, 0
        %vm1028 = vcmask 1043456
        %v1030 = vsel %vm1028, %v987, 0
        %1032 = vmatpush.bf16.msra.mxu0 0
        %1033 = vmatpush.bf16.msra.mxu0 0
        %1034 = vmatpush.bf16.msra.mxu0 0
        %1035 = vmatpush.bf16.msra.mxu0 0
        %1036 = vmatpush.bf16.msra.mxu0 0
        %1037 = vmatpush.bf16.msra.mxu0 0
        %1038 = vmatpush.bf16.msra.mxu0 0
        %1039 = vmatpush.bf16.msra.mxu0 %v1030
        %1040 = vmatmul.bf16.gmra.mxu0 %v1026
        %v1041 = vpop.f32.mrf.mxu0
        %v1042 = vadd.f32 0.0, %v1041
        %v1043 = vpop.f32.mrf.mxu0
        %1044 = vdwg.mxu0
        %1045 = vst.msk [vmem:[#allocation3] sm:$0xff] %vm991, %v1042
        %v1046 = vunpack.c.l.b16 %v986
        %v1047 = vpack.c.b16 %v1046, %v1046
        %1048 = vrot.lane.b32.xlu0 %v1047, 96
        %v1049 = vpop.permute.xlu0 %1048
        %1050 = vrot.lane.b32.xlu0 %v990, 96
        %v1051 = vpop.permute.xlu0 %1050
        %v1053 = vsel %vm991, %v1049, 0
        %v1056 = vsel %vm991, %v1051, 0
        %1058 = vmatpush.bf16.xpose.msra.mxu0 0
        %1059 = vmatpush.bf16.xpose.msra.mxu0 0
        %1060 = vmatpush.bf16.xpose.msra.mxu0 0
        %1061 = vmatpush.bf16.xpose.msra.mxu0 0
        %1062 = vmatpush.bf16.xpose.msra.mxu0 0
        %1063 = vmatpush.bf16.xpose.msra.mxu0 0
        %1064 = vmatpush.bf16.xpose.msra.mxu0 0
        %1065 = vmatpush.bf16.xpose.msra.mxu0 %v1056
        %1066 = vmatmul.bf16.gmra.mxu0 %v1053
        %v1067 = vpop.f32.mrf.mxu0
        %v1068 = vadd.f32 0.0, %v1067
        %v1069 = vpop.f32.mrf.mxu0
        %1070 = vdwg.mxu0
        %v1071 = vmul.f32 %v1068, 0.17677669
        %v1072 = vsel %vm1012, %v1071, -inf
        %1073 = vmax.xlane.f32.xlu0 %v1072
        %v1074 = vpop.xlane.xlu0 %1073
        %v1075 = vsub.f32 %v1071, %v1074
        %v1076 = vmul.f32 %v1075, 1.442695
        %v1077 = vpow.pop %v1076
        %v1078 = vsel %vm1012, %v1077, 0.0
        %1079 = vadd.xlane.f32.xlu0 %v1078
        %v1080 = vpop.xlane.xlu0 %1079
        %v1081 = vrcp.pop %v1080
        %v1082 = vmul.f32 %v1077, %v1081
        %v1083 = vpack.c.bf16 %v1082, %v1082
        %v1085 = vunpack.c.l.b16 %v987
        %v1086 = vpack.c.b16 %v1085, %v1085
        %1087 = vrot.lane.b32.xlu0 %v1086, 96
        %v1088 = vpop.permute.xlu0 %1087
        %v1090 = vsel %vm1012, %v1083, 0
        %v1093 = vsel %vm1028, %v1088, 0
        %1095 = vmatpush.bf16.msra.mxu0 0
        %1096 = vmatpush.bf16.msra.mxu0 0
        %1097 = vmatpush.bf16.msra.mxu0 0
        %1098 = vmatpush.bf16.msra.mxu0 0
        %1099 = vmatpush.bf16.msra.mxu0 0
        %1100 = vmatpush.bf16.msra.mxu0 0
        %1101 = vmatpush.bf16.msra.mxu0 0
        %1102 = vmatpush.bf16.msra.mxu0 %v1093
        %1103 = vmatmul.bf16.gmra.mxu0 %v1090
        %v1104 = vpop.f32.mrf.mxu0
        %v1105 = vadd.f32 0.0, %v1104
        %v1106 = vpop.f32.mrf.mxu0
        %1107 = vdwg.mxu0
        %1109 = vrot.lane.b32.xlu0 %v1105, 32
        %v1110 = vpop.permute.xlu0 %1109
        %vm1112 = vcmask 523520
        %1113 = vst.msk [vmem:[#allocation3] sm:$0xff] %vm1112, %v1110
        %1114 = vrot.lane.b32.xlu0 %v1047, 64
        %v1115 = vpop.permute.xlu0 %1114
        %1116 = vrot.lane.b32.xlu0 %v990, 64
        %v1117 = vpop.permute.xlu0 %1116
        %v1119 = vsel %vm991, %v1115, 0
        %v1122 = vsel %vm991, %v1117, 0
        %1124 = vmatpush.bf16.xpose.msra.mxu0 0
        %1125 = vmatpush.bf16.xpose.msra.mxu0 0
        %1126 = vmatpush.bf16.xpose.msra.mxu0 0
        %1127 = vmatpush.bf16.xpose.msra.mxu0 0
        %1128 = vmatpush.bf16.xpose.msra.mxu0 0
        %1129 = vmatpush.bf16.xpose.msra.mxu0 0
        %1130 = vmatpush.bf16.xpose.msra.mxu0 0
        %1131 = vmatpush.bf16.xpose.msra.mxu0 %v1122
        %1132 = vmatmul.bf16.gmra.mxu0 %v1119
        %v1133 = vpop.f32.mrf.mxu0
        %v1134 = vadd.f32 0.0, %v1133
        %v1135 = vpop.f32.mrf.mxu0
        %1136 = vdwg.mxu0
        %v1137 = vmul.f32 %v1134, 0.17677669
        %v1138 = vsel %vm1012, %v1137, -inf
        %1139 = vmax.xlane.f32.xlu0 %v1138
        %v1140 = vpop.xlane.xlu0 %1139
        %v1141 = vsub.f32 %v1137, %v1140
        %v1142 = vmul.f32 %v1141, 1.442695
        %v1143 = vpow.pop %v1142
        %v1144 = vsel %vm1012, %v1143, 0.0
        %1145 = vadd.xlane.f32.xlu0 %v1144
        %v1146 = vpop.xlane.xlu0 %1145
        %v1147 = vrcp.pop %v1146
        %v1148 = vmul.f32 %v1143, %v1147
        %v1149 = vpack.c.bf16 %v1148, %v1148
        %1150 = vrot.lane.b32.xlu0 %v1086, 64
        %v1151 = vpop.permute.xlu0 %1150
        %v1153 = vsel %vm1012, %v1149, 0
        %v1156 = vsel %vm1028, %v1151, 0
        %1158 = vmatpush.bf16.msra.mxu0 0
        %1159 = vmatpush.bf16.msra.mxu0 0
        %1160 = vmatpush.bf16.msra.mxu0 0
        %1161 = vmatpush.bf16.msra.mxu0 0
        %1162 = vmatpush.bf16.msra.mxu0 0
        %1163 = vmatpush.bf16.msra.mxu0 0
        %1164 = vmatpush.bf16.msra.mxu0 0
        %1165 = vmatpush.bf16.msra.mxu0 %v1156
        %1166 = vmatmul.bf16.gmra.mxu0 %v1153
        %v1167 = vpop.f32.mrf.mxu0
        %v1168 = vadd.f32 0.0, %v1167
        %v1169 = vpop.f32.mrf.mxu0
        %1170 = vdwg.mxu0
        %1172 = vrot.lane.b32.xlu0 %v1168, 64
        %v1173 = vpop.permute.xlu0 %1172
        %vm1175 = vcmask 785920
        %1176 = vst.msk [vmem:[#allocation3] sm:$0xff] %vm1175, %v1173
        %1177 = vrot.lane.b32.xlu0 %v1047, 32
        %v1178 = vpop.permute.xlu0 %1177
        %1179 = vrot.lane.b32.xlu0 %v990, 32
        %v1180 = vpop.permute.xlu0 %1179
        %v1182 = vsel %vm991, %v1178, 0
        %v1185 = vsel %vm991, %v1180, 0
        %1187 = vmatpush.bf16.xpose.msra.mxu0 0
        %1188 = vmatpush.bf16.xpose.msra.mxu0 0
        %1189 = vmatpush.bf16.xpose.msra.mxu0 0
        %1190 = vmatpush.bf16.xpose.msra.mxu0 0
        %1191 = vmatpush.bf16.xpose.msra.mxu0 0
        %1192 = vmatpush.bf16.xpose.msra.mxu0 0
        %1193 = vmatpush.bf16.xpose.msra.mxu0 0
        %1194 = vmatpush.bf16.xpose.msra.mxu0 %v1185
        %1195 = vmatmul.bf16.gmra.mxu0 %v1182
        %v1196 = vpop.f32.mrf.mxu0
        %v1197 = vadd.f32 0.0, %v1196
        %v1198 = vpop.f32.mrf.mxu0
        %1199 = vdwg.mxu0
        %v1200 = vmul.f32 %v1197, 0.17677669
        %v1201 = vsel %vm1012, %v1200, -inf
        %1202 = vmax.xlane.f32.xlu0 %v1201
        %v1203 = vpop.xlane.xlu0 %1202
        %v1204 = vsub.f32 %v1200, %v1203
        %v1205 = vmul.f32 %v1204, 1.442695
        %v1206 = vpow.pop %v1205
        %v1207 = vsel %vm1012, %v1206, 0.0
        %1208 = vadd.xlane.f32.xlu0 %v1207
        %v1209 = vpop.xlane.xlu0 %1208
        %v1210 = vrcp.pop %v1209
        %v1211 = vmul.f32 %v1206, %v1210
        %v1212 = vpack.c.bf16 %v1211, %v1211
        %1213 = vrot.lane.b32.xlu0 %v1086, 32
        %v1214 = vpop.permute.xlu0 %1213
        %v1216 = vsel %vm1012, %v1212, 0
        %v1219 = vsel %vm1028, %v1214, 0
        %1221 = vmatpush.bf16.msra.mxu0 0
        %1222 = vmatpush.bf16.msra.mxu0 0
        %1223 = vmatpush.bf16.msra.mxu0 0
        %1224 = vmatpush.bf16.msra.mxu0 0
        %1225 = vmatpush.bf16.msra.mxu0 0
        %1226 = vmatpush.bf16.msra.mxu0 0
        %1227 = vmatpush.bf16.msra.mxu0 0
        %1228 = vmatpush.bf16.msra.mxu0 %v1219
        %1229 = vmatmul.bf16.gmra.mxu0 %v1216
        %v1230 = vpop.f32.mrf.mxu0
        %v1231 = vadd.f32 0.0, %v1230
        %v1232 = vpop.f32.mrf.mxu0
        %1233 = vdwg.mxu0
        %1235 = vrot.lane.b32.xlu0 %v1231, 96
        %v1236 = vpop.permute.xlu0 %1235
        %vm1238 = vcmask 1048320
        %1239 = vst.msk [vmem:[#allocation3] sm:$0xff] %vm1238, %v1236
        %v1240 = vld [vmem:[#allocation3] sm:$0xff]
        %v1241 = vpack.c.bf16 %v1240, %v1240
        %v1242 = vld [vmem:[%s614] sm:$0xf]
        %v1243 = vld [vmem:[%s614 + $0x4] sm:$0xf]
        %v1244 = vld [vmem:[%s614 + $0x8] sm:$0xf]
        %v1245 = vld [vmem:[%s614 + $0xc] sm:$0xf]
        %v1246 = vld [vmem:[%s614 + $0x10] sm:$0xf]
        %v1247 = vld [vmem:[%s614 + $0x14] sm:$0xf]
        %v1248 = vld [vmem:[%s614 + $0x18] sm:$0xf]
        %v1249 = vld [vmem:[%s614 + $0x1c] sm:$0xf]
        %v1250 = vld [vmem:[%s614 + $0x20] sm:$0xf]
        %v1251 = vld [vmem:[%s614 + $0x24] sm:$0xf]
        %v1252 = vld [vmem:[%s614 + $0x28] sm:$0xf]
        %v1253 = vld [vmem:[%s614 + $0x2c] sm:$0xf]
        %v1254 = vld [vmem:[%s614 + $0x30] sm:$0xf]
        %v1255 = vld [vmem:[%s614 + $0x34] sm:$0xf]
        %v1256 = vld [vmem:[%s614 + $0x38] sm:$0xf]
        %v1257 = vld [vmem:[%s614 + $0x3c] sm:$0xf]
        %v1258 = vld [vmem:[%s752] sm:$0x1]
        %v1260 = vperm.slane %v1258, 0
        %v1278 = vunpack.c.l.b16 %v1242
        %v1279 = vunpack.c.l.b16 %v1243
        %v1280 = vunpack.c.l.b16 %v1244
        %v1281 = vunpack.c.l.b16 %v1245
        %v1282 = vunpack.c.l.b16 %v1246
        %v1283 = vunpack.c.l.b16 %v1247
        %v1284 = vunpack.c.l.b16 %v1248
        %v1285 = vunpack.c.l.b16 %v1249
        %v1286 = vunpack.c.l.b16 %v1250
        %v1287 = vunpack.c.l.b16 %v1251
        %v1288 = vunpack.c.l.b16 %v1252
        %v1289 = vunpack.c.l.b16 %v1253
        %v1290 = vunpack.c.l.b16 %v1254
        %v1291 = vunpack.c.l.b16 %v1255
        %v1292 = vunpack.c.l.b16 %v1256
        %v1293 = vunpack.c.l.b16 %v1257
        %v1294 = vpack.c.b16 %v1279, %v1278
        %v1295 = vpack.c.b16 %v1281, %v1280
        %v1296 = vpack.c.b16 %v1283, %v1282
        %v1297 = vpack.c.b16 %v1285, %v1284
        %v1298 = vpack.c.b16 %v1287, %v1286
        %v1299 = vpack.c.b16 %v1289, %v1288
        %v1300 = vpack.c.b16 %v1291, %v1290
        %v1301 = vpack.c.b16 %v1293, %v1292
        %1310 = vmatpush.bf16.msra.mxu0 %v1301
        %1311 = vmatpush.bf16.msra.mxu0 %v1300
        %1312 = vmatpush.bf16.msra.mxu0 %v1299
        %1313 = vmatpush.bf16.msra.mxu0 %v1298
        %1314 = vmatpush.bf16.msra.mxu0 %v1297
        %1315 = vmatpush.bf16.msra.mxu0 %v1296
        %1316 = vmatpush.bf16.msra.mxu0 %v1295
        %1317 = vmatpush.bf16.msra.mxu0 %v1294
        %1318 = vmatmul.bf16.gmra.mxu0 %v1241
        %v1319 = vpop.f32.mrf.mxu0
        %v1320 = vadd.f32 %v1260, %v1319
        %v1321 = vpop.f32.mrf.mxu0
        %1322 = vdwg.mxu0
        %v1323 = vadd.f32 %v777, %v1320
        %1324 = vadd.xlane.f32.xlu0 %v1323
        %v1325 = vpop.xlane.xlu0 %1324
        %v1326 = vrcp.pop 128.0
        %v1327 = vmul.f32 128.0, %v1326
        %v1328 = vsub.f32 1.0, %v1327
        %v1329 = vmul.f32 %v1326, %v1328
        %v1330 = vadd.f32 %v1326, %v1329
        %vm1331 = vweird.f32 %v1326
        %v1332 = vsel %vm1331, %v1326, %v1330
        %v1333 = vmul.f32 %v1325, %v1332
        %v1334 = vsub.f32 %v1323, %v1333
        %v1335 = vmul.f32 %v1334, %v1334
        %1336 = vadd.xlane.f32.xlu0 %v1335
        %v1337 = vpop.xlane.xlu0 %1336
        %v1338 = vmul.f32 %v1337, %v1332
        %v1339 = vadd.f32 %v1338, 1e-05
        %v1340 = vrsqrt.pop %v1339
        %v1341 = vmul.f32 %v1340, %v1339
        %v1342 = vmul.f32 %v1341, %v1340
        %v1343 = vmul.f32 0.5, %v1342
        %v1344 = vsub.f32 1.5, %v1343
        %v1345 = vmul.f32 %v1340, %v1344
        %vm1346 = vweird.f32 %v1339
        %vm1347 = vweird.f32 %v1340
        %vm1348 = vmor %vm1346, %vm1347
        %v1349 = vsel %vm1348, %v1340, %v1345
        %v1350 = vmul.f32 %v1334, %v1349
        %v1351 = vld [vmem:[%s755] sm:$0x1]
        %v1353 = vperm.slane %v1351, 0
        %v1355 = vmul.f32 %v1350, %v1353
        %v1356 = vld [vmem:[%s758] sm:$0x1]
        %v1358 = vperm.slane %v1356, 0
        %v1360 = vadd.f32 %v1355, %v1358
        %v1361 = vpack.c.bf16 %v1360, %v1360
        %v1362 = vld [vmem:[%s624] sm:$0xff]
        %v1363 = vld [vmem:[%s624 + $0x8] sm:$0xff]
        %v1364 = vld [vmem:[%s624 + $0x10] sm:$0xff]
        %v1365 = vld [vmem:[%s624 + $0x18] sm:$0xff]
        %v1366 = vld [vmem:[%s624 + $0x20] sm:$0xff]
        %v1367 = vld [vmem:[%s624 + $0x28] sm:$0xff]
        %v1368 = vld [vmem:[%s624 + $0x30] sm:$0xff]
        %v1369 = vld [vmem:[%s624 + $0x38] sm:$0xff]
        %v1370 = vld [vmem:[%s624 + $0x40] sm:$0xff]
        %v1371 = vld [vmem:[%s624 + $0x48] sm:$0xff]
        %v1372 = vld [vmem:[%s624 + $0x50] sm:$0xff]
        %v1373 = vld [vmem:[%s624 + $0x58] sm:$0xff]
        %v1374 = vld [vmem:[%s624 + $0x60] sm:$0xff]
        %v1375 = vld [vmem:[%s624 + $0x68] sm:$0xff]
        %v1376 = vld [vmem:[%s624 + $0x70] sm:$0xff]
        %v1377 = vld [vmem:[%s624 + $0x78] sm:$0xff]
        %v1378 = vld [vmem:[%s762] sm:$0x3]
        %v1380 = vperm.slane %v1378, 0
        %v1381 = vperm.slane %v1378, 1
        %v1400 = vunpack.c.l.b16 %v1362
        %v1401 = vunpack.c.h.b16 %v1362
        %v1402 = vunpack.c.l.b16 %v1363
        %v1403 = vunpack.c.h.b16 %v1363
        %v1404 = vunpack.c.l.b16 %v1364
        %v1405 = vunpack.c.h.b16 %v1364
        %v1406 = vunpack.c.l.b16 %v1365
        %v1407 = vunpack.c.h.b16 %v1365
        %v1408 = vunpack.c.l.b16 %v1366
        %v1409 = vunpack.c.h.b16 %v1366
        %v1410 = vunpack.c.l.b16 %v1367
        %v1411 = vunpack.c.h.b16 %v1367
        %v1412 = vunpack.c.l.b16 %v1368
        %v1413 = vunpack.c.h.b16 %v1368
        %v1414 = vunpack.c.l.b16 %v1369
        %v1415 = vunpack.c.h.b16 %v1369
        %v1416 = vunpack.c.l.b16 %v1370
        %v1417 = vunpack.c.h.b16 %v1370
        %v1418 = vunpack.c.l.b16 %v1371
        %v1419 = vunpack.c.h.b16 %v1371
        %v1420 = vunpack.c.l.b16 %v1372
        %v1421 = vunpack.c.h.b16 %v1372
        %v1422 = vunpack.c.l.b16 %v1373
        %v1423 = vunpack.c.h.b16 %v1373
        %v1424 = vunpack.c.l.b16 %v1374
        %v1425 = vunpack.c.h.b16 %v1374
        %v1426 = vunpack.c.l.b16 %v1375
        %v1427 = vunpack.c.h.b16 %v1375
        %v1428 = vunpack.c.l.b16 %v1376
        %v1429 = vunpack.c.h.b16 %v1376
        %v1430 = vunpack.c.l.b16 %v1377
        %v1431 = vunpack.c.h.b16 %v1377
        %v1432 = vpack.c.b16 %v1402, %v1400
        %v1433 = vpack.c.b16 %v1403, %v1401
        %v1434 = vpack.c.b16 %v1406, %v1404
        %v1435 = vpack.c.b16 %v1407, %v1405
        %v1436 = vpack.c.b16 %v1410, %v1408
        %v1437 = vpack.c.b16 %v1411, %v1409
        %v1438 = vpack.c.b16 %v1414, %v1412
        %v1439 = vpack.c.b16 %v1415, %v1413
        %v1440 = vpack.c.b16 %v1418, %v1416
        %v1441 = vpack.c.b16 %v1419, %v1417
        %v1442 = vpack.c.b16 %v1422, %v1420
        %v1443 = vpack.c.b16 %v1423, %v1421
        %v1444 = vpack.c.b16 %v1426, %v1424
        %v1445 = vpack.c.b16 %v1427, %v1425
        %v1446 = vpack.c.b16 %v1430, %v1428
        %v1447 = vpack.c.b16 %v1431, %v1429
        %1464 = vmatpush.bf16.msra.mxu0 %v1446
        %1465 = vmatpush.bf16.msra.mxu0 %v1444
        %1466 = vmatpush.bf16.msra.mxu0 %v1442
        %1467 = vmatpush.bf16.msra.mxu0 %v1440
        %1468 = vmatpush.bf16.msra.mxu0 %v1438
        %1469 = vmatpush.bf16.msra.mxu0 %v1436
        %1470 = vmatpush.bf16.msra.mxu0 %v1434
        %1471 = vmatpush.bf16.msra.mxu0 %v1432
        %1472 = vmatmul.bf16.gmra.mxu0 %v1361
        %v1473 = vpop.f32.mrf.mxu0
        %v1474 = vadd.f32 %v1380, %v1473
        %v1475 = vpop.f32.mrf.mxu0
        %1476 = vdwg.mxu0
        %1477 = vmatpush.bf16.msra.mxu0 %v1447
        %1478 = vmatpush.bf16.msra.mxu0 %v1445
        %1479 = vmatpush.bf16.msra.mxu0 %v1443
        %1480 = vmatpush.bf16.msra.mxu0 %v1441
        %1481 = vmatpush.bf16.msra.mxu0 %v1439
        %1482 = vmatpush.bf16.msra.mxu0 %v1437
        %1483 = vmatpush.bf16.msra.mxu0 %v1435
        %1484 = vmatpush.bf16.msra.mxu0 %v1433
        %1485 = vmatmul.bf16.gmra.mxu0 %v1361
        %v1486 = vpop.f32.mrf.mxu0
        %v1487 = vadd.f32 %v1381, %v1486
        %v1488 = vpop.f32.mrf.mxu0
        %1489 = vdwg.mxu0
        %v1490 = vmax.f32 %v1474, 0.0
        %v1491 = vmax.f32 %v1487, 0.0
        %v1492 = vpack.c.bf16 %v1490, %v1490
        %v1493 = vpack.c.bf16 %v1491, %v1491
        %v1494 = vld [vmem:[%s634] sm:$0xf]
        %v1495 = vld [vmem:[%s634 + $0x4] sm:$0xf]
        %v1496 = vld [vmem:[%s634 + $0x8] sm:$0xf]
        %v1497 = vld [vmem:[%s634 + $0xc] sm:$0xf]
        %v1498 = vld [vmem:[%s634 + $0x10] sm:$0xf]
        %v1499 = vld [vmem:[%s634 + $0x14] sm:$0xf]
        %v1500 = vld [vmem:[%s634 + $0x18] sm:$0xf]
        %v1501 = vld [vmem:[%s634 + $0x1c] sm:$0xf]
        %v1502 = vld [vmem:[%s634 + $0x20] sm:$0xf]
        %v1503 = vld [vmem:[%s634 + $0x24] sm:$0xf]
        %v1504 = vld [vmem:[%s634 + $0x28] sm:$0xf]
        %v1505 = vld [vmem:[%s634 + $0x2c] sm:$0xf]
        %v1506 = vld [vmem:[%s634 + $0x30] sm:$0xf]
        %v1507 = vld [vmem:[%s634 + $0x34] sm:$0xf]
        %v1508 = vld [vmem:[%s634 + $0x38] sm:$0xf]
        %v1509 = vld [vmem:[%s634 + $0x3c] sm:$0xf]
        %v1510 = vld [vmem:[%s634 + $0x40] sm:$0xf]
        %v1511 = vld [vmem:[%s634 + $0x44] sm:$0xf]
        %v1512 = vld [vmem:[%s634 + $0x48] sm:$0xf]
        %v1513 = vld [vmem:[%s634 + $0x4c] sm:$0xf]
        %v1514 = vld [vmem:[%s634 + $0x50] sm:$0xf]
        %v1515 = vld [vmem:[%s634 + $0x54] sm:$0xf]
        %v1516 = vld [vmem:[%s634 + $0x58] sm:$0xf]
        %v1517 = vld [vmem:[%s634 + $0x5c] sm:$0xf]
        %v1518 = vld [vmem:[%s634 + $0x60] sm:$0xf]
        %v1519 = vld [vmem:[%s634 + $0x64] sm:$0xf]
        %v1520 = vld [vmem:[%s634 + $0x68] sm:$0xf]
        %v1521 = vld [vmem:[%s634 + $0x6c] sm:$0xf]
        %v1522 = vld [vmem:[%s634 + $0x70] sm:$0xf]
        %v1523 = vld [vmem:[%s634 + $0x74] sm:$0xf]
        %v1524 = vld [vmem:[%s634 + $0x78] sm:$0xf]
        %v1525 = vld [vmem:[%s634 + $0x7c] sm:$0xf]
        %v1526 = vld [vmem:[%s765] sm:$0x1]
        %v1528 = vperm.slane %v1526, 0
        %v1562 = vunpack.c.l.b16 %v1494
        %v1563 = vunpack.c.l.b16 %v1495
        %v1564 = vunpack.c.l.b16 %v1496
        %v1565 = vunpack.c.l.b16 %v1497
        %v1566 = vunpack.c.l.b16 %v1498
        %v1567 = vunpack.c.l.b16 %v1499
        %v1568 = vunpack.c.l.b16 %v1500
        %v1569 = vunpack.c.l.b16 %v1501
        %v1570 = vunpack.c.l.b16 %v1502
        %v1571 = vunpack.c.l.b16 %v1503
        %v1572 = vunpack.c.l.b16 %v1504
        %v1573 = vunpack.c.l.b16 %v1505
        %v1574 = vunpack.c.l.b16 %v1506
        %v1575 = vunpack.c.l.b16 %v1507
        %v1576 = vunpack.c.l.b16 %v1508
        %v1577 = vunpack.c.l.b16 %v1509
        %v1578 = vunpack.c.l.b16 %v1510
        %v1579 = vunpack.c.l.b16 %v1511
        %v1580 = vunpack.c.l.b16 %v1512
        %v1581 = vunpack.c.l.b16 %v1513
        %v1582 = vunpack.c.l.b16 %v1514
        %v1583 = vunpack.c.l.b16 %v1515
        %v1584 = vunpack.c.l.b16 %v1516
        %v1585 = vunpack.c.l.b16 %v1517
        %v1586 = vunpack.c.l.b16 %v1518
        %v1587 = vunpack.c.l.b16 %v1519
        %v1588 = vunpack.c.l.b16 %v1520
        %v1589 = vunpack.c.l.b16 %v1521
        %v1590 = vunpack.c.l.b16 %v1522
        %v1591 = vunpack.c.l.b16 %v1523
        %v1592 = vunpack.c.l.b16 %v1524
        %v1593 = vunpack.c.l.b16 %v1525
        %v1594 = vpack.c.b16 %v1563, %v1562
        %v1595 = vpack.c.b16 %v1565, %v1564
        %v1596 = vpack.c.b16 %v1567, %v1566
        %v1597 = vpack.c.b16 %v1569, %v1568
        %v1598 = vpack.c.b16 %v1571, %v1570
        %v1599 = vpack.c.b16 %v1573, %v1572
        %v1600 = vpack.c.b16 %v1575, %v1574
        %v1601 = vpack.c.b16 %v1577, %v1576
        %v1602 = vpack.c.b16 %v1579, %v1578
        %v1603 = vpack.c.b16 %v1581, %v1580
        %v1604 = vpack.c.b16 %v1583, %v1582
        %v1605 = vpack.c.b16 %v1585, %v1584
        %v1606 = vpack.c.b16 %v1587, %v1586
        %v1607 = vpack.c.b16 %v1589, %v1588
        %v1608 = vpack.c.b16 %v1591, %v1590
        %v1609 = vpack.c.b16 %v1593, %v1592
        %1626 = vmatpush.bf16.msra.mxu0 %v1601
        %1627 = vmatpush.bf16.msra.mxu0 %v1600
        %1628 = vmatpush.bf16.msra.mxu0 %v1599
        %1629 = vmatpush.bf16.msra.mxu0 %v1598
        %1630 = vmatpush.bf16.msra.mxu0 %v1597
        %1631 = vmatpush.bf16.msra.mxu0 %v1596
        %1632 = vmatpush.bf16.msra.mxu0 %v1595
        %1633 = vmatpush.bf16.msra.mxu0 %v1594
        %1634 = vmatmul.bf16.gmra.mxu0 %v1492
        %v1635 = vpop.f32.mrf.mxu0
        %v1636 = vadd.f32 %v1528, %v1635
        %v1637 = vpop.f32.mrf.mxu0
        %1638 = vdwg.mxu0
        %1639 = vmatpush.bf16.msra.mxu0 %v1609
        %1640 = vmatpush.bf16.msra.mxu0 %v1608
        %1641 = vmatpush.bf16.msra.mxu0 %v1607
        %1642 = vmatpush.bf16.msra.mxu0 %v1606
        %1643 = vmatpush.bf16.msra.mxu0 %v1605
        %1644 = vmatpush.bf16.msra.mxu0 %v1604
        %1645 = vmatpush.bf16.msra.mxu0 %v1603
        %1646 = vmatpush.bf16.msra.mxu0 %v1602
        %1647 = vmatmul.bf16.gmra.mxu0 %v1493
        %v1648 = vpop.f32.mrf.mxu0
        %v1649 = vadd.f32 %v1636, %v1648
        %v1650 = vpop.f32.mrf.mxu0
        %1651 = vdwg.mxu0
        %v1652 = vadd.f32 %v1360, %v1649
        %1653 = vadd.xlane.f32.xlu0 %v1652
        %v1654 = vpop.xlane.xlu0 %1653
        %v1655 = vmul.f32 %v1654, %v1332
        %v1656 = vsub.f32 %v1652, %v1655
        %v1657 = vmul.f32 %v1656, %v1656
        %1658 = vadd.xlane.f32.xlu0 %v1657
        %v1659 = vpop.xlane.xlu0 %1658
        %v1660 = vmul.f32 %v1659, %v1332
        %v1661 = vadd.f32 %v1660, 1e-05
        %v1662 = vrsqrt.pop %v1661
        %v1663 = vmul.f32 %v1662, %v1661
        %v1664 = vmul.f32 %v1663, %v1662
        %v1665 = vmul.f32 0.5, %v1664
        %v1666 = vsub.f32 1.5, %v1665
        %v1667 = vmul.f32 %v1662, %v1666
        %vm1668 = vweird.f32 %v1661
        %vm1669 = vweird.f32 %v1662
        %vm1670 = vmor %vm1668, %vm1669
        %v1671 = vsel %vm1670, %v1662, %v1667
        %v1672 = vmul.f32 %v1656, %v1671
        %v1673 = vld [vmem:[%s643] sm:$0x1]
        %v1675 = vperm.slane %v1673, 0
        %v1677 = vmul.f32 %v1672, %v1675
        %v1678 = vld [vmem:[%s652] sm:$0x1]
        %v1680 = vperm.slane %v1678, 0
        %v1682 = vadd.f32 %v1677, %v1680
        %1683 = vst [vmem:[#allocation2] sm:$0xff] %v1682
        %p1684 = scmp.eq.s32.totalorder %s41, 1
        // Predicated region
        $region101: #{transformer_classifier_forward.4} parent=71 // pred_check
          %p1685 = pneg %p1684
        $region102: #{transformer_classifier_forward.4} parent=71 // pred_check_branch
          %1687 = sbr.rel (%p1685) target = $region104
        $region103: #{transformer_classifier_forward.4} parent=71 // pred_region
          %1688 = vst [vmem:[%s769] sm:$0xff] %v1682
        $region104: #{transformer_classifier_forward.4} parent=71 // pred_fallthru
          _
        %p1689 = scmp.lt.s32.totalorder %s40, 1
        %s1690 = scalar_select %p1689, %s40, 1
        %s1691 = smul.addr %s1690, 8
        %s1692 = scalar_lea.vmem %s13, %s1691
        // Predicated region
        $region105: #{transformer_classifier_forward.4} parent=71 // pred_check
          %p1693 = pneg %p404
        $region106: #{transformer_classifier_forward.4} parent=71 // pred_check_branch
          %1695 = sbr.rel (%p1693) target = $region108
        $region107: #{transformer_classifier_forward.4} parent=71 // pred_region
          _
        $region108: #{transformer_classifier_forward.4} parent=71 // pred_fallthru
          _
      $region72: #{transformer_classifier_forward.4} parent=5 // pred_fallthru
        _
      %p1696 = scmp.le.s32.totalorder 2, %s31
      // Predicated region
      $region109: #{transformer_classifier_forward.4} parent=5 // pred_check
        %p1697 = pneg %p1696
      $region110: #{transformer_classifier_forward.4} parent=5 // pred_check_branch
        %1699 = sbr.rel (%p1697) target = $region112
      $region111: #{transformer_classifier_forward.4} parent=5 // pred_region
        %s1700 = ssub.s32 %s31, 2
        // Predicated region
        $region113: #{transformer_classifier_forward.4} parent=111 // pred_check
          %p1701 = pneg %p410
        $region114: #{transformer_classifier_forward.4} parent=111 // pred_check_branch
          %1703 = sbr.rel (%p1701) target = $region116
        $region115: #{transformer_classifier_forward.4} parent=111 // pred_region
          %p1704 = scmp.lt.s32.totalorder %s42, 1
          %s1705 = scalar_select %p1704, %s42, 1
          %s1706 = smul.addr %s1705, 8
          %s1707 = scalar_lea.vmem %s13, %s1706
        $region116: #{transformer_classifier_forward.4} parent=111 // pred_fallthru
          _
      $region112: #{transformer_classifier_forward.4} parent=5 // pred_fallthru
        _
    $region6: #{transformer_classifier_forward.4} parent=1 // loop_footer
      %s35 = sadd.s32 1, %s31
    $region7: #{transformer_classifier_forward.4} parent=1 // loop_footer_branch
      %30 = sbr.rel target = $region3
    $region8: #{transformer_classifier_forward.4} parent=1 // loop_exit
      _
    %1708 = vsyncpa [#allocation5], 1
    %s1709 = scalar_lea.sflag [#allocation5], 1
    %1710 = vsyncpa %s1709, 1
    %1711 = vsyncpa [#allocation7], 1
    %s1712 = scalar_lea.sflag [#allocation7], 1
    %1713 = vsyncpa %s1712, 1
    %1714 = vsyncpa [#allocation10], 1
    %s1715 = scalar_lea.sflag [#allocation10], 1
    %1716 = vsyncpa %s1715, 1
    %1717 = vsyncpa [#allocation13], 1
    %s1718 = scalar_lea.sflag [#allocation13], 1
    %1719 = vsyncpa %s1718, 1

</llo_original>
